<compile_context>
chip_gen: v6e
topology: v6e:2x2x1
jax: 0.10.0
libtpu: 0.0.40
codegen_flags: <defaults>
</compile_context>

<pallas_src>
import math
import jax
import jax.numpy as jnp
from jax.experimental import pallas as pl
from jax.experimental.pallas import tpu as pltpu

B, S, H = 2, 8, 128
NUM_HEADS, HEAD_DIM = 4, 32
INTER = 256
NUM_LAYERS = 4
VOCAB, MAX_POS, TYPE_VOCAB = 64, 16, 2
LN_EPS = 1e-12
MASK_NEG = -1e9
BS = B * S                    # 16 tokens processed as one packed batch
NHBS = NUM_HEADS * BS         # 64 packed score columns


def _layer_norm(x, gamma, beta):
    mu = jnp.mean(x, axis=-1, keepdims=True)
    var = jnp.mean(jnp.square(x - mu), axis=-1, keepdims=True)
    return (x - mu) * jax.lax.rsqrt(var + LN_EPS) * gamma + beta


def _erf(x):
    # Abramowitz & Stegun 7.1.26, |abs err| < 1.5e-7 -> f32-exact for GELU.
    a1, a2, a3, a4, a5, p = (0.254829592, -0.284496736, 1.421413741,
                             -1.453152027, 1.061405429, 0.3275911)
    sgn = jnp.where(x >= 0.0, 1.0, -1.0)
    ax = jnp.abs(x)
    t = 1.0 / (1.0 + p * ax)
    poly = ((((a5 * t + a4) * t + a3) * t + a2) * t + a1) * t
    return sgn * (1.0 - poly * jnp.exp(-ax * ax))


def _gelu_exact(x):
    # HF/PyTorch BERT uses exact (erf) GELU.
    return 0.5 * x * (1.0 + _erf(x * (1.0 / math.sqrt(2.0))))


# ----------------------------------------------------------------- kernel ----
def fused_forward_kernel(emb_ref, mask_ref, bd_ref, ones_ref,
                         emb_g_ref, emb_b_ref,
                         wqkv_ref, bqkv_ref, wo_ref, bo_ref, g1_ref, b1_ref,
                         wi_ref, bi_ref, wf_ref, bf_ref, g2_ref, b2_ref,
                         wreg_ref, breg_ref, labels_ref,
                         score_ref, loss_ref,
                         x_sc):
    # Embedding LayerNorm once; activations carried as values across the
    # fully-unrolled layer loop (everything fits in a couple of vregs).
    x = _layer_norm(emb_ref[...], emb_g_ref[...], emb_b_ref[...])   # (BS,H) f32

    mask = mask_ref[...]       # (BS, NHBS) additive mask, tiled over heads
    bd = bd_ref[...]           # (NHBS, H) block-diagonal head selector
    ones_bd = ones_ref[...]    # (NHBS, NHBS) block-diagonal ones (row sums)

    for l in range(NUM_LAYERS):                    # static unroll (4 layers)
        xb = x.astype(jnp.bfloat16)

        # Fused QKV projection (1/sqrt(head_dim) already folded into Q cols).
        qkv = jnp.dot(xb, wqkv_ref[l],
                      preferred_element_type=jnp.float32) + bqkv_ref[l]
        q = qkv[:, :H]                             # (BS, H)  lane-aligned slices
        k = qkv[:, H:2 * H]
        v = qkv[:, 2 * H:]

        # Replicate K/V along sublanes and block-diagonal-mask per head:
        # k_rep[h*BS + j, d] = k[j, d] iff d belongs to head h.
        k_rep = (jnp.tile(k, (NUM_HEADS, 1)) * bd).astype(jnp.bfloat16)
        v_rep = (jnp.tile(v, (NUM_HEADS, 1)) * bd).astype(jnp.bfloat16)

        # Packed scores for ALL heads in one K=128 matmul: s[:, h*BS+j] = q_h.k_h[j]
        s = jax.lax.dot_general(q.astype(jnp.bfloat16), k_rep,
                                (((1,), (1,)), ((), ())),
                                preferred_element_type=jnp.float32)  # (BS,NHBS)
        s = s + mask
        # One max per row across all heads: softmax is invariant to any
        # per-row constant, so this is exact for each per-head block.
        s = s - jnp.max(s, axis=-1, keepdims=True)
        p = jnp.exp(s)
        # Per-head row sums via one block-diagonal matmul (f32).
        denom = jnp.dot(p, ones_bd, preferred_element_type=jnp.float32)
        p = p * pl.reciprocal(denom, approx=True)
        # Context for all heads, already concatenated along lanes: (BS, H).
        ctx = jnp.dot(p.astype(jnp.bfloat16), v_rep,
                      preferred_element_type=jnp.float32)
        # Single full (H,H) output projection.
        attn = jnp.dot(ctx.astype(jnp.bfloat16), wo_ref[l],
                       preferred_element_type=jnp.float32) + bo_ref[l]

        h1 = _layer_norm(x + attn, g1_ref[l], b1_ref[l])
        ff = jnp.dot(h1.astype(jnp.bfloat16), wi_ref[l],
                     preferred_element_type=jnp.float32) + bi_ref[l]
        ff = _gelu_exact(ff)
        ff = jnp.dot(ff.astype(jnp.bfloat16), wf_ref[l],
                     preferred_element_type=jnp.float32) + bf_ref[l]
        x = _layer_norm(h1 + ff, g2_ref[l], b2_ref[l])

    # Regression head + MSE loss (CLS rows via strided sublane load).
    x_sc[...] = x
    cls = x_sc[pl.ds(0, B, stride=S), :]                           # (B, H)
    score = jnp.sum(cls * wreg_ref[...], axis=-1,
                    keepdims=True) + breg_ref[...]                 # (B, 1)
    score_ref[...] = jnp.broadcast_to(score, (B, 128))
    diff = score - labels_ref[...]
    mse = jnp.sum(diff * diff, axis=0, keepdims=True) * (1.0 / B)  # (1, 1)
    loss_ref[...] = jnp.broadcast_to(mse, (1, 128))


# ---------------------------------------------------------------- wrapper ----
def tinybert_forward(params, emb, mask_packed, bd, ones_bd, labels2):
    layer_ws = (params['wqkv'], params['bqkv'], params['wo'], params['bo'],
                params['g1'], params['b1'], params['wi'], params['bi'],
                params['wf'], params['bf'], params['g2'], params['b2'])

    inputs = (emb, mask_packed, bd, ones_bd,
              params['emb_g'], params['emb_b'], *layer_ws,
              params['reg_w'], params['reg_b'], labels2)

    # Single grid step: every array is one full-shape VMEM block.
    in_specs = [pl.BlockSpec(a.shape, lambda i, n=len(a.shape): (0,) * n)
                for a in inputs]
    out_shape = (jax.ShapeDtypeStruct((B, 128), jnp.float32),   # score (padded)
                 jax.ShapeDtypeStruct((1, 128), jnp.float32))   # loss  (padded)
    out_specs = (pl.BlockSpec((B, 128), lambda i: (0, 0)),
                 pl.BlockSpec((1, 128), lambda i: (0, 0)))

    grid_spec = pltpu.PrefetchScalarGridSpec(
        num_scalar_prefetch=0,
        grid=(1,),
        in_specs=in_specs,
        out_specs=out_specs,
        scratch_shapes=[pltpu.VMEM((BS, H), jnp.float32)],
    )
    return pl.pallas_call(
        fused_forward_kernel,
        out_shape=out_shape,
        grid_spec=grid_spec,
        compiler_params=pltpu.CompilerParams(
            dimension_semantics=("arbitrary",)),
    )(*inputs)


# ----------------------------------------------------------------- params ----
def init_params(key):
    keys = iter(jax.random.split(key, 32))

    def dense_f32(fan_in, fan_out):
        return 0.02 * jax.random.normal(next(keys), (fan_in, fan_out), jnp.float32)

    def stack(make):
        return jnp.stack([make() for _ in range(NUM_LAYERS)])

    inv_sqrt_d = 1.0 / math.sqrt(HEAD_DIM)

    def qkv_w():
        w = dense_f32(H, 3 * H)
        # Fold 1/sqrt(head_dim) into the Q projection (zero runtime cost).
        # NOTE: when loading a real checkpoint, scale the Q bias identically
        # and keep f32 master weights, casting to bf16 only at load time.
        return w.at[:, :H].multiply(inv_sqrt_d).astype(jnp.bfloat16)

    return {
        'word_emb': 0.02 * jax.random.normal(next(keys), (VOCAB, H), jnp.float32),
        'pos_emb': 0.02 * jax.random.normal(next(keys), (MAX_POS, H), jnp.float32),
        'type_emb': 0.02 * jax.random.normal(next(keys), (TYPE_VOCAB, H), jnp.float32),
        'emb_g': jnp.ones((1, H), jnp.float32),
        'emb_b': jnp.zeros((1, H), jnp.float32),
        'reg_w': dense_f32(1, H),                              # (1, H) f32
        'reg_b': jnp.zeros((1, 1), jnp.float32),
        # Stacked per-layer weights; MXU operands stored in bf16, rest f32.
        'wqkv': stack(qkv_w),                                  # (L, H, 3H)
        'bqkv': jnp.zeros((NUM_LAYERS, 1, 3 * H), jnp.float32),
        'wo': stack(lambda: dense_f32(H, H).astype(jnp.bfloat16)),
        'bo': jnp.zeros((NUM_LAYERS, 1, H), jnp.float32),
        'g1': jnp.ones((NUM_LAYERS, 1, H), jnp.float32),
        'b1': jnp.zeros((NUM_LAYERS, 1, H), jnp.float32),
        'wi': stack(lambda: dense_f32(H, INTER).astype(jnp.bfloat16)),
        'bi': jnp.zeros((NUM_LAYERS, 1, INTER), jnp.float32),
        'wf': stack(lambda: dense_f32(INTER, H).astype(jnp.bfloat16)),
        'bf': jnp.zeros((NUM_LAYERS, 1, H), jnp.float32),
        'g2': jnp.ones((NUM_LAYERS, 1, H), jnp.float32),
        'b2': jnp.zeros((NUM_LAYERS, 1, H), jnp.float32),
    }


# ---------------------------------------------------------------- forward ----
def forward(params, input_ids, attention_mask=None, labels=None):
    if attention_mask is None:
        attention_mask = jnp.ones((B, S), jnp.int32)

    # Embedding lookups (gather) kept as XLA glue; the rest is one fused kernel.
    tok = jnp.take(params['word_emb'], input_ids, axis=0)          # (B, S, H)
    pos = params['pos_emb'][:S][None, :, :]
    typ = params['type_emb'][0][None, None, :]                     # token_type_ids = 0
    emb = (tok + pos + typ).reshape(BS, H)

    # Additive mask (BS, BS): key padding + cross-batch blocking so the whole
    # batch shares one packed score matmul; tiled over heads -> (BS, NHBS).
    batch_idx = jnp.arange(BS, dtype=jnp.int32) // S
    same_batch = batch_idx[:, None] == batch_idx[None, :]
    key_valid = attention_mask.reshape(BS).astype(bool)
    add_mask = jnp.where(same_batch & key_valid[None, :], 0.0, MASK_NEG)
    mask_packed = jnp.tile(add_mask.astype(jnp.float32), (1, NUM_HEADS))

    # Block-diagonal constants used to pack all heads into 2-D matmuls.
    row_head = jnp.arange(NHBS, dtype=jnp.int32) // BS             # (64,)
    col_head = jnp.arange(H, dtype=jnp.int32) // HEAD_DIM          # (128,)
    bd = (row_head[:, None] == col_head[None, :]).astype(jnp.float32)      # (64,128)
    ones_bd = (row_head[:, None] == row_head[None, :]).astype(jnp.float32)  # (64,64)

    if labels is not None:
        labels2 = labels.reshape(B, 1).astype(jnp.float32)
    else:
        labels2 = jnp.zeros((B, 1), jnp.float32)   # loss computed but discarded

    score_pad, loss_pad = tinybert_forward(params, emb, mask_packed, bd,
                                           ones_bd, labels2)
    return {'loss': loss_pad[0, 0] if labels is not None else None,
            'score': score_pad[:, 0]}                              # .squeeze()


if __name__ == "__main__":
    key = jax.random.PRNGKey(0)
    pkey, ikey, lkey = jax.random.split(key, 3)
    params = init_params(pkey)

    input_ids = jax.random.randint(ikey, (B, S), 0, VOCAB, dtype=jnp.int32)
    attention_mask = jnp.ones((B, S), jnp.int32).at[1, 6:].set(0)   # ragged batch
    labels = jax.random.normal(lkey, (B,), jnp.float32)

    out = forward(params, input_ids, attention_mask, labels)
    jax.block_until_ready((out['score'], out['loss']))
    assert out['score'].shape == (B,) and out['loss'].shape == ()
    print("KERNEL_OK")
</pallas_src>

<mosaic_0001>
module attributes {stable_mosaic.version = 11 : i64} {
  func.func @fused_forward_kernel(%arg0: i32, %arg1: memref<16x128xf32, #tpu.memory_space<vmem>>, %arg2: memref<16x64xf32, #tpu.memory_space<vmem>>, %arg3: memref<64x128xf32, #tpu.memory_space<vmem>>, %arg4: memref<64x64xf32, #tpu.memory_space<vmem>>, %arg5: memref<1x128xf32, #tpu.memory_space<vmem>>, %arg6: memref<1x128xf32, #tpu.memory_space<vmem>>, %arg7: memref<4x128x384xbf16, #tpu.memory_space<vmem>>, %arg8: memref<4x1x384xf32, #tpu.memory_space<vmem>>, %arg9: memref<4x128x128xbf16, #tpu.memory_space<vmem>>, %arg10: memref<4x1x128xf32, #tpu.memory_space<vmem>>, %arg11: memref<4x1x128xf32, #tpu.memory_space<vmem>>, %arg12: memref<4x1x128xf32, #tpu.memory_space<vmem>>, %arg13: memref<4x128x256xbf16, #tpu.memory_space<vmem>>, %arg14: memref<4x1x256xf32, #tpu.memory_space<vmem>>, %arg15: memref<4x256x128xbf16, #tpu.memory_space<vmem>>, %arg16: memref<4x1x128xf32, #tpu.memory_space<vmem>>, %arg17: memref<4x1x128xf32, #tpu.memory_space<vmem>>, %arg18: memref<4x1x128xf32, #tpu.memory_space<vmem>>, %arg19: memref<1x128xf32, #tpu.memory_space<vmem>>, %arg20: memref<1x1xf32, #tpu.memory_space<vmem>>, %arg21: memref<2x1xf32, #tpu.memory_space<vmem>>, %arg22: memref<2x128xf32, #tpu.memory_space<vmem>>, %arg23: memref<1x128xf32, #tpu.memory_space<vmem>>, %arg24: memref<16x128xf32, #tpu.memory_space<vmem>>) attributes {dimension_semantics = [#tpu.dimension_semantics<arbitrary>], iteration_bounds = array<i64: 1>, scalar_prefetch = 0 : i64, scratch_operands = 1 : i64, tpu.core_type = #tpu.core_type<tc>, window_params = [{pipeline_mode = #tpu.pipeline_mode<synchronous>, transform_indices = @transform_0, window_bounds = array<i64: 16, 128>}, {pipeline_mode = #tpu.pipeline_mode<synchronous>, transform_indices = @transform_1, window_bounds = array<i64: 16, 64>}, {pipeline_mode = #tpu.pipeline_mode<synchronous>, transform_indices = @transform_2, window_bounds = array<i64: 64, 128>}, {pipeline_mode = #tpu.pipeline_mode<synchronous>, transform_indices = @transform_3, window_bounds = array<i64: 64, 64>}, {pipeline_mode = #tpu.pipeline_mode<synchronous>, transform_indices = @transform_4, window_bounds = array<i64: 1, 128>}, {pipeline_mode = #tpu.pipeline_mode<synchronous>, transform_indices = @transform_5, window_bounds = array<i64: 1, 128>}, {pipeline_mode = #tpu.pipeline_mode<synchronous>, transform_indices = @transform_6, window_bounds = array<i64: 4, 128, 384>}, {pipeline_mode = #tpu.pipeline_mode<synchronous>, transform_indices = @transform_7, window_bounds = array<i64: 4, 1, 384>}, {pipeline_mode = #tpu.pipeline_mode<synchronous>, transform_indices = @transform_8, window_bounds = array<i64: 4, 128, 128>}, {pipeline_mode = #tpu.pipeline_mode<synchronous>, transform_indices = @transform_9, window_bounds = array<i64: 4, 1, 128>}, {pipeline_mode = #tpu.pipeline_mode<synchronous>, transform_indices = @transform_10, window_bounds = array<i64: 4, 1, 128>}, {pipeline_mode = #tpu.pipeline_mode<synchronous>, transform_indices = @transform_11, window_bounds = array<i64: 4, 1, 128>}, {pipeline_mode = #tpu.pipeline_mode<synchronous>, transform_indices = @transform_12, window_bounds = array<i64: 4, 128, 256>}, {pipeline_mode = #tpu.pipeline_mode<synchronous>, transform_indices = @transform_13, window_bounds = array<i64: 4, 1, 256>}, {pipeline_mode = #tpu.pipeline_mode<synchronous>, transform_indices = @transform_14, window_bounds = array<i64: 4, 256, 128>}, {pipeline_mode = #tpu.pipeline_mode<synchronous>, transform_indices = @transform_15, window_bounds = array<i64: 4, 1, 128>}, {pipeline_mode = #tpu.pipeline_mode<synchronous>, transform_indices = @transform_16, window_bounds = array<i64: 4, 1, 128>}, {pipeline_mode = #tpu.pipeline_mode<synchronous>, transform_indices = @transform_17, window_bounds = array<i64: 4, 1, 128>}, {pipeline_mode = #tpu.pipeline_mode<synchronous>, transform_indices = @transform_18, window_bounds = array<i64: 1, 128>}, {pipeline_mode = #tpu.pipeline_mode<synchronous>, transform_indices = @transform_19, window_bounds = array<i64: 1, 1>}, {pipeline_mode = #tpu.pipeline_mode<synchronous>, transform_indices = @transform_20, window_bounds = array<i64: 2, 1>}, {pipeline_mode = #tpu.pipeline_mode<synchronous>, transform_indices = @transform_21, window_bounds = array<i64: 2, 128>}, {pipeline_mode = #tpu.pipeline_mode<synchronous>, transform_indices = @transform_22, window_bounds = array<i64: 1, 128>}]} {
    %c0 = arith.constant 0 : index
    %c0_0 = arith.constant 0 : index
    %0 = vector.load %arg1[%c0, %c0_0] : memref<16x128xf32, #tpu.memory_space<vmem>>, vector<16x128xf32>
    %c0_1 = arith.constant 0 : index
    %c0_2 = arith.constant 0 : index
    %1 = vector.load %arg5[%c0_1, %c0_2] : memref<1x128xf32, #tpu.memory_space<vmem>>, vector<1x128xf32>
    %c0_3 = arith.constant 0 : index
    %c0_4 = arith.constant 0 : index
    %2 = vector.load %arg6[%c0_3, %c0_4] : memref<1x128xf32, #tpu.memory_space<vmem>>, vector<1x128xf32>
    %cst = arith.constant dense<0.000000e+00> : vector<16xf32>
    %3 = vector.multi_reduction <add>, %0, %cst [1] : vector<16x128xf32> to vector<16xf32>
    %4 = vector.shape_cast %3 : vector<16xf32> to vector<16x1xf32>
    %cst_5 = arith.constant 1.280000e+02 : f32
    %5 = vector.broadcast %cst_5 : f32 to vector<16x1xf32>
    %6 = arith.divf %4, %5 : vector<16x1xf32>
    %7 = vector.broadcast %6 : vector<16x1xf32> to vector<16x128xf32>
    %8 = arith.subf %0, %7 : vector<16x128xf32>
    %9 = arith.mulf %8, %8 : vector<16x128xf32>
    %cst_6 = arith.constant dense<0.000000e+00> : vector<16xf32>
    %10 = vector.multi_reduction <add>, %9, %cst_6 [1] : vector<16x128xf32> to vector<16xf32>
    %11 = vector.shape_cast %10 : vector<16xf32> to vector<16x1xf32>
    %cst_7 = arith.constant 1.280000e+02 : f32
    %12 = vector.broadcast %cst_7 : f32 to vector<16x1xf32>
    %13 = arith.divf %11, %12 : vector<16x1xf32>
    %14 = vector.broadcast %6 : vector<16x1xf32> to vector<16x128xf32>
    %15 = arith.subf %0, %14 : vector<16x128xf32>
    %cst_8 = arith.constant 9.99999996E-13 : f32
    %16 = vector.broadcast %cst_8 : f32 to vector<16x1xf32>
    %17 = arith.addf %13, %16 : vector<16x1xf32>
    %18 = math.rsqrt %17 : vector<16x1xf32>
    %19 = vector.broadcast %18 : vector<16x1xf32> to vector<16x128xf32>
    %20 = arith.mulf %15, %19 : vector<16x128xf32>
    %21 = vector.broadcast %1 : vector<1x128xf32> to vector<16x128xf32>
    %22 = arith.mulf %20, %21 : vector<16x128xf32>
    %23 = vector.broadcast %2 : vector<1x128xf32> to vector<16x128xf32>
    %24 = arith.addf %22, %23 : vector<16x128xf32>
    %c0_9 = arith.constant 0 : index
    %c0_10 = arith.constant 0 : index
    %25 = vector.load %arg2[%c0_9, %c0_10] : memref<16x64xf32, #tpu.memory_space<vmem>>, vector<16x64xf32>
    %c0_11 = arith.constant 0 : index
    %c0_12 = arith.constant 0 : index
    %26 = vector.load %arg3[%c0_11, %c0_12] : memref<64x128xf32, #tpu.memory_space<vmem>>, vector<64x128xf32>
    %c0_13 = arith.constant 0 : index
    %c0_14 = arith.constant 0 : index
    %27 = vector.load %arg4[%c0_13, %c0_14] : memref<64x64xf32, #tpu.memory_space<vmem>>, vector<64x64xf32>
    %28 = arith.truncf %24 : vector<16x128xf32> to vector<16x128xbf16>
    %c0_15 = arith.constant 0 : index
    %c0_16 = arith.constant 0 : index
    %c0_17 = arith.constant 0 : index
    %29 = vector.load %arg7[%c0_15, %c0_16, %c0_17] : memref<4x128x384xbf16, #tpu.memory_space<vmem>>, vector<1x128x384xbf16>
    %30 = vector.shape_cast %29 : vector<1x128x384xbf16> to vector<128x384xbf16>
    %cst_18 = arith.constant dense<0.000000e+00> : vector<16x384xf32>
    %31 = tpu.matmul %28, %30, %cst_18 {dimension_numbers = #tpu.dot_dimension_numbers<[1], [0], [0], [1], [0, 0, 1, 1], [], []>} : vector<16x128xbf16>, vector<128x384xbf16>, vector<16x384xf32> -> vector<16x384xf32>
    %c0_19 = arith.constant 0 : index
    %c0_20 = arith.constant 0 : index
    %c0_21 = arith.constant 0 : index
    %32 = vector.load %arg8[%c0_19, %c0_20, %c0_21] : memref<4x1x384xf32, #tpu.memory_space<vmem>>, vector<1x1x384xf32>
    %33 = vector.shape_cast %32 : vector<1x1x384xf32> to vector<1x384xf32>
    %34 = vector.broadcast %33 : vector<1x384xf32> to vector<16x384xf32>
    %35 = arith.addf %31, %34 : vector<16x384xf32>
    %36 = vector.extract_strided_slice %35 {offsets = [0, 0], sizes = [16, 128], strides = [1, 1]} : vector<16x384xf32> to vector<16x128xf32>
    %37 = vector.extract_strided_slice %35 {offsets = [0, 128], sizes = [16, 128], strides = [1, 1]} : vector<16x384xf32> to vector<16x128xf32>
    %38 = vector.extract_strided_slice %35 {offsets = [0, 256], sizes = [16, 128], strides = [1, 1]} : vector<16x384xf32> to vector<16x128xf32>
    %39 = tpu.concatenate %37, %37, %37, %37 in 0 : vector<16x128xf32>, vector<16x128xf32>, vector<16x128xf32>, vector<16x128xf32> -> vector<64x128xf32>
    %40 = arith.mulf %39, %26 : vector<64x128xf32>
    %41 = arith.truncf %40 : vector<64x128xf32> to vector<64x128xbf16>
    %42 = tpu.concatenate %38, %38, %38, %38 in 0 : vector<16x128xf32>, vector<16x128xf32>, vector<16x128xf32>, vector<16x128xf32> -> vector<64x128xf32>
    %43 = arith.mulf %42, %26 : vector<64x128xf32>
    %44 = arith.truncf %43 : vector<64x128xf32> to vector<64x128xbf16>
    %45 = arith.truncf %36 : vector<16x128xf32> to vector<16x128xbf16>
    %cst_22 = arith.constant dense<0.000000e+00> : vector<16x64xf32>
    %46 = tpu.matmul %45, %41, %cst_22 {dimension_numbers = #tpu.dot_dimension_numbers<[1], [1], [0], [0], [0, 0, 1, 0], [], []>} : vector<16x128xbf16>, vector<64x128xbf16>, vector<16x64xf32> -> vector<16x64xf32>
    %47 = arith.addf %46, %25 : vector<16x64xf32>
    %cst_23 = arith.constant dense<0xFF800000> : vector<16xf32>
    %48 = vector.multi_reduction <maximumf>, %47, %cst_23 [1] : vector<16x64xf32> to vector<16xf32>
    %49 = vector.shape_cast %48 : vector<16xf32> to vector<16x1xf32>
    %50 = vector.broadcast %49 : vector<16x1xf32> to vector<16x64xf32>
    %51 = arith.subf %47, %50 : vector<16x64xf32>
    %52 = math.exp %51 : vector<16x64xf32>
    %cst_24 = arith.constant dense<0.000000e+00> : vector<16x64xf32>
    %53 = tpu.matmul %52, %27, %cst_24 {dimension_numbers = #tpu.dot_dimension_numbers<[1], [0], [0], [1], [0, 0, 1, 1], [], []>} : vector<16x64xf32>, vector<64x64xf32>, vector<16x64xf32> -> vector<16x64xf32>
    %54 = tpu.reciprocal %53 {approx = true} : vector<16x64xf32> -> vector<16x64xf32>
    %55 = arith.mulf %52, %54 : vector<16x64xf32>
    %56 = arith.truncf %55 : vector<16x64xf32> to vector<16x64xbf16>
    %cst_25 = arith.constant dense<0.000000e+00> : vector<16x128xf32>
    %57 = tpu.matmul %56, %44, %cst_25 {dimension_numbers = #tpu.dot_dimension_numbers<[1], [0], [0], [1], [0, 0, 1, 1], [], []>} : vector<16x64xbf16>, vector<64x128xbf16>, vector<16x128xf32> -> vector<16x128xf32>
    %58 = arith.truncf %57 : vector<16x128xf32> to vector<16x128xbf16>
    %c0_26 = arith.constant 0 : index
    %c0_27 = arith.constant 0 : index
    %c0_28 = arith.constant 0 : index
    %59 = vector.load %arg9[%c0_26, %c0_27, %c0_28] : memref<4x128x128xbf16, #tpu.memory_space<vmem>>, vector<1x128x128xbf16>
    %60 = vector.shape_cast %59 : vector<1x128x128xbf16> to vector<128x128xbf16>
    %cst_29 = arith.constant dense<0.000000e+00> : vector<16x128xf32>
    %61 = tpu.matmul %58, %60, %cst_29 {dimension_numbers = #tpu.dot_dimension_numbers<[1], [0], [0], [1], [0, 0, 1, 1], [], []>} : vector<16x128xbf16>, vector<128x128xbf16>, vector<16x128xf32> -> vector<16x128xf32>
    %c0_30 = arith.constant 0 : index
    %c0_31 = arith.constant 0 : index
    %c0_32 = arith.constant 0 : index
    %62 = vector.load %arg10[%c0_30, %c0_31, %c0_32] : memref<4x1x128xf32, #tpu.memory_space<vmem>>, vector<1x1x128xf32>
    %63 = vector.shape_cast %62 : vector<1x1x128xf32> to vector<1x128xf32>
    %64 = vector.broadcast %63 : vector<1x128xf32> to vector<16x128xf32>
    %65 = arith.addf %61, %64 : vector<16x128xf32>
    %66 = arith.addf %24, %65 : vector<16x128xf32>
    %c0_33 = arith.constant 0 : index
    %c0_34 = arith.constant 0 : index
    %c0_35 = arith.constant 0 : index
    %67 = vector.load %arg11[%c0_33, %c0_34, %c0_35] : memref<4x1x128xf32, #tpu.memory_space<vmem>>, vector<1x1x128xf32>
    %68 = vector.shape_cast %67 : vector<1x1x128xf32> to vector<1x128xf32>
    %c0_36 = arith.constant 0 : index
    %c0_37 = arith.constant 0 : index
    %c0_38 = arith.constant 0 : index
    %69 = vector.load %arg12[%c0_36, %c0_37, %c0_38] : memref<4x1x128xf32, #tpu.memory_space<vmem>>, vector<1x1x128xf32>
    %70 = vector.shape_cast %69 : vector<1x1x128xf32> to vector<1x128xf32>
    %cst_39 = arith.constant dense<0.000000e+00> : vector<16xf32>
    %71 = vector.multi_reduction <add>, %66, %cst_39 [1] : vector<16x128xf32> to vector<16xf32>
    %72 = vector.shape_cast %71 : vector<16xf32> to vector<16x1xf32>
    %cst_40 = arith.constant 1.280000e+02 : f32
    %73 = vector.broadcast %cst_40 : f32 to vector<16x1xf32>
    %74 = arith.divf %72, %73 : vector<16x1xf32>
    %75 = vector.broadcast %74 : vector<16x1xf32> to vector<16x128xf32>
    %76 = arith.subf %66, %75 : vector<16x128xf32>
    %77 = arith.mulf %76, %76 : vector<16x128xf32>
    %cst_41 = arith.constant dense<0.000000e+00> : vector<16xf32>
    %78 = vector.multi_reduction <add>, %77, %cst_41 [1] : vector<16x128xf32> to vector<16xf32>
    %79 = vector.shape_cast %78 : vector<16xf32> to vector<16x1xf32>
    %cst_42 = arith.constant 1.280000e+02 : f32
    %80 = vector.broadcast %cst_42 : f32 to vector<16x1xf32>
    %81 = arith.divf %79, %80 : vector<16x1xf32>
    %82 = vector.broadcast %74 : vector<16x1xf32> to vector<16x128xf32>
    %83 = arith.subf %66, %82 : vector<16x128xf32>
    %cst_43 = arith.constant 9.99999996E-13 : f32
    %84 = vector.broadcast %cst_43 : f32 to vector<16x1xf32>
    %85 = arith.addf %81, %84 : vector<16x1xf32>
    %86 = math.rsqrt %85 : vector<16x1xf32>
    %87 = vector.broadcast %86 : vector<16x1xf32> to vector<16x128xf32>
    %88 = arith.mulf %83, %87 : vector<16x128xf32>
    %89 = vector.broadcast %68 : vector<1x128xf32> to vector<16x128xf32>
    %90 = arith.mulf %88, %89 : vector<16x128xf32>
    %91 = vector.broadcast %70 : vector<1x128xf32> to vector<16x128xf32>
    %92 = arith.addf %90, %91 : vector<16x128xf32>
    %93 = arith.truncf %92 : vector<16x128xf32> to vector<16x128xbf16>
    %c0_44 = arith.constant 0 : index
    %c0_45 = arith.constant 0 : index
    %c0_46 = arith.constant 0 : index
    %94 = vector.load %arg13[%c0_44, %c0_45, %c0_46] : memref<4x128x256xbf16, #tpu.memory_space<vmem>>, vector<1x128x256xbf16>
    %95 = vector.shape_cast %94 : vector<1x128x256xbf16> to vector<128x256xbf16>
    %cst_47 = arith.constant dense<0.000000e+00> : vector<16x256xf32>
    %96 = tpu.matmul %93, %95, %cst_47 {dimension_numbers = #tpu.dot_dimension_numbers<[1], [0], [0], [1], [0, 0, 1, 1], [], []>} : vector<16x128xbf16>, vector<128x256xbf16>, vector<16x256xf32> -> vector<16x256xf32>
    %c0_48 = arith.constant 0 : index
    %c0_49 = arith.constant 0 : index
    %c0_50 = arith.constant 0 : index
    %97 = vector.load %arg14[%c0_48, %c0_49, %c0_50] : memref<4x1x256xf32, #tpu.memory_space<vmem>>, vector<1x1x256xf32>
    %98 = vector.shape_cast %97 : vector<1x1x256xf32> to vector<1x256xf32>
    %99 = vector.broadcast %98 : vector<1x256xf32> to vector<16x256xf32>
    %100 = arith.addf %96, %99 : vector<16x256xf32>
    %cst_51 = arith.constant 5.000000e-01 : f32
    %101 = vector.broadcast %cst_51 : f32 to vector<16x256xf32>
    %102 = arith.mulf %101, %100 : vector<16x256xf32>
    %cst_52 = arith.constant 0.707106769 : f32
    %103 = vector.broadcast %cst_52 : f32 to vector<16x256xf32>
    %104 = arith.mulf %100, %103 : vector<16x256xf32>
    %cst_53 = arith.constant 0.000000e+00 : f32
    %105 = vector.broadcast %cst_53 : f32 to vector<16x256xf32>
    %106 = arith.cmpf oge, %104, %105 : vector<16x256xf32>
    %cst_54 = arith.constant 1.000000e+00 : f32
    %cst_55 = arith.constant -1.000000e+00 : f32
    %107 = vector.broadcast %cst_54 : f32 to vector<16x256xf32>
    %108 = vector.broadcast %cst_55 : f32 to vector<16x256xf32>
    %109 = arith.select %106, %107, %108 : vector<16x256xi1>, vector<16x256xf32>
    %110 = math.absf %104 : vector<16x256xf32>
    %cst_56 = arith.constant 0.327591091 : f32
    %111 = vector.broadcast %cst_56 : f32 to vector<16x256xf32>
    %112 = arith.mulf %111, %110 : vector<16x256xf32>
    %cst_57 = arith.constant 1.000000e+00 : f32
    %113 = vector.broadcast %cst_57 : f32 to vector<16x256xf32>
    %114 = arith.addf %113, %112 : vector<16x256xf32>
    %cst_58 = arith.constant 1.000000e+00 : f32
    %115 = vector.broadcast %cst_58 : f32 to vector<16x256xf32>
    %116 = arith.divf %115, %114 : vector<16x256xf32>
    %cst_59 = arith.constant 1.06140542 : f32
    %117 = vector.broadcast %cst_59 : f32 to vector<16x256xf32>
    %118 = arith.mulf %117, %116 : vector<16x256xf32>
    %cst_60 = arith.constant -1.45315206 : f32
    %119 = vector.broadcast %cst_60 : f32 to vector<16x256xf32>
    %120 = arith.addf %118, %119 : vector<16x256xf32>
    %121 = arith.mulf %120, %116 : vector<16x256xf32>
    %cst_61 = arith.constant 1.42141378 : f32
    %122 = vector.broadcast %cst_61 : f32 to vector<16x256xf32>
    %123 = arith.addf %121, %122 : vector<16x256xf32>
    %124 = arith.mulf %123, %116 : vector<16x256xf32>
    %cst_62 = arith.constant -0.284496725 : f32
    %125 = vector.broadcast %cst_62 : f32 to vector<16x256xf32>
    %126 = arith.addf %124, %125 : vector<16x256xf32>
    %127 = arith.mulf %126, %116 : vector<16x256xf32>
    %cst_63 = arith.constant 0.254829586 : f32
    %128 = vector.broadcast %cst_63 : f32 to vector<16x256xf32>
    %129 = arith.addf %127, %128 : vector<16x256xf32>
    %130 = arith.mulf %129, %116 : vector<16x256xf32>
    %cst_64 = arith.constant 0.000000e+00 : f32
    %131 = vector.broadcast %cst_64 : f32 to vector<16x256xf32>
    %132 = arith.subf %131, %110 : vector<16x256xf32>
    %133 = arith.mulf %132, %110 : vector<16x256xf32>
    %134 = math.exp %133 : vector<16x256xf32>
    %135 = arith.mulf %130, %134 : vector<16x256xf32>
    %cst_65 = arith.constant 1.000000e+00 : f32
    %136 = vector.broadcast %cst_65 : f32 to vector<16x256xf32>
    %137 = arith.subf %136, %135 : vector<16x256xf32>
    %138 = arith.mulf %109, %137 : vector<16x256xf32>
    %cst_66 = arith.constant 1.000000e+00 : f32
    %139 = vector.broadcast %cst_66 : f32 to vector<16x256xf32>
    %140 = arith.addf %139, %138 : vector<16x256xf32>
    %141 = arith.mulf %102, %140 : vector<16x256xf32>
    %142 = arith.truncf %141 : vector<16x256xf32> to vector<16x256xbf16>
    %c0_67 = arith.constant 0 : index
    %c0_68 = arith.constant 0 : index
    %c0_69 = arith.constant 0 : index
    %143 = vector.load %arg15[%c0_67, %c0_68, %c0_69] : memref<4x256x128xbf16, #tpu.memory_space<vmem>>, vector<1x256x128xbf16>
    %144 = vector.shape_cast %143 : vector<1x256x128xbf16> to vector<256x128xbf16>
    %cst_70 = arith.constant dense<0.000000e+00> : vector<16x128xf32>
    %145 = tpu.matmul %142, %144, %cst_70 {dimension_numbers = #tpu.dot_dimension_numbers<[1], [0], [0], [1], [0, 0, 1, 1], [], []>} : vector<16x256xbf16>, vector<256x128xbf16>, vector<16x128xf32> -> vector<16x128xf32>
    %c0_71 = arith.constant 0 : index
    %c0_72 = arith.constant 0 : index
    %c0_73 = arith.constant 0 : index
    %146 = vector.load %arg16[%c0_71, %c0_72, %c0_73] : memref<4x1x128xf32, #tpu.memory_space<vmem>>, vector<1x1x128xf32>
    %147 = vector.shape_cast %146 : vector<1x1x128xf32> to vector<1x128xf32>
    %148 = vector.broadcast %147 : vector<1x128xf32> to vector<16x128xf32>
    %149 = arith.addf %145, %148 : vector<16x128xf32>
    %150 = arith.addf %92, %149 : vector<16x128xf32>
    %c0_74 = arith.constant 0 : index
    %c0_75 = arith.constant 0 : index
    %c0_76 = arith.constant 0 : index
    %151 = vector.load %arg17[%c0_74, %c0_75, %c0_76] : memref<4x1x128xf32, #tpu.memory_space<vmem>>, vector<1x1x128xf32>
    %152 = vector.shape_cast %151 : vector<1x1x128xf32> to vector<1x128xf32>
    %c0_77 = arith.constant 0 : index
    %c0_78 = arith.constant 0 : index
    %c0_79 = arith.constant 0 : index
    %153 = vector.load %arg18[%c0_77, %c0_78, %c0_79] : memref<4x1x128xf32, #tpu.memory_space<vmem>>, vector<1x1x128xf32>
    %154 = vector.shape_cast %153 : vector<1x1x128xf32> to vector<1x128xf32>
    %cst_80 = arith.constant dense<0.000000e+00> : vector<16xf32>
    %155 = vector.multi_reduction <add>, %150, %cst_80 [1] : vector<16x128xf32> to vector<16xf32>
    %156 = vector.shape_cast %155 : vector<16xf32> to vector<16x1xf32>
    %cst_81 = arith.constant 1.280000e+02 : f32
    %157 = vector.broadcast %cst_81 : f32 to vector<16x1xf32>
    %158 = arith.divf %156, %157 : vector<16x1xf32>
    %159 = vector.broadcast %158 : vector<16x1xf32> to vector<16x128xf32>
    %160 = arith.subf %150, %159 : vector<16x128xf32>
    %161 = arith.mulf %160, %160 : vector<16x128xf32>
    %cst_82 = arith.constant dense<0.000000e+00> : vector<16xf32>
    %162 = vector.multi_reduction <add>, %161, %cst_82 [1] : vector<16x128xf32> to vector<16xf32>
    %163 = vector.shape_cast %162 : vector<16xf32> to vector<16x1xf32>
    %cst_83 = arith.constant 1.280000e+02 : f32
    %164 = vector.broadcast %cst_83 : f32 to vector<16x1xf32>
    %165 = arith.divf %163, %164 : vector<16x1xf32>
    %166 = vector.broadcast %158 : vector<16x1xf32> to vector<16x128xf32>
    %167 = arith.subf %150, %166 : vector<16x128xf32>
    %cst_84 = arith.constant 9.99999996E-13 : f32
    %168 = vector.broadcast %cst_84 : f32 to vector<16x1xf32>
    %169 = arith.addf %165, %168 : vector<16x1xf32>
    %170 = math.rsqrt %169 : vector<16x1xf32>
    %171 = vector.broadcast %170 : vector<16x1xf32> to vector<16x128xf32>
    %172 = arith.mulf %167, %171 : vector<16x128xf32>
    %173 = vector.broadcast %152 : vector<1x128xf32> to vector<16x128xf32>
    %174 = arith.mulf %172, %173 : vector<16x128xf32>
    %175 = vector.broadcast %154 : vector<1x128xf32> to vector<16x128xf32>
    %176 = arith.addf %174, %175 : vector<16x128xf32>
    %177 = arith.truncf %176 : vector<16x128xf32> to vector<16x128xbf16>
    %c1 = arith.constant 1 : index
    %c0_85 = arith.constant 0 : index
    %c0_86 = arith.constant 0 : index
    %178 = vector.load %arg7[%c1, %c0_85, %c0_86] : memref<4x128x384xbf16, #tpu.memory_space<vmem>>, vector<1x128x384xbf16>
    %179 = vector.shape_cast %178 : vector<1x128x384xbf16> to vector<128x384xbf16>
    %cst_87 = arith.constant dense<0.000000e+00> : vector<16x384xf32>
    %180 = tpu.matmul %177, %179, %cst_87 {dimension_numbers = #tpu.dot_dimension_numbers<[1], [0], [0], [1], [0, 0, 1, 1], [], []>} : vector<16x128xbf16>, vector<128x384xbf16>, vector<16x384xf32> -> vector<16x384xf32>
    %c1_88 = arith.constant 1 : index
    %c0_89 = arith.constant 0 : index
    %c0_90 = arith.constant 0 : index
    %181 = vector.load %arg8[%c1_88, %c0_89, %c0_90] : memref<4x1x384xf32, #tpu.memory_space<vmem>>, vector<1x1x384xf32>
    %182 = vector.shape_cast %181 : vector<1x1x384xf32> to vector<1x384xf32>
    %183 = vector.broadcast %182 : vector<1x384xf32> to vector<16x384xf32>
    %184 = arith.addf %180, %183 : vector<16x384xf32>
    %185 = vector.extract_strided_slice %184 {offsets = [0, 0], sizes = [16, 128], strides = [1, 1]} : vector<16x384xf32> to vector<16x128xf32>
    %186 = vector.extract_strided_slice %184 {offsets = [0, 128], sizes = [16, 128], strides = [1, 1]} : vector<16x384xf32> to vector<16x128xf32>
    %187 = vector.extract_strided_slice %184 {offsets = [0, 256], sizes = [16, 128], strides = [1, 1]} : vector<16x384xf32> to vector<16x128xf32>
    %188 = tpu.concatenate %186, %186, %186, %186 in 0 : vector<16x128xf32>, vector<16x128xf32>, vector<16x128xf32>, vector<16x128xf32> -> vector<64x128xf32>
    %189 = arith.mulf %188, %26 : vector<64x128xf32>
    %190 = arith.truncf %189 : vector<64x128xf32> to vector<64x128xbf16>
    %191 = tpu.concatenate %187, %187, %187, %187 in 0 : vector<16x128xf32>, vector<16x128xf32>, vector<16x128xf32>, vector<16x128xf32> -> vector<64x128xf32>
    %192 = arith.mulf %191, %26 : vector<64x128xf32>
    %193 = arith.truncf %192 : vector<64x128xf32> to vector<64x128xbf16>
    %194 = arith.truncf %185 : vector<16x128xf32> to vector<16x128xbf16>
    %cst_91 = arith.constant dense<0.000000e+00> : vector<16x64xf32>
    %195 = tpu.matmul %194, %190, %cst_91 {dimension_numbers = #tpu.dot_dimension_numbers<[1], [1], [0], [0], [0, 0, 1, 0], [], []>} : vector<16x128xbf16>, vector<64x128xbf16>, vector<16x64xf32> -> vector<16x64xf32>
    %196 = arith.addf %195, %25 : vector<16x64xf32>
    %cst_92 = arith.constant dense<0xFF800000> : vector<16xf32>
    %197 = vector.multi_reduction <maximumf>, %196, %cst_92 [1] : vector<16x64xf32> to vector<16xf32>
    %198 = vector.shape_cast %197 : vector<16xf32> to vector<16x1xf32>
    %199 = vector.broadcast %198 : vector<16x1xf32> to vector<16x64xf32>
    %200 = arith.subf %196, %199 : vector<16x64xf32>
    %201 = math.exp %200 : vector<16x64xf32>
    %cst_93 = arith.constant dense<0.000000e+00> : vector<16x64xf32>
    %202 = tpu.matmul %201, %27, %cst_93 {dimension_numbers = #tpu.dot_dimension_numbers<[1], [0], [0], [1], [0, 0, 1, 1], [], []>} : vector<16x64xf32>, vector<64x64xf32>, vector<16x64xf32> -> vector<16x64xf32>
    %203 = tpu.reciprocal %202 {approx = true} : vector<16x64xf32> -> vector<16x64xf32>
    %204 = arith.mulf %201, %203 : vector<16x64xf32>
    %205 = arith.truncf %204 : vector<16x64xf32> to vector<16x64xbf16>
    %cst_94 = arith.constant dense<0.000000e+00> : vector<16x128xf32>
    %206 = tpu.matmul %205, %193, %cst_94 {dimension_numbers = #tpu.dot_dimension_numbers<[1], [0], [0], [1], [0, 0, 1, 1], [], []>} : vector<16x64xbf16>, vector<64x128xbf16>, vector<16x128xf32> -> vector<16x128xf32>
    %207 = arith.truncf %206 : vector<16x128xf32> to vector<16x128xbf16>
    %c1_95 = arith.constant 1 : index
    %c0_96 = arith.constant 0 : index
    %c0_97 = arith.constant 0 : index
    %208 = vector.load %arg9[%c1_95, %c0_96, %c0_97] : memref<4x128x128xbf16, #tpu.memory_space<vmem>>, vector<1x128x128xbf16>
    %209 = vector.shape_cast %208 : vector<1x128x128xbf16> to vector<128x128xbf16>
    %cst_98 = arith.constant dense<0.000000e+00> : vector<16x128xf32>
    %210 = tpu.matmul %207, %209, %cst_98 {dimension_numbers = #tpu.dot_dimension_numbers<[1], [0], [0], [1], [0, 0, 1, 1], [], []>} : vector<16x128xbf16>, vector<128x128xbf16>, vector<16x128xf32> -> vector<16x128xf32>
    %c1_99 = arith.constant 1 : index
    %c0_100 = arith.constant 0 : index
    %c0_101 = arith.constant 0 : index
    %211 = vector.load %arg10[%c1_99, %c0_100, %c0_101] : memref<4x1x128xf32, #tpu.memory_space<vmem>>, vector<1x1x128xf32>
    %212 = vector.shape_cast %211 : vector<1x1x128xf32> to vector<1x128xf32>
    %213 = vector.broadcast %212 : vector<1x128xf32> to vector<16x128xf32>
    %214 = arith.addf %210, %213 : vector<16x128xf32>
    %215 = arith.addf %176, %214 : vector<16x128xf32>
    %c1_102 = arith.constant 1 : index
    %c0_103 = arith.constant 0 : index
    %c0_104 = arith.constant 0 : index
    %216 = vector.load %arg11[%c1_102, %c0_103, %c0_104] : memref<4x1x128xf32, #tpu.memory_space<vmem>>, vector<1x1x128xf32>
    %217 = vector.shape_cast %216 : vector<1x1x128xf32> to vector<1x128xf32>
    %c1_105 = arith.constant 1 : index
    %c0_106 = arith.constant 0 : index
    %c0_107 = arith.constant 0 : index
    %218 = vector.load %arg12[%c1_105, %c0_106, %c0_107] : memref<4x1x128xf32, #tpu.memory_space<vmem>>, vector<1x1x128xf32>
    %219 = vector.shape_cast %218 : vector<1x1x128xf32> to vector<1x128xf32>
    %cst_108 = arith.constant dense<0.000000e+00> : vector<16xf32>
    %220 = vector.multi_reduction <add>, %215, %cst_108 [1] : vector<16x128xf32> to vector<16xf32>
    %221 = vector.shape_cast %220 : vector<16xf32> to vector<16x1xf32>
    %cst_109 = arith.constant 1.280000e+02 : f32
    %222 = vector.broadcast %cst_109 : f32 to vector<16x1xf32>
    %223 = arith.divf %221, %222 : vector<16x1xf32>
    %224 = vector.broadcast %223 : vector<16x1xf32> to vector<16x128xf32>
    %225 = arith.subf %215, %224 : vector<16x128xf32>
    %226 = arith.mulf %225, %225 : vector<16x128xf32>
    %cst_110 = arith.constant dense<0.000000e+00> : vector<16xf32>
    %227 = vector.multi_reduction <add>, %226, %cst_110 [1] : vector<16x128xf32> to vector<16xf32>
    %228 = vector.shape_cast %227 : vector<16xf32> to vector<16x1xf32>
    %cst_111 = arith.constant 1.280000e+02 : f32
    %229 = vector.broadcast %cst_111 : f32 to vector<16x1xf32>
    %230 = arith.divf %228, %229 : vector<16x1xf32>
    %231 = vector.broadcast %223 : vector<16x1xf32> to vector<16x128xf32>
    %232 = arith.subf %215, %231 : vector<16x128xf32>
    %cst_112 = arith.constant 9.99999996E-13 : f32
    %233 = vector.broadcast %cst_112 : f32 to vector<16x1xf32>
    %234 = arith.addf %230, %233 : vector<16x1xf32>
    %235 = math.rsqrt %234 : vector<16x1xf32>
    %236 = vector.broadcast %235 : vector<16x1xf32> to vector<16x128xf32>
    %237 = arith.mulf %232, %236 : vector<16x128xf32>
    %238 = vector.broadcast %217 : vector<1x128xf32> to vector<16x128xf32>
    %239 = arith.mulf %237, %238 : vector<16x128xf32>
    %240 = vector.broadcast %219 : vector<1x128xf32> to vector<16x128xf32>
    %241 = arith.addf %239, %240 : vector<16x128xf32>
    %242 = arith.truncf %241 : vector<16x128xf32> to vector<16x128xbf16>
    %c1_113 = arith.constant 1 : index
    %c0_114 = arith.constant 0 : index
    %c0_115 = arith.constant 0 : index
    %243 = vector.load %arg13[%c1_113, %c0_114, %c0_115] : memref<4x128x256xbf16, #tpu.memory_space<vmem>>, vector<1x128x256xbf16>
    %244 = vector.shape_cast %243 : vector<1x128x256xbf16> to vector<128x256xbf16>
    %cst_116 = arith.constant dense<0.000000e+00> : vector<16x256xf32>
    %245 = tpu.matmul %242, %244, %cst_116 {dimension_numbers = #tpu.dot_dimension_numbers<[1], [0], [0], [1], [0, 0, 1, 1], [], []>} : vector<16x128xbf16>, vector<128x256xbf16>, vector<16x256xf32> -> vector<16x256xf32>
    %c1_117 = arith.constant 1 : index
    %c0_118 = arith.constant 0 : index
    %c0_119 = arith.constant 0 : index
    %246 = vector.load %arg14[%c1_117, %c0_118, %c0_119] : memref<4x1x256xf32, #tpu.memory_space<vmem>>, vector<1x1x256xf32>
    %247 = vector.shape_cast %246 : vector<1x1x256xf32> to vector<1x256xf32>
    %248 = vector.broadcast %247 : vector<1x256xf32> to vector<16x256xf32>
    %249 = arith.addf %245, %248 : vector<16x256xf32>
    %cst_120 = arith.constant 5.000000e-01 : f32
    %250 = vector.broadcast %cst_120 : f32 to vector<16x256xf32>
    %251 = arith.mulf %250, %249 : vector<16x256xf32>
    %cst_121 = arith.constant 0.707106769 : f32
    %252 = vector.broadcast %cst_121 : f32 to vector<16x256xf32>
    %253 = arith.mulf %249, %252 : vector<16x256xf32>
    %cst_122 = arith.constant 0.000000e+00 : f32
    %254 = vector.broadcast %cst_122 : f32 to vector<16x256xf32>
    %255 = arith.cmpf oge, %253, %254 : vector<16x256xf32>
    %cst_123 = arith.constant 1.000000e+00 : f32
    %cst_124 = arith.constant -1.000000e+00 : f32
    %256 = vector.broadcast %cst_123 : f32 to vector<16x256xf32>
    %257 = vector.broadcast %cst_124 : f32 to vector<16x256xf32>
    %258 = arith.select %255, %256, %257 : vector<16x256xi1>, vector<16x256xf32>
    %259 = math.absf %253 : vector<16x256xf32>
    %cst_125 = arith.constant 0.327591091 : f32
    %260 = vector.broadcast %cst_125 : f32 to vector<16x256xf32>
    %261 = arith.mulf %260, %259 : vector<16x256xf32>
    %cst_126 = arith.constant 1.000000e+00 : f32
    %262 = vector.broadcast %cst_126 : f32 to vector<16x256xf32>
    %263 = arith.addf %262, %261 : vector<16x256xf32>
    %cst_127 = arith.constant 1.000000e+00 : f32
    %264 = vector.broadcast %cst_127 : f32 to vector<16x256xf32>
    %265 = arith.divf %264, %263 : vector<16x256xf32>
    %cst_128 = arith.constant 1.06140542 : f32
    %266 = vector.broadcast %cst_128 : f32 to vector<16x256xf32>
    %267 = arith.mulf %266, %265 : vector<16x256xf32>
    %cst_129 = arith.constant -1.45315206 : f32
    %268 = vector.broadcast %cst_129 : f32 to vector<16x256xf32>
    %269 = arith.addf %267, %268 : vector<16x256xf32>
    %270 = arith.mulf %269, %265 : vector<16x256xf32>
    %cst_130 = arith.constant 1.42141378 : f32
    %271 = vector.broadcast %cst_130 : f32 to vector<16x256xf32>
    %272 = arith.addf %270, %271 : vector<16x256xf32>
    %273 = arith.mulf %272, %265 : vector<16x256xf32>
    %cst_131 = arith.constant -0.284496725 : f32
    %274 = vector.broadcast %cst_131 : f32 to vector<16x256xf32>
    %275 = arith.addf %273, %274 : vector<16x256xf32>
    %276 = arith.mulf %275, %265 : vector<16x256xf32>
    %cst_132 = arith.constant 0.254829586 : f32
    %277 = vector.broadcast %cst_132 : f32 to vector<16x256xf32>
    %278 = arith.addf %276, %277 : vector<16x256xf32>
    %279 = arith.mulf %278, %265 : vector<16x256xf32>
    %cst_133 = arith.constant 0.000000e+00 : f32
    %280 = vector.broadcast %cst_133 : f32 to vector<16x256xf32>
    %281 = arith.subf %280, %259 : vector<16x256xf32>
    %282 = arith.mulf %281, %259 : vector<16x256xf32>
    %283 = math.exp %282 : vector<16x256xf32>
    %284 = arith.mulf %279, %283 : vector<16x256xf32>
    %cst_134 = arith.constant 1.000000e+00 : f32
    %285 = vector.broadcast %cst_134 : f32 to vector<16x256xf32>
    %286 = arith.subf %285, %284 : vector<16x256xf32>
    %287 = arith.mulf %258, %286 : vector<16x256xf32>
    %cst_135 = arith.constant 1.000000e+00 : f32
    %288 = vector.broadcast %cst_135 : f32 to vector<16x256xf32>
    %289 = arith.addf %288, %287 : vector<16x256xf32>
    %290 = arith.mulf %251, %289 : vector<16x256xf32>
    %291 = arith.truncf %290 : vector<16x256xf32> to vector<16x256xbf16>
    %c1_136 = arith.constant 1 : index
    %c0_137 = arith.constant 0 : index
    %c0_138 = arith.constant 0 : index
    %292 = vector.load %arg15[%c1_136, %c0_137, %c0_138] : memref<4x256x128xbf16, #tpu.memory_space<vmem>>, vector<1x256x128xbf16>
    %293 = vector.shape_cast %292 : vector<1x256x128xbf16> to vector<256x128xbf16>
    %cst_139 = arith.constant dense<0.000000e+00> : vector<16x128xf32>
    %294 = tpu.matmul %291, %293, %cst_139 {dimension_numbers = #tpu.dot_dimension_numbers<[1], [0], [0], [1], [0, 0, 1, 1], [], []>} : vector<16x256xbf16>, vector<256x128xbf16>, vector<16x128xf32> -> vector<16x128xf32>
    %c1_140 = arith.constant 1 : index
    %c0_141 = arith.constant 0 : index
    %c0_142 = arith.constant 0 : index
    %295 = vector.load %arg16[%c1_140, %c0_141, %c0_142] : memref<4x1x128xf32, #tpu.memory_space<vmem>>, vector<1x1x128xf32>
    %296 = vector.shape_cast %295 : vector<1x1x128xf32> to vector<1x128xf32>
    %297 = vector.broadcast %296 : vector<1x128xf32> to vector<16x128xf32>
    %298 = arith.addf %294, %297 : vector<16x128xf32>
    %299 = arith.addf %241, %298 : vector<16x128xf32>
    %c1_143 = arith.constant 1 : index
    %c0_144 = arith.constant 0 : index
    %c0_145 = arith.constant 0 : index
    %300 = vector.load %arg17[%c1_143, %c0_144, %c0_145] : memref<4x1x128xf32, #tpu.memory_space<vmem>>, vector<1x1x128xf32>
    %301 = vector.shape_cast %300 : vector<1x1x128xf32> to vector<1x128xf32>
    %c1_146 = arith.constant 1 : index
    %c0_147 = arith.constant 0 : index
    %c0_148 = arith.constant 0 : index
    %302 = vector.load %arg18[%c1_146, %c0_147, %c0_148] : memref<4x1x128xf32, #tpu.memory_space<vmem>>, vector<1x1x128xf32>
    %303 = vector.shape_cast %302 : vector<1x1x128xf32> to vector<1x128xf32>
    %cst_149 = arith.constant dense<0.000000e+00> : vector<16xf32>
    %304 = vector.multi_reduction <add>, %299, %cst_149 [1] : vector<16x128xf32> to vector<16xf32>
    %305 = vector.shape_cast %304 : vector<16xf32> to vector<16x1xf32>
    %cst_150 = arith.constant 1.280000e+02 : f32
    %306 = vector.broadcast %cst_150 : f32 to vector<16x1xf32>
    %307 = arith.divf %305, %306 : vector<16x1xf32>
    %308 = vector.broadcast %307 : vector<16x1xf32> to vector<16x128xf32>
    %309 = arith.subf %299, %308 : vector<16x128xf32>
    %310 = arith.mulf %309, %309 : vector<16x128xf32>
    %cst_151 = arith.constant dense<0.000000e+00> : vector<16xf32>
    %311 = vector.multi_reduction <add>, %310, %cst_151 [1] : vector<16x128xf32> to vector<16xf32>
    %312 = vector.shape_cast %311 : vector<16xf32> to vector<16x1xf32>
    %cst_152 = arith.constant 1.280000e+02 : f32
    %313 = vector.broadcast %cst_152 : f32 to vector<16x1xf32>
    %314 = arith.divf %312, %313 : vector<16x1xf32>
    %315 = vector.broadcast %307 : vector<16x1xf32> to vector<16x128xf32>
    %316 = arith.subf %299, %315 : vector<16x128xf32>
    %cst_153 = arith.constant 9.99999996E-13 : f32
    %317 = vector.broadcast %cst_153 : f32 to vector<16x1xf32>
    %318 = arith.addf %314, %317 : vector<16x1xf32>
    %319 = math.rsqrt %318 : vector<16x1xf32>
    %320 = vector.broadcast %319 : vector<16x1xf32> to vector<16x128xf32>
    %321 = arith.mulf %316, %320 : vector<16x128xf32>
    %322 = vector.broadcast %301 : vector<1x128xf32> to vector<16x128xf32>
    %323 = arith.mulf %321, %322 : vector<16x128xf32>
    %324 = vector.broadcast %303 : vector<1x128xf32> to vector<16x128xf32>
    %325 = arith.addf %323, %324 : vector<16x128xf32>
    %326 = arith.truncf %325 : vector<16x128xf32> to vector<16x128xbf16>
    %c2 = arith.constant 2 : index
    %c0_154 = arith.constant 0 : index
    %c0_155 = arith.constant 0 : index
    %327 = vector.load %arg7[%c2, %c0_154, %c0_155] : memref<4x128x384xbf16, #tpu.memory_space<vmem>>, vector<1x128x384xbf16>
    %328 = vector.shape_cast %327 : vector<1x128x384xbf16> to vector<128x384xbf16>
    %cst_156 = arith.constant dense<0.000000e+00> : vector<16x384xf32>
    %329 = tpu.matmul %326, %328, %cst_156 {dimension_numbers = #tpu.dot_dimension_numbers<[1], [0], [0], [1], [0, 0, 1, 1], [], []>} : vector<16x128xbf16>, vector<128x384xbf16>, vector<16x384xf32> -> vector<16x384xf32>
    %c2_157 = arith.constant 2 : index
    %c0_158 = arith.constant 0 : index
    %c0_159 = arith.constant 0 : index
    %330 = vector.load %arg8[%c2_157, %c0_158, %c0_159] : memref<4x1x384xf32, #tpu.memory_space<vmem>>, vector<1x1x384xf32>
    %331 = vector.shape_cast %330 : vector<1x1x384xf32> to vector<1x384xf32>
    %332 = vector.broadcast %331 : vector<1x384xf32> to vector<16x384xf32>
    %333 = arith.addf %329, %332 : vector<16x384xf32>
    %334 = vector.extract_strided_slice %333 {offsets = [0, 0], sizes = [16, 128], strides = [1, 1]} : vector<16x384xf32> to vector<16x128xf32>
    %335 = vector.extract_strided_slice %333 {offsets = [0, 128], sizes = [16, 128], strides = [1, 1]} : vector<16x384xf32> to vector<16x128xf32>
    %336 = vector.extract_strided_slice %333 {offsets = [0, 256], sizes = [16, 128], strides = [1, 1]} : vector<16x384xf32> to vector<16x128xf32>
    %337 = tpu.concatenate %335, %335, %335, %335 in 0 : vector<16x128xf32>, vector<16x128xf32>, vector<16x128xf32>, vector<16x128xf32> -> vector<64x128xf32>
    %338 = arith.mulf %337, %26 : vector<64x128xf32>
    %339 = arith.truncf %338 : vector<64x128xf32> to vector<64x128xbf16>
    %340 = tpu.concatenate %336, %336, %336, %336 in 0 : vector<16x128xf32>, vector<16x128xf32>, vector<16x128xf32>, vector<16x128xf32> -> vector<64x128xf32>
    %341 = arith.mulf %340, %26 : vector<64x128xf32>
    %342 = arith.truncf %341 : vector<64x128xf32> to vector<64x128xbf16>
    %343 = arith.truncf %334 : vector<16x128xf32> to vector<16x128xbf16>
    %cst_160 = arith.constant dense<0.000000e+00> : vector<16x64xf32>
    %344 = tpu.matmul %343, %339, %cst_160 {dimension_numbers = #tpu.dot_dimension_numbers<[1], [1], [0], [0], [0, 0, 1, 0], [], []>} : vector<16x128xbf16>, vector<64x128xbf16>, vector<16x64xf32> -> vector<16x64xf32>
    %345 = arith.addf %344, %25 : vector<16x64xf32>
    %cst_161 = arith.constant dense<0xFF800000> : vector<16xf32>
    %346 = vector.multi_reduction <maximumf>, %345, %cst_161 [1] : vector<16x64xf32> to vector<16xf32>
    %347 = vector.shape_cast %346 : vector<16xf32> to vector<16x1xf32>
    %348 = vector.broadcast %347 : vector<16x1xf32> to vector<16x64xf32>
    %349 = arith.subf %345, %348 : vector<16x64xf32>
    %350 = math.exp %349 : vector<16x64xf32>
    %cst_162 = arith.constant dense<0.000000e+00> : vector<16x64xf32>
    %351 = tpu.matmul %350, %27, %cst_162 {dimension_numbers = #tpu.dot_dimension_numbers<[1], [0], [0], [1], [0, 0, 1, 1], [], []>} : vector<16x64xf32>, vector<64x64xf32>, vector<16x64xf32> -> vector<16x64xf32>
    %352 = tpu.reciprocal %351 {approx = true} : vector<16x64xf32> -> vector<16x64xf32>
    %353 = arith.mulf %350, %352 : vector<16x64xf32>
    %354 = arith.truncf %353 : vector<16x64xf32> to vector<16x64xbf16>
    %cst_163 = arith.constant dense<0.000000e+00> : vector<16x128xf32>
    %355 = tpu.matmul %354, %342, %cst_163 {dimension_numbers = #tpu.dot_dimension_numbers<[1], [0], [0], [1], [0, 0, 1, 1], [], []>} : vector<16x64xbf16>, vector<64x128xbf16>, vector<16x128xf32> -> vector<16x128xf32>
    %356 = arith.truncf %355 : vector<16x128xf32> to vector<16x128xbf16>
    %c2_164 = arith.constant 2 : index
    %c0_165 = arith.constant 0 : index
    %c0_166 = arith.constant 0 : index
    %357 = vector.load %arg9[%c2_164, %c0_165, %c0_166] : memref<4x128x128xbf16, #tpu.memory_space<vmem>>, vector<1x128x128xbf16>
    %358 = vector.shape_cast %357 : vector<1x128x128xbf16> to vector<128x128xbf16>
    %cst_167 = arith.constant dense<0.000000e+00> : vector<16x128xf32>
    %359 = tpu.matmul %356, %358, %cst_167 {dimension_numbers = #tpu.dot_dimension_numbers<[1], [0], [0], [1], [0, 0, 1, 1], [], []>} : vector<16x128xbf16>, vector<128x128xbf16>, vector<16x128xf32> -> vector<16x128xf32>
    %c2_168 = arith.constant 2 : index
    %c0_169 = arith.constant 0 : index
    %c0_170 = arith.constant 0 : index
    %360 = vector.load %arg10[%c2_168, %c0_169, %c0_170] : memref<4x1x128xf32, #tpu.memory_space<vmem>>, vector<1x1x128xf32>
    %361 = vector.shape_cast %360 : vector<1x1x128xf32> to vector<1x128xf32>
    %362 = vector.broadcast %361 : vector<1x128xf32> to vector<16x128xf32>
    %363 = arith.addf %359, %362 : vector<16x128xf32>
    %364 = arith.addf %325, %363 : vector<16x128xf32>
    %c2_171 = arith.constant 2 : index
    %c0_172 = arith.constant 0 : index
    %c0_173 = arith.constant 0 : index
    %365 = vector.load %arg11[%c2_171, %c0_172, %c0_173] : memref<4x1x128xf32, #tpu.memory_space<vmem>>, vector<1x1x128xf32>
    %366 = vector.shape_cast %365 : vector<1x1x128xf32> to vector<1x128xf32>
    %c2_174 = arith.constant 2 : index
    %c0_175 = arith.constant 0 : index
    %c0_176 = arith.constant 0 : index
    %367 = vector.load %arg12[%c2_174, %c0_175, %c0_176] : memref<4x1x128xf32, #tpu.memory_space<vmem>>, vector<1x1x128xf32>
    %368 = vector.shape_cast %367 : vector<1x1x128xf32> to vector<1x128xf32>
    %cst_177 = arith.constant dense<0.000000e+00> : vector<16xf32>
    %369 = vector.multi_reduction <add>, %364, %cst_177 [1] : vector<16x128xf32> to vector<16xf32>
    %370 = vector.shape_cast %369 : vector<16xf32> to vector<16x1xf32>
    %cst_178 = arith.constant 1.280000e+02 : f32
    %371 = vector.broadcast %cst_178 : f32 to vector<16x1xf32>
    %372 = arith.divf %370, %371 : vector<16x1xf32>
    %373 = vector.broadcast %372 : vector<16x1xf32> to vector<16x128xf32>
    %374 = arith.subf %364, %373 : vector<16x128xf32>
    %375 = arith.mulf %374, %374 : vector<16x128xf32>
    %cst_179 = arith.constant dense<0.000000e+00> : vector<16xf32>
    %376 = vector.multi_reduction <add>, %375, %cst_179 [1] : vector<16x128xf32> to vector<16xf32>
    %377 = vector.shape_cast %376 : vector<16xf32> to vector<16x1xf32>
    %cst_180 = arith.constant 1.280000e+02 : f32
    %378 = vector.broadcast %cst_180 : f32 to vector<16x1xf32>
    %379 = arith.divf %377, %378 : vector<16x1xf32>
    %380 = vector.broadcast %372 : vector<16x1xf32> to vector<16x128xf32>
    %381 = arith.subf %364, %380 : vector<16x128xf32>
    %cst_181 = arith.constant 9.99999996E-13 : f32
    %382 = vector.broadcast %cst_181 : f32 to vector<16x1xf32>
    %383 = arith.addf %379, %382 : vector<16x1xf32>
    %384 = math.rsqrt %383 : vector<16x1xf32>
    %385 = vector.broadcast %384 : vector<16x1xf32> to vector<16x128xf32>
    %386 = arith.mulf %381, %385 : vector<16x128xf32>
    %387 = vector.broadcast %366 : vector<1x128xf32> to vector<16x128xf32>
    %388 = arith.mulf %386, %387 : vector<16x128xf32>
    %389 = vector.broadcast %368 : vector<1x128xf32> to vector<16x128xf32>
    %390 = arith.addf %388, %389 : vector<16x128xf32>
    %391 = arith.truncf %390 : vector<16x128xf32> to vector<16x128xbf16>
    %c2_182 = arith.constant 2 : index
    %c0_183 = arith.constant 0 : index
    %c0_184 = arith.constant 0 : index
    %392 = vector.load %arg13[%c2_182, %c0_183, %c0_184] : memref<4x128x256xbf16, #tpu.memory_space<vmem>>, vector<1x128x256xbf16>
    %393 = vector.shape_cast %392 : vector<1x128x256xbf16> to vector<128x256xbf16>
    %cst_185 = arith.constant dense<0.000000e+00> : vector<16x256xf32>
    %394 = tpu.matmul %391, %393, %cst_185 {dimension_numbers = #tpu.dot_dimension_numbers<[1], [0], [0], [1], [0, 0, 1, 1], [], []>} : vector<16x128xbf16>, vector<128x256xbf16>, vector<16x256xf32> -> vector<16x256xf32>
    %c2_186 = arith.constant 2 : index
    %c0_187 = arith.constant 0 : index
    %c0_188 = arith.constant 0 : index
    %395 = vector.load %arg14[%c2_186, %c0_187, %c0_188] : memref<4x1x256xf32, #tpu.memory_space<vmem>>, vector<1x1x256xf32>
    %396 = vector.shape_cast %395 : vector<1x1x256xf32> to vector<1x256xf32>
    %397 = vector.broadcast %396 : vector<1x256xf32> to vector<16x256xf32>
    %398 = arith.addf %394, %397 : vector<16x256xf32>
    %cst_189 = arith.constant 5.000000e-01 : f32
    %399 = vector.broadcast %cst_189 : f32 to vector<16x256xf32>
    %400 = arith.mulf %399, %398 : vector<16x256xf32>
    %cst_190 = arith.constant 0.707106769 : f32
    %401 = vector.broadcast %cst_190 : f32 to vector<16x256xf32>
    %402 = arith.mulf %398, %401 : vector<16x256xf32>
    %cst_191 = arith.constant 0.000000e+00 : f32
    %403 = vector.broadcast %cst_191 : f32 to vector<16x256xf32>
    %404 = arith.cmpf oge, %402, %403 : vector<16x256xf32>
    %cst_192 = arith.constant 1.000000e+00 : f32
    %cst_193 = arith.constant -1.000000e+00 : f32
    %405 = vector.broadcast %cst_192 : f32 to vector<16x256xf32>
    %406 = vector.broadcast %cst_193 : f32 to vector<16x256xf32>
    %407 = arith.select %404, %405, %406 : vector<16x256xi1>, vector<16x256xf32>
    %408 = math.absf %402 : vector<16x256xf32>
    %cst_194 = arith.constant 0.327591091 : f32
    %409 = vector.broadcast %cst_194 : f32 to vector<16x256xf32>
    %410 = arith.mulf %409, %408 : vector<16x256xf32>
    %cst_195 = arith.constant 1.000000e+00 : f32
    %411 = vector.broadcast %cst_195 : f32 to vector<16x256xf32>
    %412 = arith.addf %411, %410 : vector<16x256xf32>
    %cst_196 = arith.constant 1.000000e+00 : f32
    %413 = vector.broadcast %cst_196 : f32 to vector<16x256xf32>
    %414 = arith.divf %413, %412 : vector<16x256xf32>
    %cst_197 = arith.constant 1.06140542 : f32
    %415 = vector.broadcast %cst_197 : f32 to vector<16x256xf32>
    %416 = arith.mulf %415, %414 : vector<16x256xf32>
    %cst_198 = arith.constant -1.45315206 : f32
    %417 = vector.broadcast %cst_198 : f32 to vector<16x256xf32>
    %418 = arith.addf %416, %417 : vector<16x256xf32>
    %419 = arith.mulf %418, %414 : vector<16x256xf32>
    %cst_199 = arith.constant 1.42141378 : f32
    %420 = vector.broadcast %cst_199 : f32 to vector<16x256xf32>
    %421 = arith.addf %419, %420 : vector<16x256xf32>
    %422 = arith.mulf %421, %414 : vector<16x256xf32>
    %cst_200 = arith.constant -0.284496725 : f32
    %423 = vector.broadcast %cst_200 : f32 to vector<16x256xf32>
    %424 = arith.addf %422, %423 : vector<16x256xf32>
    %425 = arith.mulf %424, %414 : vector<16x256xf32>
    %cst_201 = arith.constant 0.254829586 : f32
    %426 = vector.broadcast %cst_201 : f32 to vector<16x256xf32>
    %427 = arith.addf %425, %426 : vector<16x256xf32>
    %428 = arith.mulf %427, %414 : vector<16x256xf32>
    %cst_202 = arith.constant 0.000000e+00 : f32
    %429 = vector.broadcast %cst_202 : f32 to vector<16x256xf32>
    %430 = arith.subf %429, %408 : vector<16x256xf32>
    %431 = arith.mulf %430, %408 : vector<16x256xf32>
    %432 = math.exp %431 : vector<16x256xf32>
    %433 = arith.mulf %428, %432 : vector<16x256xf32>
    %cst_203 = arith.constant 1.000000e+00 : f32
    %434 = vector.broadcast %cst_203 : f32 to vector<16x256xf32>
    %435 = arith.subf %434, %433 : vector<16x256xf32>
    %436 = arith.mulf %407, %435 : vector<16x256xf32>
    %cst_204 = arith.constant 1.000000e+00 : f32
    %437 = vector.broadcast %cst_204 : f32 to vector<16x256xf32>
    %438 = arith.addf %437, %436 : vector<16x256xf32>
    %439 = arith.mulf %400, %438 : vector<16x256xf32>
    %440 = arith.truncf %439 : vector<16x256xf32> to vector<16x256xbf16>
    %c2_205 = arith.constant 2 : index
    %c0_206 = arith.constant 0 : index
    %c0_207 = arith.constant 0 : index
    %441 = vector.load %arg15[%c2_205, %c0_206, %c0_207] : memref<4x256x128xbf16, #tpu.memory_space<vmem>>, vector<1x256x128xbf16>
    %442 = vector.shape_cast %441 : vector<1x256x128xbf16> to vector<256x128xbf16>
    %cst_208 = arith.constant dense<0.000000e+00> : vector<16x128xf32>
    %443 = tpu.matmul %440, %442, %cst_208 {dimension_numbers = #tpu.dot_dimension_numbers<[1], [0], [0], [1], [0, 0, 1, 1], [], []>} : vector<16x256xbf16>, vector<256x128xbf16>, vector<16x128xf32> -> vector<16x128xf32>
    %c2_209 = arith.constant 2 : index
    %c0_210 = arith.constant 0 : index
    %c0_211 = arith.constant 0 : index
    %444 = vector.load %arg16[%c2_209, %c0_210, %c0_211] : memref<4x1x128xf32, #tpu.memory_space<vmem>>, vector<1x1x128xf32>
    %445 = vector.shape_cast %444 : vector<1x1x128xf32> to vector<1x128xf32>
    %446 = vector.broadcast %445 : vector<1x128xf32> to vector<16x128xf32>
    %447 = arith.addf %443, %446 : vector<16x128xf32>
    %448 = arith.addf %390, %447 : vector<16x128xf32>
    %c2_212 = arith.constant 2 : index
    %c0_213 = arith.constant 0 : index
    %c0_214 = arith.constant 0 : index
    %449 = vector.load %arg17[%c2_212, %c0_213, %c0_214] : memref<4x1x128xf32, #tpu.memory_space<vmem>>, vector<1x1x128xf32>
    %450 = vector.shape_cast %449 : vector<1x1x128xf32> to vector<1x128xf32>
    %c2_215 = arith.constant 2 : index
    %c0_216 = arith.constant 0 : index
    %c0_217 = arith.constant 0 : index
    %451 = vector.load %arg18[%c2_215, %c0_216, %c0_217] : memref<4x1x128xf32, #tpu.memory_space<vmem>>, vector<1x1x128xf32>
    %452 = vector.shape_cast %451 : vector<1x1x128xf32> to vector<1x128xf32>
    %cst_218 = arith.constant dense<0.000000e+00> : vector<16xf32>
    %453 = vector.multi_reduction <add>, %448, %cst_218 [1] : vector<16x128xf32> to vector<16xf32>
    %454 = vector.shape_cast %453 : vector<16xf32> to vector<16x1xf32>
    %cst_219 = arith.constant 1.280000e+02 : f32
    %455 = vector.broadcast %cst_219 : f32 to vector<16x1xf32>
    %456 = arith.divf %454, %455 : vector<16x1xf32>
    %457 = vector.broadcast %456 : vector<16x1xf32> to vector<16x128xf32>
    %458 = arith.subf %448, %457 : vector<16x128xf32>
    %459 = arith.mulf %458, %458 : vector<16x128xf32>
    %cst_220 = arith.constant dense<0.000000e+00> : vector<16xf32>
    %460 = vector.multi_reduction <add>, %459, %cst_220 [1] : vector<16x128xf32> to vector<16xf32>
    %461 = vector.shape_cast %460 : vector<16xf32> to vector<16x1xf32>
    %cst_221 = arith.constant 1.280000e+02 : f32
    %462 = vector.broadcast %cst_221 : f32 to vector<16x1xf32>
    %463 = arith.divf %461, %462 : vector<16x1xf32>
    %464 = vector.broadcast %456 : vector<16x1xf32> to vector<16x128xf32>
    %465 = arith.subf %448, %464 : vector<16x128xf32>
    %cst_222 = arith.constant 9.99999996E-13 : f32
    %466 = vector.broadcast %cst_222 : f32 to vector<16x1xf32>
    %467 = arith.addf %463, %466 : vector<16x1xf32>
    %468 = math.rsqrt %467 : vector<16x1xf32>
    %469 = vector.broadcast %468 : vector<16x1xf32> to vector<16x128xf32>
    %470 = arith.mulf %465, %469 : vector<16x128xf32>
    %471 = vector.broadcast %450 : vector<1x128xf32> to vector<16x128xf32>
    %472 = arith.mulf %470, %471 : vector<16x128xf32>
    %473 = vector.broadcast %452 : vector<1x128xf32> to vector<16x128xf32>
    %474 = arith.addf %472, %473 : vector<16x128xf32>
    %475 = arith.truncf %474 : vector<16x128xf32> to vector<16x128xbf16>
    %c3 = arith.constant 3 : index
    %c0_223 = arith.constant 0 : index
    %c0_224 = arith.constant 0 : index
    %476 = vector.load %arg7[%c3, %c0_223, %c0_224] : memref<4x128x384xbf16, #tpu.memory_space<vmem>>, vector<1x128x384xbf16>
    %477 = vector.shape_cast %476 : vector<1x128x384xbf16> to vector<128x384xbf16>
    %cst_225 = arith.constant dense<0.000000e+00> : vector<16x384xf32>
    %478 = tpu.matmul %475, %477, %cst_225 {dimension_numbers = #tpu.dot_dimension_numbers<[1], [0], [0], [1], [0, 0, 1, 1], [], []>} : vector<16x128xbf16>, vector<128x384xbf16>, vector<16x384xf32> -> vector<16x384xf32>
    %c3_226 = arith.constant 3 : index
    %c0_227 = arith.constant 0 : index
    %c0_228 = arith.constant 0 : index
    %479 = vector.load %arg8[%c3_226, %c0_227, %c0_228] : memref<4x1x384xf32, #tpu.memory_space<vmem>>, vector<1x1x384xf32>
    %480 = vector.shape_cast %479 : vector<1x1x384xf32> to vector<1x384xf32>
    %481 = vector.broadcast %480 : vector<1x384xf32> to vector<16x384xf32>
    %482 = arith.addf %478, %481 : vector<16x384xf32>
    %483 = vector.extract_strided_slice %482 {offsets = [0, 0], sizes = [16, 128], strides = [1, 1]} : vector<16x384xf32> to vector<16x128xf32>
    %484 = vector.extract_strided_slice %482 {offsets = [0, 128], sizes = [16, 128], strides = [1, 1]} : vector<16x384xf32> to vector<16x128xf32>
    %485 = vector.extract_strided_slice %482 {offsets = [0, 256], sizes = [16, 128], strides = [1, 1]} : vector<16x384xf32> to vector<16x128xf32>
    %486 = tpu.concatenate %484, %484, %484, %484 in 0 : vector<16x128xf32>, vector<16x128xf32>, vector<16x128xf32>, vector<16x128xf32> -> vector<64x128xf32>
    %487 = arith.mulf %486, %26 : vector<64x128xf32>
    %488 = arith.truncf %487 : vector<64x128xf32> to vector<64x128xbf16>
    %489 = tpu.concatenate %485, %485, %485, %485 in 0 : vector<16x128xf32>, vector<16x128xf32>, vector<16x128xf32>, vector<16x128xf32> -> vector<64x128xf32>
    %490 = arith.mulf %489, %26 : vector<64x128xf32>
    %491 = arith.truncf %490 : vector<64x128xf32> to vector<64x128xbf16>
    %492 = arith.truncf %483 : vector<16x128xf32> to vector<16x128xbf16>
    %cst_229 = arith.constant dense<0.000000e+00> : vector<16x64xf32>
    %493 = tpu.matmul %492, %488, %cst_229 {dimension_numbers = #tpu.dot_dimension_numbers<[1], [1], [0], [0], [0, 0, 1, 0], [], []>} : vector<16x128xbf16>, vector<64x128xbf16>, vector<16x64xf32> -> vector<16x64xf32>
    %494 = arith.addf %493, %25 : vector<16x64xf32>
    %cst_230 = arith.constant dense<0xFF800000> : vector<16xf32>
    %495 = vector.multi_reduction <maximumf>, %494, %cst_230 [1] : vector<16x64xf32> to vector<16xf32>
    %496 = vector.shape_cast %495 : vector<16xf32> to vector<16x1xf32>
    %497 = vector.broadcast %496 : vector<16x1xf32> to vector<16x64xf32>
    %498 = arith.subf %494, %497 : vector<16x64xf32>
    %499 = math.exp %498 : vector<16x64xf32>
    %cst_231 = arith.constant dense<0.000000e+00> : vector<16x64xf32>
    %500 = tpu.matmul %499, %27, %cst_231 {dimension_numbers = #tpu.dot_dimension_numbers<[1], [0], [0], [1], [0, 0, 1, 1], [], []>} : vector<16x64xf32>, vector<64x64xf32>, vector<16x64xf32> -> vector<16x64xf32>
    %501 = tpu.reciprocal %500 {approx = true} : vector<16x64xf32> -> vector<16x64xf32>
    %502 = arith.mulf %499, %501 : vector<16x64xf32>
    %503 = arith.truncf %502 : vector<16x64xf32> to vector<16x64xbf16>
    %cst_232 = arith.constant dense<0.000000e+00> : vector<16x128xf32>
    %504 = tpu.matmul %503, %491, %cst_232 {dimension_numbers = #tpu.dot_dimension_numbers<[1], [0], [0], [1], [0, 0, 1, 1], [], []>} : vector<16x64xbf16>, vector<64x128xbf16>, vector<16x128xf32> -> vector<16x128xf32>
    %505 = arith.truncf %504 : vector<16x128xf32> to vector<16x128xbf16>
    %c3_233 = arith.constant 3 : index
    %c0_234 = arith.constant 0 : index
    %c0_235 = arith.constant 0 : index
    %506 = vector.load %arg9[%c3_233, %c0_234, %c0_235] : memref<4x128x128xbf16, #tpu.memory_space<vmem>>, vector<1x128x128xbf16>
    %507 = vector.shape_cast %506 : vector<1x128x128xbf16> to vector<128x128xbf16>
    %cst_236 = arith.constant dense<0.000000e+00> : vector<16x128xf32>
    %508 = tpu.matmul %505, %507, %cst_236 {dimension_numbers = #tpu.dot_dimension_numbers<[1], [0], [0], [1], [0, 0, 1, 1], [], []>} : vector<16x128xbf16>, vector<128x128xbf16>, vector<16x128xf32> -> vector<16x128xf32>
    %c3_237 = arith.constant 3 : index
    %c0_238 = arith.constant 0 : index
    %c0_239 = arith.constant 0 : index
    %509 = vector.load %arg10[%c3_237, %c0_238, %c0_239] : memref<4x1x128xf32, #tpu.memory_space<vmem>>, vector<1x1x128xf32>
    %510 = vector.shape_cast %509 : vector<1x1x128xf32> to vector<1x128xf32>
    %511 = vector.broadcast %510 : vector<1x128xf32> to vector<16x128xf32>
    %512 = arith.addf %508, %511 : vector<16x128xf32>
    %513 = arith.addf %474, %512 : vector<16x128xf32>
    %c3_240 = arith.constant 3 : index
    %c0_241 = arith.constant 0 : index
    %c0_242 = arith.constant 0 : index
    %514 = vector.load %arg11[%c3_240, %c0_241, %c0_242] : memref<4x1x128xf32, #tpu.memory_space<vmem>>, vector<1x1x128xf32>
    %515 = vector.shape_cast %514 : vector<1x1x128xf32> to vector<1x128xf32>
    %c3_243 = arith.constant 3 : index
    %c0_244 = arith.constant 0 : index
    %c0_245 = arith.constant 0 : index
    %516 = vector.load %arg12[%c3_243, %c0_244, %c0_245] : memref<4x1x128xf32, #tpu.memory_space<vmem>>, vector<1x1x128xf32>
    %517 = vector.shape_cast %516 : vector<1x1x128xf32> to vector<1x128xf32>
    %cst_246 = arith.constant dense<0.000000e+00> : vector<16xf32>
    %518 = vector.multi_reduction <add>, %513, %cst_246 [1] : vector<16x128xf32> to vector<16xf32>
    %519 = vector.shape_cast %518 : vector<16xf32> to vector<16x1xf32>
    %cst_247 = arith.constant 1.280000e+02 : f32
    %520 = vector.broadcast %cst_247 : f32 to vector<16x1xf32>
    %521 = arith.divf %519, %520 : vector<16x1xf32>
    %522 = vector.broadcast %521 : vector<16x1xf32> to vector<16x128xf32>
    %523 = arith.subf %513, %522 : vector<16x128xf32>
    %524 = arith.mulf %523, %523 : vector<16x128xf32>
    %cst_248 = arith.constant dense<0.000000e+00> : vector<16xf32>
    %525 = vector.multi_reduction <add>, %524, %cst_248 [1] : vector<16x128xf32> to vector<16xf32>
    %526 = vector.shape_cast %525 : vector<16xf32> to vector<16x1xf32>
    %cst_249 = arith.constant 1.280000e+02 : f32
    %527 = vector.broadcast %cst_249 : f32 to vector<16x1xf32>
    %528 = arith.divf %526, %527 : vector<16x1xf32>
    %529 = vector.broadcast %521 : vector<16x1xf32> to vector<16x128xf32>
    %530 = arith.subf %513, %529 : vector<16x128xf32>
    %cst_250 = arith.constant 9.99999996E-13 : f32
    %531 = vector.broadcast %cst_250 : f32 to vector<16x1xf32>
    %532 = arith.addf %528, %531 : vector<16x1xf32>
    %533 = math.rsqrt %532 : vector<16x1xf32>
    %534 = vector.broadcast %533 : vector<16x1xf32> to vector<16x128xf32>
    %535 = arith.mulf %530, %534 : vector<16x128xf32>
    %536 = vector.broadcast %515 : vector<1x128xf32> to vector<16x128xf32>
    %537 = arith.mulf %535, %536 : vector<16x128xf32>
    %538 = vector.broadcast %517 : vector<1x128xf32> to vector<16x128xf32>
    %539 = arith.addf %537, %538 : vector<16x128xf32>
    %540 = arith.truncf %539 : vector<16x128xf32> to vector<16x128xbf16>
    %c3_251 = arith.constant 3 : index
    %c0_252 = arith.constant 0 : index
    %c0_253 = arith.constant 0 : index
    %541 = vector.load %arg13[%c3_251, %c0_252, %c0_253] : memref<4x128x256xbf16, #tpu.memory_space<vmem>>, vector<1x128x256xbf16>
    %542 = vector.shape_cast %541 : vector<1x128x256xbf16> to vector<128x256xbf16>
    %cst_254 = arith.constant dense<0.000000e+00> : vector<16x256xf32>
    %543 = tpu.matmul %540, %542, %cst_254 {dimension_numbers = #tpu.dot_dimension_numbers<[1], [0], [0], [1], [0, 0, 1, 1], [], []>} : vector<16x128xbf16>, vector<128x256xbf16>, vector<16x256xf32> -> vector<16x256xf32>
    %c3_255 = arith.constant 3 : index
    %c0_256 = arith.constant 0 : index
    %c0_257 = arith.constant 0 : index
    %544 = vector.load %arg14[%c3_255, %c0_256, %c0_257] : memref<4x1x256xf32, #tpu.memory_space<vmem>>, vector<1x1x256xf32>
    %545 = vector.shape_cast %544 : vector<1x1x256xf32> to vector<1x256xf32>
    %546 = vector.broadcast %545 : vector<1x256xf32> to vector<16x256xf32>
    %547 = arith.addf %543, %546 : vector<16x256xf32>
    %cst_258 = arith.constant 5.000000e-01 : f32
    %548 = vector.broadcast %cst_258 : f32 to vector<16x256xf32>
    %549 = arith.mulf %548, %547 : vector<16x256xf32>
    %cst_259 = arith.constant 0.707106769 : f32
    %550 = vector.broadcast %cst_259 : f32 to vector<16x256xf32>
    %551 = arith.mulf %547, %550 : vector<16x256xf32>
    %cst_260 = arith.constant 0.000000e+00 : f32
    %552 = vector.broadcast %cst_260 : f32 to vector<16x256xf32>
    %553 = arith.cmpf oge, %551, %552 : vector<16x256xf32>
    %cst_261 = arith.constant 1.000000e+00 : f32
    %cst_262 = arith.constant -1.000000e+00 : f32
    %554 = vector.broadcast %cst_261 : f32 to vector<16x256xf32>
    %555 = vector.broadcast %cst_262 : f32 to vector<16x256xf32>
    %556 = arith.select %553, %554, %555 : vector<16x256xi1>, vector<16x256xf32>
    %557 = math.absf %551 : vector<16x256xf32>
    %cst_263 = arith.constant 0.327591091 : f32
    %558 = vector.broadcast %cst_263 : f32 to vector<16x256xf32>
    %559 = arith.mulf %558, %557 : vector<16x256xf32>
    %cst_264 = arith.constant 1.000000e+00 : f32
    %560 = vector.broadcast %cst_264 : f32 to vector<16x256xf32>
    %561 = arith.addf %560, %559 : vector<16x256xf32>
    %cst_265 = arith.constant 1.000000e+00 : f32
    %562 = vector.broadcast %cst_265 : f32 to vector<16x256xf32>
    %563 = arith.divf %562, %561 : vector<16x256xf32>
    %cst_266 = arith.constant 1.06140542 : f32
    %564 = vector.broadcast %cst_266 : f32 to vector<16x256xf32>
    %565 = arith.mulf %564, %563 : vector<16x256xf32>
    %cst_267 = arith.constant -1.45315206 : f32
    %566 = vector.broadcast %cst_267 : f32 to vector<16x256xf32>
    %567 = arith.addf %565, %566 : vector<16x256xf32>
    %568 = arith.mulf %567, %563 : vector<16x256xf32>
    %cst_268 = arith.constant 1.42141378 : f32
    %569 = vector.broadcast %cst_268 : f32 to vector<16x256xf32>
    %570 = arith.addf %568, %569 : vector<16x256xf32>
    %571 = arith.mulf %570, %563 : vector<16x256xf32>
    %cst_269 = arith.constant -0.284496725 : f32
    %572 = vector.broadcast %cst_269 : f32 to vector<16x256xf32>
    %573 = arith.addf %571, %572 : vector<16x256xf32>
    %574 = arith.mulf %573, %563 : vector<16x256xf32>
    %cst_270 = arith.constant 0.254829586 : f32
    %575 = vector.broadcast %cst_270 : f32 to vector<16x256xf32>
    %576 = arith.addf %574, %575 : vector<16x256xf32>
    %577 = arith.mulf %576, %563 : vector<16x256xf32>
    %cst_271 = arith.constant 0.000000e+00 : f32
    %578 = vector.broadcast %cst_271 : f32 to vector<16x256xf32>
    %579 = arith.subf %578, %557 : vector<16x256xf32>
    %580 = arith.mulf %579, %557 : vector<16x256xf32>
    %581 = math.exp %580 : vector<16x256xf32>
    %582 = arith.mulf %577, %581 : vector<16x256xf32>
    %cst_272 = arith.constant 1.000000e+00 : f32
    %583 = vector.broadcast %cst_272 : f32 to vector<16x256xf32>
    %584 = arith.subf %583, %582 : vector<16x256xf32>
    %585 = arith.mulf %556, %584 : vector<16x256xf32>
    %cst_273 = arith.constant 1.000000e+00 : f32
    %586 = vector.broadcast %cst_273 : f32 to vector<16x256xf32>
    %587 = arith.addf %586, %585 : vector<16x256xf32>
    %588 = arith.mulf %549, %587 : vector<16x256xf32>
    %589 = arith.truncf %588 : vector<16x256xf32> to vector<16x256xbf16>
    %c3_274 = arith.constant 3 : index
    %c0_275 = arith.constant 0 : index
    %c0_276 = arith.constant 0 : index
    %590 = vector.load %arg15[%c3_274, %c0_275, %c0_276] : memref<4x256x128xbf16, #tpu.memory_space<vmem>>, vector<1x256x128xbf16>
    %591 = vector.shape_cast %590 : vector<1x256x128xbf16> to vector<256x128xbf16>
    %cst_277 = arith.constant dense<0.000000e+00> : vector<16x128xf32>
    %592 = tpu.matmul %589, %591, %cst_277 {dimension_numbers = #tpu.dot_dimension_numbers<[1], [0], [0], [1], [0, 0, 1, 1], [], []>} : vector<16x256xbf16>, vector<256x128xbf16>, vector<16x128xf32> -> vector<16x128xf32>
    %c3_278 = arith.constant 3 : index
    %c0_279 = arith.constant 0 : index
    %c0_280 = arith.constant 0 : index
    %593 = vector.load %arg16[%c3_278, %c0_279, %c0_280] : memref<4x1x128xf32, #tpu.memory_space<vmem>>, vector<1x1x128xf32>
    %594 = vector.shape_cast %593 : vector<1x1x128xf32> to vector<1x128xf32>
    %595 = vector.broadcast %594 : vector<1x128xf32> to vector<16x128xf32>
    %596 = arith.addf %592, %595 : vector<16x128xf32>
    %597 = arith.addf %539, %596 : vector<16x128xf32>
    %c3_281 = arith.constant 3 : index
    %c0_282 = arith.constant 0 : index
    %c0_283 = arith.constant 0 : index
    %598 = vector.load %arg17[%c3_281, %c0_282, %c0_283] : memref<4x1x128xf32, #tpu.memory_space<vmem>>, vector<1x1x128xf32>
    %599 = vector.shape_cast %598 : vector<1x1x128xf32> to vector<1x128xf32>
    %c3_284 = arith.constant 3 : index
    %c0_285 = arith.constant 0 : index
    %c0_286 = arith.constant 0 : index
    %600 = vector.load %arg18[%c3_284, %c0_285, %c0_286] : memref<4x1x128xf32, #tpu.memory_space<vmem>>, vector<1x1x128xf32>
    %601 = vector.shape_cast %600 : vector<1x1x128xf32> to vector<1x128xf32>
    %cst_287 = arith.constant dense<0.000000e+00> : vector<16xf32>
    %602 = vector.multi_reduction <add>, %597, %cst_287 [1] : vector<16x128xf32> to vector<16xf32>
    %603 = vector.shape_cast %602 : vector<16xf32> to vector<16x1xf32>
    %cst_288 = arith.constant 1.280000e+02 : f32
    %604 = vector.broadcast %cst_288 : f32 to vector<16x1xf32>
    %605 = arith.divf %603, %604 : vector<16x1xf32>
    %606 = vector.broadcast %605 : vector<16x1xf32> to vector<16x128xf32>
    %607 = arith.subf %597, %606 : vector<16x128xf32>
    %608 = arith.mulf %607, %607 : vector<16x128xf32>
    %cst_289 = arith.constant dense<0.000000e+00> : vector<16xf32>
    %609 = vector.multi_reduction <add>, %608, %cst_289 [1] : vector<16x128xf32> to vector<16xf32>
    %610 = vector.shape_cast %609 : vector<16xf32> to vector<16x1xf32>
    %cst_290 = arith.constant 1.280000e+02 : f32
    %611 = vector.broadcast %cst_290 : f32 to vector<16x1xf32>
    %612 = arith.divf %610, %611 : vector<16x1xf32>
    %613 = vector.broadcast %605 : vector<16x1xf32> to vector<16x128xf32>
    %614 = arith.subf %597, %613 : vector<16x128xf32>
    %cst_291 = arith.constant 9.99999996E-13 : f32
    %615 = vector.broadcast %cst_291 : f32 to vector<16x1xf32>
    %616 = arith.addf %612, %615 : vector<16x1xf32>
    %617 = math.rsqrt %616 : vector<16x1xf32>
    %618 = vector.broadcast %617 : vector<16x1xf32> to vector<16x128xf32>
    %619 = arith.mulf %614, %618 : vector<16x128xf32>
    %620 = vector.broadcast %599 : vector<1x128xf32> to vector<16x128xf32>
    %621 = arith.mulf %619, %620 : vector<16x128xf32>
    %622 = vector.broadcast %601 : vector<1x128xf32> to vector<16x128xf32>
    %623 = arith.addf %621, %622 : vector<16x128xf32>
    %c0_292 = arith.constant 0 : index
    %c0_293 = arith.constant 0 : index
    %624 = vector.load %arg24[%c0_292, %c0_293] : memref<16x128xf32, #tpu.memory_space<vmem>>, vector<16x128xf32>
    tpu.vector_store %arg24[%c0_292, %c0_293], %623 {strides = array<i32>} : memref<16x128xf32, #tpu.memory_space<vmem>>, vector<16x128xf32>,
    %c0_294 = arith.constant 0 : index
    %c0_295 = arith.constant 0 : index
    %625 = tpu.strided_load %arg24[%c0_294, %c0_295] {strides = array<i32: 8, 1>} : memref<16x128xf32, #tpu.memory_space<vmem>>, vector<2x128xf32>
    %c0_296 = arith.constant 0 : index
    %c0_297 = arith.constant 0 : index
    %626 = vector.load %arg19[%c0_296, %c0_297] : memref<1x128xf32, #tpu.memory_space<vmem>>, vector<1x128xf32>
    %627 = vector.broadcast %626 : vector<1x128xf32> to vector<2x128xf32>
    %628 = arith.mulf %625, %627 : vector<2x128xf32>
    %cst_298 = arith.constant dense<0.000000e+00> : vector<2xf32>
    %629 = vector.multi_reduction <add>, %628, %cst_298 [1] : vector<2x128xf32> to vector<2xf32>
    %630 = vector.shape_cast %629 : vector<2xf32> to vector<2x1xf32>
    %c0_299 = arith.constant 0 : index
    %c0_300 = arith.constant 0 : index
    %631 = vector.load %arg20[%c0_299, %c0_300] : memref<1x1xf32, #tpu.memory_space<vmem>>, vector<1x1xf32>
    %632 = vector.broadcast %631 : vector<1x1xf32> to vector<2x1xf32>
    %633 = arith.addf %630, %632 : vector<2x1xf32>
    %634 = vector.shape_cast %633 : vector<2x1xf32> to vector<2x1xf32>
    %635 = vector.broadcast %634 : vector<2x1xf32> to vector<2x128xf32>
    %c0_301 = arith.constant 0 : index
    %c0_302 = arith.constant 0 : index
    %636 = vector.load %arg22[%c0_301, %c0_302] : memref<2x128xf32, #tpu.memory_space<vmem>>, vector<2x128xf32>
    tpu.vector_store %arg22[%c0_301, %c0_302], %635 {strides = array<i32>} : memref<2x128xf32, #tpu.memory_space<vmem>>, vector<2x128xf32>,
    %c0_303 = arith.constant 0 : index
    %c0_304 = arith.constant 0 : index
    %637 = vector.load %arg21[%c0_303, %c0_304] : memref<2x1xf32, #tpu.memory_space<vmem>>, vector<2x1xf32>
    %638 = arith.subf %633, %637 : vector<2x1xf32>
    %639 = arith.mulf %638, %638 : vector<2x1xf32>
    %cst_305 = arith.constant dense<0.000000e+00> : vector<1xf32>
    %640 = vector.multi_reduction <add>, %639, %cst_305 [0] : vector<2x1xf32> to vector<1xf32>
    %641 = vector.shape_cast %640 : vector<1xf32> to vector<1x1xf32>
    %cst_306 = arith.constant 5.000000e-01 : f32
    %642 = vector.broadcast %cst_306 : f32 to vector<1x1xf32>
    %643 = arith.mulf %641, %642 : vector<1x1xf32>
    %644 = vector.shape_cast %643 : vector<1x1xf32> to vector<1x1xf32>
    %645 = vector.broadcast %644 : vector<1x1xf32> to vector<1x128xf32>
    %c0_307 = arith.constant 0 : index
    %c0_308 = arith.constant 0 : index
    %646 = vector.load %arg23[%c0_307, %c0_308] : memref<1x128xf32, #tpu.memory_space<vmem>>, vector<1x128xf32>
    tpu.vector_store %arg23[%c0_307, %c0_308], %645 {strides = array<i32>} : memref<1x128xf32, #tpu.memory_space<vmem>>, vector<1x128xf32>,
    return
  }
  func.func @transform_0(%arg0: i32) -> (i32, i32) {
    %c0_i32 = arith.constant 0 : i32
    %c0_i32_0 = arith.constant 0 : i32
    %c0_i32_1 = arith.constant 0 : i32
    return %c0_i32, %c0_i32_0 : i32, i32
  }
  func.func @transform_1(%arg0: i32) -> (i32, i32) {
    %c0_i32 = arith.constant 0 : i32
    %c0_i32_0 = arith.constant 0 : i32
    %c0_i32_1 = arith.constant 0 : i32
    return %c0_i32, %c0_i32_0 : i32, i32
  }
  func.func @transform_2(%arg0: i32) -> (i32, i32) {
    %c0_i32 = arith.constant 0 : i32
    %c0_i32_0 = arith.constant 0 : i32
    %c0_i32_1 = arith.constant 0 : i32
    return %c0_i32, %c0_i32_0 : i32, i32
  }
  func.func @transform_3(%arg0: i32) -> (i32, i32) {
    %c0_i32 = arith.constant 0 : i32
    %c0_i32_0 = arith.constant 0 : i32
    %c0_i32_1 = arith.constant 0 : i32
    return %c0_i32, %c0_i32_0 : i32, i32
  }
  func.func @transform_4(%arg0: i32) -> (i32, i32) {
    %c0_i32 = arith.constant 0 : i32
    %c0_i32_0 = arith.constant 0 : i32
    %c0_i32_1 = arith.constant 0 : i32
    return %c0_i32, %c0_i32_0 : i32, i32
  }
  func.func @transform_5(%arg0: i32) -> (i32, i32) {
    %c0_i32 = arith.constant 0 : i32
    %c0_i32_0 = arith.constant 0 : i32
    %c0_i32_1 = arith.constant 0 : i32
    return %c0_i32, %c0_i32_0 : i32, i32
  }
  func.func @transform_6(%arg0: i32) -> (i32, i32, i32) {
    %c0_i32 = arith.constant 0 : i32
    %c0_i32_0 = arith.constant 0 : i32
    %c0_i32_1 = arith.constant 0 : i32
    %c0_i32_2 = arith.constant 0 : i32
    return %c0_i32, %c0_i32_0, %c0_i32_1 : i32, i32, i32
  }
  func.func @transform_7(%arg0: i32) -> (i32, i32, i32) {
    %c0_i32 = arith.constant 0 : i32
    %c0_i32_0 = arith.constant 0 : i32
    %c0_i32_1 = arith.constant 0 : i32
    %c0_i32_2 = arith.constant 0 : i32
    return %c0_i32, %c0_i32_0, %c0_i32_1 : i32, i32, i32
  }
  func.func @transform_8(%arg0: i32) -> (i32, i32, i32) {
    %c0_i32 = arith.constant 0 : i32
    %c0_i32_0 = arith.constant 0 : i32
    %c0_i32_1 = arith.constant 0 : i32
    %c0_i32_2 = arith.constant 0 : i32
    return %c0_i32, %c0_i32_0, %c0_i32_1 : i32, i32, i32
  }
  func.func @transform_9(%arg0: i32) -> (i32, i32, i32) {
    %c0_i32 = arith.constant 0 : i32
    %c0_i32_0 = arith.constant 0 : i32
    %c0_i32_1 = arith.constant 0 : i32
    %c0_i32_2 = arith.constant 0 : i32
    return %c0_i32, %c0_i32_0, %c0_i32_1 : i32, i32, i32
  }
  func.func @transform_10(%arg0: i32) -> (i32, i32, i32) {
    %c0_i32 = arith.constant 0 : i32
    %c0_i32_0 = arith.constant 0 : i32
    %c0_i32_1 = arith.constant 0 : i32
    %c0_i32_2 = arith.constant 0 : i32
    return %c0_i32, %c0_i32_0, %c0_i32_1 : i32, i32, i32
  }
  func.func @transform_11(%arg0: i32) -> (i32, i32, i32) {
    %c0_i32 = arith.constant 0 : i32
    %c0_i32_0 = arith.constant 0 : i32
    %c0_i32_1 = arith.constant 0 : i32
    %c0_i32_2 = arith.constant 0 : i32
    return %c0_i32, %c0_i32_0, %c0_i32_1 : i32, i32, i32
  }
  func.func @transform_12(%arg0: i32) -> (i32, i32, i32) {
    %c0_i32 = arith.constant 0 : i32
    %c0_i32_0 = arith.constant 0 : i32
    %c0_i32_1 = arith.constant 0 : i32
    %c0_i32_2 = arith.constant 0 : i32
    return %c0_i32, %c0_i32_0, %c0_i32_1 : i32, i32, i32
  }
  func.func @transform_13(%arg0: i32) -> (i32, i32, i32) {
    %c0_i32 = arith.constant 0 : i32
    %c0_i32_0 = arith.constant 0 : i32
    %c0_i32_1 = arith.constant 0 : i32
    %c0_i32_2 = arith.constant 0 : i32
    return %c0_i32, %c0_i32_0, %c0_i32_1 : i32, i32, i32
  }
  func.func @transform_14(%arg0: i32) -> (i32, i32, i32) {
    %c0_i32 = arith.constant 0 : i32
    %c0_i32_0 = arith.constant 0 : i32
    %c0_i32_1 = arith.constant 0 : i32
    %c0_i32_2 = arith.constant 0 : i32
    return %c0_i32, %c0_i32_0, %c0_i32_1 : i32, i32, i32
  }
  func.func @transform_15(%arg0: i32) -> (i32, i32, i32) {
    %c0_i32 = arith.constant 0 : i32
    %c0_i32_0 = arith.constant 0 : i32
    %c0_i32_1 = arith.constant 0 : i32
    %c0_i32_2 = arith.constant 0 : i32
    return %c0_i32, %c0_i32_0, %c0_i32_1 : i32, i32, i32
  }
  func.func @transform_16(%arg0: i32) -> (i32, i32, i32) {
    %c0_i32 = arith.constant 0 : i32
    %c0_i32_0 = arith.constant 0 : i32
    %c0_i32_1 = arith.constant 0 : i32
    %c0_i32_2 = arith.constant 0 : i32
    return %c0_i32, %c0_i32_0, %c0_i32_1 : i32, i32, i32
  }
  func.func @transform_17(%arg0: i32) -> (i32, i32, i32) {
    %c0_i32 = arith.constant 0 : i32
    %c0_i32_0 = arith.constant 0 : i32
    %c0_i32_1 = arith.constant 0 : i32
    %c0_i32_2 = arith.constant 0 : i32
    return %c0_i32, %c0_i32_0, %c0_i32_1 : i32, i32, i32
  }
  func.func @transform_18(%arg0: i32) -> (i32, i32) {
    %c0_i32 = arith.constant 0 : i32
    %c0_i32_0 = arith.constant 0 : i32
    %c0_i32_1 = arith.constant 0 : i32
    return %c0_i32, %c0_i32_0 : i32, i32
  }
  func.func @transform_19(%arg0: i32) -> (i32, i32) {
    %c0_i32 = arith.constant 0 : i32
    %c0_i32_0 = arith.constant 0 : i32
    %c0_i32_1 = arith.constant 0 : i32
    return %c0_i32, %c0_i32_0 : i32, i32
  }
  func.func @transform_20(%arg0: i32) -> (i32, i32) {
    %c0_i32 = arith.constant 0 : i32
    %c0_i32_0 = arith.constant 0 : i32
    %c0_i32_1 = arith.constant 0 : i32
    return %c0_i32, %c0_i32_0 : i32, i32
  }
  func.func @transform_21(%arg0: i32) -> (i32, i32) {
    %c0_i32 = arith.constant 0 : i32
    %c0_i32_0 = arith.constant 0 : i32
    %c0_i32_1 = arith.constant 0 : i32
    return %c0_i32, %c0_i32_0 : i32, i32
  }
  func.func @transform_22(%arg0: i32) -> (i32, i32) {
    %c0_i32 = arith.constant 0 : i32
    %c0_i32_0 = arith.constant 0 : i32
    %c0_i32_1 = arith.constant 0 : i32
    return %c0_i32, %c0_i32_0 : i32, i32
  }
}

</mosaic_0001>

<llo_original>
// kernel: tpu_custom_call.1
$region0: #{tpu_custom_call.1}
  #allocation0 [shape = 'u32[]', space=smem, size = 0x4, offset = 0x4, fixed_abs, tag = 'smem constant byte address 0x4 - core index']
  #allocation1 [shape = 'u32[144,128]{1,0:T(1,128)}', space=vmem, size = 0x12000, scoped, tag = 'internal scratch']
  #allocation2 [shape = 'f32[16,128]{1,0:T(8,128)}', space=vmem, size = 0x2000, scoped, tag = 'scratch operand']
  #allocation3 [shape = 'f32[1,1]{1,0:T(1,128)S(1)}', space=vmem, size = 0x200, scoped, tag = 'scoped memory for tpu_custom_call.1']
  %s0 = inlined_call_operand.hbm [shape: f32[16,128], index: 0, kind: input, shape index: {}]
  %s1 = inlined_call_operand.hbm [shape: f32[16,64], index: 1, kind: input, shape index: {}]
  %s2 = inlined_call_operand.hbm [shape: f32[64,128], index: 2, kind: input, shape index: {}]
  %s3 = inlined_call_operand.hbm [shape: f32[64,64], index: 3, kind: input, shape index: {}]
  %s4 = inlined_call_operand.hbm [shape: f32[1,128], index: 4, kind: input, shape index: {}]
  %s5 = inlined_call_operand.hbm [shape: f32[1,128], index: 5, kind: input, shape index: {}]
  %s6 = inlined_call_operand.hbm [shape: bf16[4,128,384], index: 6, kind: input, shape index: {}]
  %s7 = inlined_call_operand.vmem [shape: f32[4,1,384], index: 7, kind: input, shape index: {}]
  %s8 = inlined_call_operand.hbm [shape: bf16[4,128,128], index: 8, kind: input, shape index: {}]
  %s9 = inlined_call_operand.hbm [shape: f32[4,1,128], index: 9, kind: input, shape index: {}]
  %s10 = inlined_call_operand.hbm [shape: f32[4,1,128], index: 10, kind: input, shape index: {}]
  %s11 = inlined_call_operand.vmem [shape: f32[4,1,128], index: 11, kind: input, shape index: {}]
  %s12 = inlined_call_operand.hbm [shape: bf16[4,128,256], index: 12, kind: input, shape index: {}]
  %s13 = inlined_call_operand.vmem [shape: f32[4,1,256], index: 13, kind: input, shape index: {}]
  %s14 = inlined_call_operand.hbm [shape: bf16[4,256,128], index: 14, kind: input, shape index: {}]
  %s15 = inlined_call_operand.vmem [shape: f32[4,1,128], index: 15, kind: input, shape index: {}]
  %s16 = inlined_call_operand.vmem [shape: f32[4,1,128], index: 16, kind: input, shape index: {}]
  %s17 = inlined_call_operand.vmem [shape: f32[4,1,128], index: 17, kind: input, shape index: {}]
  %s18 = inlined_call_operand.vmem [shape: f32[1,128], index: 18, kind: input, shape index: {}]
  %s19 = inlined_call_operand.<no memory space> [shape: f32[1,1], index: 19, kind: input, shape index: {}]
  %s20 = inlined_call_operand.vmem [shape: f32[2,1], index: 20, kind: input, shape index: {}]
  %s21 = inlined_call_operand.hbm [shape: f32[2,128], index: 21, kind: output, shape index: {0}]
  %s22 = inlined_call_operand.hbm [shape: f32[1,128], index: 22, kind: output, shape index: {1}]
  %23 = xla_tuple %s21, %s22
  %s24 = sld [smem:[#allocation0]]
  $region150: #{tpu_custom_call.1} parent=0
    _
  %s26 = ssub.s32 1, %s24
  %s27 = scalar_select 0, %s26, %s24
  %v28 = vstv %s19
  %29 = vst [vmem:[#allocation3] sm:$0x1] %v28
  $region1: #{tpu_custom_call.1} parent=0
    #allocation4 [shape = 'u8[8192]{0}', space=vmem, size = 0x2000, scoped, tag = 'input window, operand 0, single buffered']
    #allocation5 [shape = 's32[1]{0}', space=sflag, size = 0x4, scoped, tag = 'scoped memory for tpu_custom_call.1']
    #allocation6 [shape = 's32[1]{0}', space=sflag, size = 0x4, scoped, tag = 'scoped memory for tpu_custom_call.1']
    #allocation7 [shape = 'u8[8192]{0}', space=vmem, size = 0x2000, scoped, tag = 'input window, operand 1, single buffered']
    #allocation8 [shape = 's32[1]{0}', space=sflag, size = 0x4, scoped, tag = 'scoped memory for tpu_custom_call.1']
    #allocation9 [shape = 'u8[32768]{0}', space=vmem, size = 0x8000, scoped, tag = 'input window, operand 2, single buffered']
    #allocation10 [shape = 'u8[32768]{0}', space=vmem, size = 0x8000, scoped, tag = 'input window, operand 3, single buffered']
    #allocation11 [shape = 's32[1]{0}', space=sflag, size = 0x4, scoped, tag = 'scoped memory for tpu_custom_call.1']
    #allocation12 [shape = 'u8[512]{0}', space=vmem, size = 0x400, scoped, tag = 'input window, operand 4, single buffered']
    #allocation13 [shape = 'u8[512]{0}', space=vmem, size = 0x400, scoped, tag = 'input window, operand 5, single buffered']
    #allocation14 [shape = 's32[1]{0}', space=sflag, size = 0x4, scoped, tag = 'scoped memory for tpu_custom_call.1']
    #allocation15 [shape = 'u8[393216]{0}', space=vmem, size = 0x60000, scoped, tag = 'input window, operand 6, single buffered']
    #allocation16 [shape = 'u8[131072]{0}', space=vmem, size = 0x20000, scoped, tag = 'input window, operand 8, single buffered']
    #allocation17 [shape = 's32[1]{0}', space=sflag, size = 0x4, scoped, tag = 'scoped memory for tpu_custom_call.1']
    #allocation18 [shape = 'u8[2048]{0}', space=vmem, size = 0x800, scoped, tag = 'input window, operand 9, single buffered']
    #allocation19 [shape = 'u8[2048]{0}', space=vmem, size = 0x800, scoped, tag = 'input window, operand 10, single buffered']
    #allocation20 [shape = 's32[1]{0}', space=sflag, size = 0x4, scoped, tag = 'scoped memory for tpu_custom_call.1']
    #allocation21 [shape = 'u8[262144]{0}', space=vmem, size = 0x40000, scoped, tag = 'input window, operand 12, single buffered']
    #allocation22 [shape = 'u8[262144]{0}', space=vmem, size = 0x40000, scoped, tag = 'input window, operand 14, single buffered']
    #allocation23 [shape = 's32[1]{0}', space=sflag, size = 0x4, scoped, tag = 'scoped memory for tpu_custom_call.1']
    #allocation24 [shape = 'u8[1024]{0}', space=vmem, size = 0x400, scoped, tag = 'output window, operand 0, single buffered']
    #allocation25 [shape = 'u8[512]{0}', space=vmem, size = 0x400, scoped, tag = 'output window, operand 1, single buffered']
    #allocation26 [shape = 's32[1]{0}', space=sflag, size = 0x4, scoped, tag = 'scoped memory for tpu_custom_call.1']
    %30 = vsyncpa [#allocation5], 0
    %31 = vsyncpa [#allocation8], 0
    %32 = vsyncpa [#allocation11], 0
    %33 = vsyncpa [#allocation14], 0
    %34 = vsyncpa [#allocation17], 0
    %35 = vsyncpa [#allocation20], 0
    %36 = vsyncpa [#allocation23], 0
    %37 = vsyncpa [#allocation6], 0
    %38 = vsyncpa [#allocation26], 0
    // Predicated region
    $region2: #{tpu_custom_call.1} parent=1 // pred_check
      _
    $region3: #{tpu_custom_call.1} parent=1 // pred_check_branch
      %40 = sbr.rel (0) target = $region5
    $region4: #{tpu_custom_call.1} parent=1 // pred_region
      %s42 = ssub.s32 256, 256
      %43 = vsyncadd [#allocation5], %s42
      %s44 = sshll.u32 [#allocation4], 4
      %s45 = int_to_ptr.vmem [resolvable:$true] %s44
      %50 = dma.hbm_to_vmem [thread:$0]  %s0, 256, %s45, [#allocation5], 128, 128, 8
    $region5: #{tpu_custom_call.1} parent=1 // pred_fallthru
      _
    // Predicated region
    $region6: #{tpu_custom_call.1} parent=1 // pred_check
      _
    $region7: #{tpu_custom_call.1} parent=1 // pred_check_branch
      %52 = sbr.rel (0) target = $region9
    $region8: #{tpu_custom_call.1} parent=1 // pred_region
      %s54 = ssub.s32 256, 256
      %55 = vsyncadd [#allocation8], %s54
      %s56 = sshll.u32 [#allocation7], 4
      %s57 = int_to_ptr.vmem [resolvable:$true] %s56
      %62 = dma.hbm_to_vmem [thread:$0]  %s1, 256, %s57, [#allocation8], 128, 128, 8
    $region9: #{tpu_custom_call.1} parent=1 // pred_fallthru
      _
    // Predicated region
    $region10: #{tpu_custom_call.1} parent=1 // pred_check
      _
    $region11: #{tpu_custom_call.1} parent=1 // pred_check_branch
      %64 = sbr.rel (0) target = $region13
    $region12: #{tpu_custom_call.1} parent=1 // pred_region
      %s66 = ssub.s32 1024, 1024
      %67 = vsyncadd [#allocation8], %s66
      %s68 = sshll.u32 [#allocation9], 4
      %s69 = int_to_ptr.vmem [resolvable:$true] %s68
      %74 = dma.hbm_to_vmem [thread:$0]  %s2, 1024, %s69, [#allocation8], 128, 128, 8
    $region13: #{tpu_custom_call.1} parent=1 // pred_fallthru
      _
    // Predicated region
    $region14: #{tpu_custom_call.1} parent=1 // pred_check
      _
    $region15: #{tpu_custom_call.1} parent=1 // pred_check_branch
      %76 = sbr.rel (0) target = $region17
    $region16: #{tpu_custom_call.1} parent=1 // pred_region
      %s78 = ssub.s32 1024, 1024
      %79 = vsyncadd [#allocation11], %s78
      %s80 = sshll.u32 [#allocation10], 4
      %s81 = int_to_ptr.vmem [resolvable:$true] %s80
      %86 = dma.hbm_to_vmem [thread:$0]  %s3, 1024, %s81, [#allocation11], 128, 128, 8
    $region17: #{tpu_custom_call.1} parent=1 // pred_fallthru
      _
    // Predicated region
    $region18: #{tpu_custom_call.1} parent=1 // pred_check
      _
    $region19: #{tpu_custom_call.1} parent=1 // pred_check_branch
      %88 = sbr.rel (0) target = $region21
    $region20: #{tpu_custom_call.1} parent=1 // pred_region
      %s90 = ssub.s32 16, 16
      %91 = vsyncadd [#allocation11], %s90
      %s93 = sshll.u32 [#allocation12], 4
      %s94 = int_to_ptr.vmem [resolvable:$true] %s93
      %96 = dma.hbm_to_vmem [thread:$0]  %s4, 16, %s94, [#allocation11]
    $region21: #{tpu_custom_call.1} parent=1 // pred_fallthru
      _
    // Predicated region
    $region22: #{tpu_custom_call.1} parent=1 // pred_check
      _
    $region23: #{tpu_custom_call.1} parent=1 // pred_check_branch
      %98 = sbr.rel (0) target = $region25
    $region24: #{tpu_custom_call.1} parent=1 // pred_region
      %s100 = ssub.s32 16, 16
      %101 = vsyncadd [#allocation14], %s100
      %s103 = sshll.u32 [#allocation13], 4
      %s104 = int_to_ptr.vmem [resolvable:$true] %s103
      %106 = dma.hbm_to_vmem [thread:$0]  %s5, 16, %s104, [#allocation14]
    $region25: #{tpu_custom_call.1} parent=1 // pred_fallthru
      _
    // Predicated region
    $region26: #{tpu_custom_call.1} parent=1 // pred_check
      _
    $region27: #{tpu_custom_call.1} parent=1 // pred_check_branch
      %108 = sbr.rel (0) target = $region29
    $region28: #{tpu_custom_call.1} parent=1 // pred_region
      %s110 = ssub.s32 12288, 12288
      %111 = vsyncadd [#allocation14], %s110
      %s112 = sshll.u32 [#allocation15], 4
      %s113 = int_to_ptr.vmem [resolvable:$true] %s112
      %118 = dma.hbm_to_vmem [thread:$0]  %s6, 12288, %s113, [#allocation14], 192, 192, 12
    $region29: #{tpu_custom_call.1} parent=1 // pred_fallthru
      _
    // Predicated region
    $region30: #{tpu_custom_call.1} parent=1 // pred_check
      _
    $region31: #{tpu_custom_call.1} parent=1 // pred_check_branch
      %120 = sbr.rel (0) target = $region33
    $region32: #{tpu_custom_call.1} parent=1 // pred_region
      _
    $region33: #{tpu_custom_call.1} parent=1 // pred_fallthru
      _
    // Predicated region
    $region34: #{tpu_custom_call.1} parent=1 // pred_check
      _
    $region35: #{tpu_custom_call.1} parent=1 // pred_check_branch
      %122 = sbr.rel (0) target = $region37
    $region36: #{tpu_custom_call.1} parent=1 // pred_region
      %s124 = ssub.s32 4096, 4096
      %125 = vsyncadd [#allocation17], %s124
      %s126 = sshll.u32 [#allocation16], 4
      %s127 = int_to_ptr.vmem [resolvable:$true] %s126
      %132 = dma.hbm_to_vmem [thread:$0]  %s8, 4096, %s127, [#allocation17], 64, 64, 4
    $region37: #{tpu_custom_call.1} parent=1 // pred_fallthru
      _
    // Predicated region
    $region38: #{tpu_custom_call.1} parent=1 // pred_check
      _
    $region39: #{tpu_custom_call.1} parent=1 // pred_check_branch
      %134 = sbr.rel (0) target = $region41
    $region40: #{tpu_custom_call.1} parent=1 // pred_region
      %s136 = ssub.s32 64, 64
      %137 = vsyncadd [#allocation17], %s136
      %s138 = sshll.u32 [#allocation18], 4
      %s139 = int_to_ptr.vmem [resolvable:$true] %s138
      %144 = dma.hbm_to_vmem [thread:$0]  %s9, 64, %s139, [#allocation17], 16, 16, 1
    $region41: #{tpu_custom_call.1} parent=1 // pred_fallthru
      _
    // Predicated region
    $region42: #{tpu_custom_call.1} parent=1 // pred_check
      _
    $region43: #{tpu_custom_call.1} parent=1 // pred_check_branch
      %146 = sbr.rel (0) target = $region45
    $region44: #{tpu_custom_call.1} parent=1 // pred_region
      %s148 = ssub.s32 64, 64
      %149 = vsyncadd [#allocation20], %s148
      %s150 = sshll.u32 [#allocation19], 4
      %s151 = int_to_ptr.vmem [resolvable:$true] %s150
      %156 = dma.hbm_to_vmem [thread:$0]  %s10, 64, %s151, [#allocation20], 16, 16, 1
    $region45: #{tpu_custom_call.1} parent=1 // pred_fallthru
      _
    // Predicated region
    $region46: #{tpu_custom_call.1} parent=1 // pred_check
      _
    $region47: #{tpu_custom_call.1} parent=1 // pred_check_branch
      %158 = sbr.rel (0) target = $region49
    $region48: #{tpu_custom_call.1} parent=1 // pred_region
      _
    $region49: #{tpu_custom_call.1} parent=1 // pred_fallthru
      _
    // Predicated region
    $region50: #{tpu_custom_call.1} parent=1 // pred_check
      _
    $region51: #{tpu_custom_call.1} parent=1 // pred_check_branch
      %160 = sbr.rel (0) target = $region53
    $region52: #{tpu_custom_call.1} parent=1 // pred_region
      %s162 = ssub.s32 8192, 8192
      %163 = vsyncadd [#allocation20], %s162
      %s164 = sshll.u32 [#allocation21], 4
      %s165 = int_to_ptr.vmem [resolvable:$true] %s164
      %170 = dma.hbm_to_vmem [thread:$0]  %s12, 8192, %s165, [#allocation20], 128, 128, 8
    $region53: #{tpu_custom_call.1} parent=1 // pred_fallthru
      _
    // Predicated region
    $region54: #{tpu_custom_call.1} parent=1 // pred_check
      _
    $region55: #{tpu_custom_call.1} parent=1 // pred_check_branch
      %172 = sbr.rel (0) target = $region57
    $region56: #{tpu_custom_call.1} parent=1 // pred_region
      _
    $region57: #{tpu_custom_call.1} parent=1 // pred_fallthru
      _
    // Predicated region
    $region58: #{tpu_custom_call.1} parent=1 // pred_check
      _
    $region59: #{tpu_custom_call.1} parent=1 // pred_check_branch
      %174 = sbr.rel (0) target = $region61
    $region60: #{tpu_custom_call.1} parent=1 // pred_region
      %s176 = ssub.s32 8192, 8192
      %177 = vsyncadd [#allocation23], %s176
      %s178 = sshll.u32 [#allocation22], 4
      %s179 = int_to_ptr.vmem [resolvable:$true] %s178
      %184 = dma.hbm_to_vmem [thread:$0]  %s14, 8192, %s179, [#allocation23], 64, 64, 4
    $region61: #{tpu_custom_call.1} parent=1 // pred_fallthru
      _
    // Predicated region
    $region62: #{tpu_custom_call.1} parent=1 // pred_check
      _
    $region63: #{tpu_custom_call.1} parent=1 // pred_check_branch
      %186 = sbr.rel (0) target = $region65
    $region64: #{tpu_custom_call.1} parent=1 // pred_region
      _
    $region65: #{tpu_custom_call.1} parent=1 // pred_fallthru
      _
    // Predicated region
    $region66: #{tpu_custom_call.1} parent=1 // pred_check
      _
    $region67: #{tpu_custom_call.1} parent=1 // pred_check_branch
      %188 = sbr.rel (0) target = $region69
    $region68: #{tpu_custom_call.1} parent=1 // pred_region
      _
    $region69: #{tpu_custom_call.1} parent=1 // pred_fallthru
      _
    // Predicated region
    $region70: #{tpu_custom_call.1} parent=1 // pred_check
      _
    $region71: #{tpu_custom_call.1} parent=1 // pred_check_branch
      %190 = sbr.rel (0) target = $region73
    $region72: #{tpu_custom_call.1} parent=1 // pred_region
      _
    $region73: #{tpu_custom_call.1} parent=1 // pred_fallthru
      _
    // Predicated region
    $region74: #{tpu_custom_call.1} parent=1 // pred_check
      _
    $region75: #{tpu_custom_call.1} parent=1 // pred_check_branch
      %192 = sbr.rel (0) target = $region77
    $region76: #{tpu_custom_call.1} parent=1 // pred_region
      _
    $region77: #{tpu_custom_call.1} parent=1 // pred_fallthru
      _
    // Predicated region
    $region78: #{tpu_custom_call.1} parent=1 // pred_check
      _
    $region79: #{tpu_custom_call.1} parent=1 // pred_check_branch
      %194 = sbr.rel (0) target = $region81
    $region80: #{tpu_custom_call.1} parent=1 // pred_region
      _
    $region81: #{tpu_custom_call.1} parent=1 // pred_fallthru
      _
    // Predicated region
    $region82: #{tpu_custom_call.1} parent=1 // pred_check
      _
    $region83: #{tpu_custom_call.1} parent=1 // pred_check_branch
      %196 = sbr.rel (0) target = $region85
    $region84: #{tpu_custom_call.1} parent=1 // pred_region
      _
    $region85: #{tpu_custom_call.1} parent=1 // pred_fallthru
      _
    // Predicated region
    $region86: #{tpu_custom_call.1} parent=1 // pred_check
      _
    $region87: #{tpu_custom_call.1} parent=1 // pred_check_branch
      %198 = sbr.rel (0) target = $region89
    $region88: #{tpu_custom_call.1} parent=1 // pred_region
      %199 = dma.done [#allocation5], 256
    $region89: #{tpu_custom_call.1} parent=1 // pred_fallthru
      _
    // Predicated region
    $region90: #{tpu_custom_call.1} parent=1 // pred_check
      _
    $region91: #{tpu_custom_call.1} parent=1 // pred_check_branch
      %201 = sbr.rel (0) target = $region93
    $region92: #{tpu_custom_call.1} parent=1 // pred_region
      %202 = dma.done [#allocation8], 256
    $region93: #{tpu_custom_call.1} parent=1 // pred_fallthru
      _
    // Predicated region
    $region94: #{tpu_custom_call.1} parent=1 // pred_check
      _
    $region95: #{tpu_custom_call.1} parent=1 // pred_check_branch
      %204 = sbr.rel (0) target = $region97
    $region96: #{tpu_custom_call.1} parent=1 // pred_region
      %205 = dma.done [#allocation8], 1024
    $region97: #{tpu_custom_call.1} parent=1 // pred_fallthru
      _
    // Predicated region
    $region98: #{tpu_custom_call.1} parent=1 // pred_check
      _
    $region99: #{tpu_custom_call.1} parent=1 // pred_check_branch
      %207 = sbr.rel (0) target = $region101
    $region100: #{tpu_custom_call.1} parent=1 // pred_region
      %208 = dma.done [#allocation11], 1024
    $region101: #{tpu_custom_call.1} parent=1 // pred_fallthru
      _
    // Predicated region
    $region102: #{tpu_custom_call.1} parent=1 // pred_check
      _
    $region103: #{tpu_custom_call.1} parent=1 // pred_check_branch
      %210 = sbr.rel (0) target = $region105
    $region104: #{tpu_custom_call.1} parent=1 // pred_region
      %211 = dma.done [#allocation11], 16
    $region105: #{tpu_custom_call.1} parent=1 // pred_fallthru
      _
    // Predicated region
    $region106: #{tpu_custom_call.1} parent=1 // pred_check
      _
    $region107: #{tpu_custom_call.1} parent=1 // pred_check_branch
      %213 = sbr.rel (0) target = $region109
    $region108: #{tpu_custom_call.1} parent=1 // pred_region
      %214 = dma.done [#allocation14], 16
    $region109: #{tpu_custom_call.1} parent=1 // pred_fallthru
      _
    // Predicated region
    $region110: #{tpu_custom_call.1} parent=1 // pred_check
      _
    $region111: #{tpu_custom_call.1} parent=1 // pred_check_branch
      %216 = sbr.rel (0) target = $region113
    $region112: #{tpu_custom_call.1} parent=1 // pred_region
      %217 = dma.done [#allocation14], 12288
    $region113: #{tpu_custom_call.1} parent=1 // pred_fallthru
      _
    // Predicated region
    $region114: #{tpu_custom_call.1} parent=1 // pred_check
      _
    $region115: #{tpu_custom_call.1} parent=1 // pred_check_branch
      %219 = sbr.rel (0) target = $region117
    $region116: #{tpu_custom_call.1} parent=1 // pred_region
      %220 = dma.done [#allocation17], 4096
    $region117: #{tpu_custom_call.1} parent=1 // pred_fallthru
      _
    // Predicated region
    $region118: #{tpu_custom_call.1} parent=1 // pred_check
      _
    $region119: #{tpu_custom_call.1} parent=1 // pred_check_branch
      %222 = sbr.rel (0) target = $region121
    $region120: #{tpu_custom_call.1} parent=1 // pred_region
      %223 = dma.done [#allocation17], 64
    $region121: #{tpu_custom_call.1} parent=1 // pred_fallthru
      _
    // Predicated region
    $region122: #{tpu_custom_call.1} parent=1 // pred_check
      _
    $region123: #{tpu_custom_call.1} parent=1 // pred_check_branch
      %225 = sbr.rel (0) target = $region125
    $region124: #{tpu_custom_call.1} parent=1 // pred_region
      %226 = dma.done [#allocation20], 64
    $region125: #{tpu_custom_call.1} parent=1 // pred_fallthru
      _
    // Predicated region
    $region126: #{tpu_custom_call.1} parent=1 // pred_check
      _
    $region127: #{tpu_custom_call.1} parent=1 // pred_check_branch
      %228 = sbr.rel (0) target = $region129
    $region128: #{tpu_custom_call.1} parent=1 // pred_region
      %229 = dma.done [#allocation20], 8192
    $region129: #{tpu_custom_call.1} parent=1 // pred_fallthru
      _
    // Predicated region
    $region130: #{tpu_custom_call.1} parent=1 // pred_check
      _
    $region131: #{tpu_custom_call.1} parent=1 // pred_check_branch
      %231 = sbr.rel (0) target = $region133
    $region132: #{tpu_custom_call.1} parent=1 // pred_region
      %232 = dma.done [#allocation23], 8192
    $region133: #{tpu_custom_call.1} parent=1 // pred_fallthru
      _
    %v234 = vld [vmem:[#allocation4] sm:$0xff]
    %v235 = vld [vmem:[#allocation4 + $0x8] sm:$0xff]
    %v236 = vld [vmem:[#allocation12] sm:$0x1]
    %v237 = vld [vmem:[#allocation13] sm:$0x1]
    %238 = vadd.xlane.f32.xlu0 %v234
    %v239 = vpop.xlane.xlu0 %238
    %240 = vadd.xlane.f32.xlu0 %v235
    %v241 = vpop.xlane.xlu0 %240
    %v242 = vrcp.pop 128.0
    %v243 = vmul.f32 %v239, %v242
    %v244 = vmul.f32 %v241, %v242
    %v245 = vsub.f32 %v234, %v243
    %v246 = vsub.f32 %v235, %v244
    %v247 = vmul.f32 %v245, %v245
    %v248 = vmul.f32 %v246, %v246
    %249 = vadd.xlane.f32.xlu0 %v247
    %v250 = vpop.xlane.xlu0 %249
    %251 = vadd.xlane.f32.xlu0 %v248
    %v252 = vpop.xlane.xlu0 %251
    %v253 = vmul.f32 %v250, %v242
    %v254 = vmul.f32 %v252, %v242
    %v255 = vadd.f32 %v253, 1e-12
    %v256 = vadd.f32 %v254, 1e-12
    %v257 = vrsqrt.pop %v255
    %v258 = vrsqrt.pop %v256
    %v259 = vmul.f32 %v245, %v257
    %v260 = vmul.f32 %v246, %v258
    %v262 = vlaneseq
    %v263 = vshrl.u32 %v262, 7
    %v264 = vsub.s32 0, %v263
    %v265 = vrot.slane %v236, %v264
    %v267 = vmul.f32 %v259, %v265
    %v268 = vmul.f32 %v260, %v265
    %v270 = vlaneseq
    %v271 = vshrl.u32 %v270, 7
    %v272 = vsub.s32 0, %v271
    %v273 = vrot.slane %v237, %v272
    %v275 = vadd.f32 %v267, %v273
    %v276 = vadd.f32 %v268, %v273
    %v277 = vld [vmem:[#allocation7] sm:$0xff]
    %v278 = vld [vmem:[#allocation7 + $0x8] sm:$0xff]
    %v279 = vld [vmem:[#allocation9] sm:$0xff]
    %v280 = vld [vmem:[#allocation9 + $0x8] sm:$0xff]
    %v281 = vld [vmem:[#allocation9 + $0x10] sm:$0xff]
    %v282 = vld [vmem:[#allocation9 + $0x18] sm:$0xff]
    %v283 = vld [vmem:[#allocation9 + $0x20] sm:$0xff]
    %v284 = vld [vmem:[#allocation9 + $0x28] sm:$0xff]
    %v285 = vld [vmem:[#allocation9 + $0x30] sm:$0xff]
    %v286 = vld [vmem:[#allocation9 + $0x38] sm:$0xff]
    %v287 = vld [vmem:[#allocation10] sm:$0xff]
    %v288 = vld [vmem:[#allocation10 + $0x8] sm:$0xff]
    %v289 = vld [vmem:[#allocation10 + $0x10] sm:$0xff]
    %v290 = vld [vmem:[#allocation10 + $0x18] sm:$0xff]
    %v291 = vld [vmem:[#allocation10 + $0x20] sm:$0xff]
    %v292 = vld [vmem:[#allocation10 + $0x28] sm:$0xff]
    %v293 = vld [vmem:[#allocation10 + $0x30] sm:$0xff]
    %v294 = vld [vmem:[#allocation10 + $0x38] sm:$0xff]
    %v295 = vpack.c.bf16 %v276, %v275
    %v296 = vld [vmem:[#allocation15] sm:$0xff]
    %v297 = vld [vmem:[#allocation15 + $0x8] sm:$0xf]
    %v298 = vld [vmem:[#allocation15 + $0xc] sm:$0xff]
    %v299 = vld [vmem:[#allocation15 + $0x14] sm:$0xf]
    %v300 = vld [vmem:[#allocation15 + $0x18] sm:$0xff]
    %v301 = vld [vmem:[#allocation15 + $0x20] sm:$0xf]
    %v302 = vld [vmem:[#allocation15 + $0x24] sm:$0xff]
    %v303 = vld [vmem:[#allocation15 + $0x2c] sm:$0xf]
    %v304 = vld [vmem:[#allocation15 + $0x30] sm:$0xff]
    %v305 = vld [vmem:[#allocation15 + $0x38] sm:$0xf]
    %v306 = vld [vmem:[#allocation15 + $0x3c] sm:$0xff]
    %v307 = vld [vmem:[#allocation15 + $0x44] sm:$0xf]
    %v308 = vld [vmem:[#allocation15 + $0x48] sm:$0xff]
    %v309 = vld [vmem:[#allocation15 + $0x50] sm:$0xf]
    %v310 = vld [vmem:[#allocation15 + $0x54] sm:$0xff]
    %v311 = vld [vmem:[#allocation15 + $0x5c] sm:$0xf]
    %v312 = vld [vmem:[#allocation15 + $0x60] sm:$0xff]
    %v313 = vld [vmem:[#allocation15 + $0x68] sm:$0xf]
    %v314 = vld [vmem:[#allocation15 + $0x6c] sm:$0xff]
    %v315 = vld [vmem:[#allocation15 + $0x74] sm:$0xf]
    %v316 = vld [vmem:[#allocation15 + $0x78] sm:$0xff]
    %v317 = vld [vmem:[#allocation15 + $0x80] sm:$0xf]
    %v318 = vld [vmem:[#allocation15 + $0x84] sm:$0xff]
    %v319 = vld [vmem:[#allocation15 + $0x8c] sm:$0xf]
    %v320 = vld [vmem:[#allocation15 + $0x90] sm:$0xff]
    %v321 = vld [vmem:[#allocation15 + $0x98] sm:$0xf]
    %v322 = vld [vmem:[#allocation15 + $0x9c] sm:$0xff]
    %v323 = vld [vmem:[#allocation15 + $0xa4] sm:$0xf]
    %v324 = vld [vmem:[#allocation15 + $0xa8] sm:$0xff]
    %v325 = vld [vmem:[#allocation15 + $0xb0] sm:$0xf]
    %v326 = vld [vmem:[#allocation15 + $0xb4] sm:$0xff]
    %v327 = vld [vmem:[#allocation15 + $0xbc] sm:$0xf]
    %v328 = vld [vmem:[%s7] sm:$0x7]
    %v330 = vlaneseq
    %v331 = vshrl.u32 %v330, 7
    %v332 = vsub.s32 0, %v331
    %v333 = vrot.slane %v328, %v332
    %v334 = vlaneseq
    %v335 = vshrl.u32 %v334, 7
    %v336 = vsub.s32 1, %v335
    %v337 = vrot.slane %v328, %v336
    %v338 = vlaneseq
    %v339 = vshrl.u32 %v338, 7
    %v340 = vsub.s32 2, %v339
    %v341 = vrot.slane %v328, %v340
    %v377 = vunpack.c.l.b16 %v296
    %v378 = vunpack.c.h.b16 %v296
    %v379 = vunpack.c.l.b16 %v297
    %v380 = vunpack.c.l.b16 %v298
    %v381 = vunpack.c.h.b16 %v298
    %v382 = vunpack.c.l.b16 %v299
    %v383 = vunpack.c.l.b16 %v300
    %v384 = vunpack.c.h.b16 %v300
    %v385 = vunpack.c.l.b16 %v301
    %v386 = vunpack.c.l.b16 %v302
    %v387 = vunpack.c.h.b16 %v302
    %v388 = vunpack.c.l.b16 %v303
    %v389 = vunpack.c.l.b16 %v304
    %v390 = vunpack.c.h.b16 %v304
    %v391 = vunpack.c.l.b16 %v305
    %v392 = vunpack.c.l.b16 %v306
    %v393 = vunpack.c.h.b16 %v306
    %v394 = vunpack.c.l.b16 %v307
    %v395 = vunpack.c.l.b16 %v308
    %v396 = vunpack.c.h.b16 %v308
    %v397 = vunpack.c.l.b16 %v309
    %v398 = vunpack.c.l.b16 %v310
    %v399 = vunpack.c.h.b16 %v310
    %v400 = vunpack.c.l.b16 %v311
    %v401 = vunpack.c.l.b16 %v312
    %v402 = vunpack.c.h.b16 %v312
    %v403 = vunpack.c.l.b16 %v313
    %v404 = vunpack.c.l.b16 %v314
    %v405 = vunpack.c.h.b16 %v314
    %v406 = vunpack.c.l.b16 %v315
    %v407 = vunpack.c.l.b16 %v316
    %v408 = vunpack.c.h.b16 %v316
    %v409 = vunpack.c.l.b16 %v317
    %v410 = vunpack.c.l.b16 %v318
    %v411 = vunpack.c.h.b16 %v318
    %v412 = vunpack.c.l.b16 %v319
    %v413 = vunpack.c.l.b16 %v320
    %v414 = vunpack.c.h.b16 %v320
    %v415 = vunpack.c.l.b16 %v321
    %v416 = vunpack.c.l.b16 %v322
    %v417 = vunpack.c.h.b16 %v322
    %v418 = vunpack.c.l.b16 %v323
    %v419 = vunpack.c.l.b16 %v324
    %v420 = vunpack.c.h.b16 %v324
    %v421 = vunpack.c.l.b16 %v325
    %v422 = vunpack.c.l.b16 %v326
    %v423 = vunpack.c.h.b16 %v326
    %v424 = vunpack.c.l.b16 %v327
    %v425 = vpack.c.b16 %v380, %v377
    %v426 = vpack.c.b16 %v381, %v378
    %v427 = vpack.c.b16 %v382, %v379
    %v428 = vpack.c.b16 %v386, %v383
    %v429 = vpack.c.b16 %v387, %v384
    %v430 = vpack.c.b16 %v388, %v385
    %v431 = vpack.c.b16 %v392, %v389
    %v432 = vpack.c.b16 %v393, %v390
    %v433 = vpack.c.b16 %v394, %v391
    %v434 = vpack.c.b16 %v398, %v395
    %v435 = vpack.c.b16 %v399, %v396
    %v436 = vpack.c.b16 %v400, %v397
    %v437 = vpack.c.b16 %v404, %v401
    %v438 = vpack.c.b16 %v405, %v402
    %v439 = vpack.c.b16 %v406, %v403
    %v440 = vpack.c.b16 %v410, %v407
    %v441 = vpack.c.b16 %v411, %v408
    %v442 = vpack.c.b16 %v412, %v409
    %v443 = vpack.c.b16 %v416, %v413
    %v444 = vpack.c.b16 %v417, %v414
    %v445 = vpack.c.b16 %v418, %v415
    %v446 = vpack.c.b16 %v422, %v419
    %v447 = vpack.c.b16 %v423, %v420
    %v448 = vpack.c.b16 %v424, %v421
    %473 = vmatprep.subr.bf16.mxu0 %v447
    %474 = vmatpush1.bf16.msra.mxu0 %v446
    %475 = vmatprep.subr.bf16.mxu0 %v444
    %476 = vmatpush1.bf16.msra.mxu0 %v443
    %477 = vmatprep.subr.bf16.mxu0 %v441
    %478 = vmatpush1.bf16.msra.mxu0 %v440
    %479 = vmatprep.subr.bf16.mxu0 %v438
    %480 = vmatpush1.bf16.msra.mxu0 %v437
    %481 = vmatprep.subr.bf16.mxu0 %v435
    %482 = vmatpush1.bf16.msra.mxu0 %v434
    %483 = vmatprep.subr.bf16.mxu0 %v432
    %484 = vmatpush1.bf16.msra.mxu0 %v431
    %485 = vmatprep.subr.bf16.mxu0 %v429
    %486 = vmatpush1.bf16.msra.mxu0 %v428
    %487 = vmatprep.subr.bf16.mxu0 %v426
    %488 = vmatpush1.bf16.msra.mxu0 %v425
    %489 = vmatprep.subr.bf16.mxu0 0
    %490 = vmatpush2.bf16.msra.mxu0 0
    %491 = vmatprep.subr.bf16.mxu0 0
    %492 = vmatpush2.bf16.msra.mxu0 0
    %493 = vmatprep.subr.bf16.mxu0 0
    %494 = vmatpush2.bf16.msra.mxu0 0
    %495 = vmatprep.subr.bf16.mxu0 0
    %496 = vmatpush2.bf16.msra.mxu0 0
    %497 = vmatprep.subr.bf16.mxu0 0
    %498 = vmatpush2.bf16.msra.mxu0 0
    %499 = vmatprep.subr.bf16.mxu0 0
    %500 = vmatpush2.bf16.msra.mxu0 0
    %501 = vmatprep.subr.bf16.mxu0 0
    %502 = vmatpush2.bf16.msra.mxu0 0
    %503 = vmatprep.subr.bf16.mxu0 0
    %504 = vmatpush2.bf16.msra.mxu0 0
    %505 = vmatprep.mubr.bf16.mxu0 0
    %506 = vmatmul.mubr.bf16.gmra.mxu0 %v295
    %v507 = vpop.f32.mrf.mxu0
    %v508 = vadd.f32 %v333, %v507
    %v509 = vpop.f32.mrf.mxu0
    %v510 = vadd.f32 %v337, %v509
    %v511 = vpop.f32.mrf.mxu0
    %v512 = vadd.f32 %v333, %v511
    %v513 = vpop.f32.mrf.mxu0
    %v514 = vadd.f32 %v337, %v513
    %515 = vdwg.mxu0
    %516 = vmatprep.subr.bf16.mxu0 0
    %517 = vmatpush1.bf16.msra.mxu0 %v448
    %518 = vmatprep.subr.bf16.mxu0 0
    %519 = vmatpush1.bf16.msra.mxu0 %v445
    %520 = vmatprep.subr.bf16.mxu0 0
    %521 = vmatpush1.bf16.msra.mxu0 %v442
    %522 = vmatprep.subr.bf16.mxu0 0
    %523 = vmatpush1.bf16.msra.mxu0 %v439
    %524 = vmatprep.subr.bf16.mxu0 0
    %525 = vmatpush1.bf16.msra.mxu0 %v436
    %526 = vmatprep.subr.bf16.mxu0 0
    %527 = vmatpush1.bf16.msra.mxu0 %v433
    %528 = vmatprep.subr.bf16.mxu0 0
    %529 = vmatpush1.bf16.msra.mxu0 %v430
    %530 = vmatprep.subr.bf16.mxu0 0
    %531 = vmatpush1.bf16.msra.mxu0 %v427
    %532 = vmatprep.subr.bf16.mxu0 0
    %533 = vmatpush2.bf16.msra.mxu0 0
    %534 = vmatprep.subr.bf16.mxu0 0
    %535 = vmatpush2.bf16.msra.mxu0 0
    %536 = vmatprep.subr.bf16.mxu0 0
    %537 = vmatpush2.bf16.msra.mxu0 0
    %538 = vmatprep.subr.bf16.mxu0 0
    %539 = vmatpush2.bf16.msra.mxu0 0
    %540 = vmatprep.subr.bf16.mxu0 0
    %541 = vmatpush2.bf16.msra.mxu0 0
    %542 = vmatprep.subr.bf16.mxu0 0
    %543 = vmatpush2.bf16.msra.mxu0 0
    %544 = vmatprep.subr.bf16.mxu0 0
    %545 = vmatpush2.bf16.msra.mxu0 0
    %546 = vmatprep.subr.bf16.mxu0 0
    %547 = vmatpush2.bf16.msra.mxu0 0
    %548 = vmatprep.mubr.bf16.mxu0 0
    %549 = vmatmul.mubr.bf16.gmra.mxu0 %v295
    %v550 = vpop.f32.mrf.mxu0
    %v551 = vadd.f32 %v341, %v550
    %v552 = vpop.f32.mrf.mxu0
    %v553 = vpop.f32.mrf.mxu0
    %v554 = vadd.f32 %v341, %v553
    %v555 = vpop.f32.mrf.mxu0
    %556 = vdwg.mxu0
    %v557 = vmul.f32 %v510, %v279
    %v558 = vmul.f32 %v514, %v280
    %v559 = vmul.f32 %v510, %v281
    %v560 = vmul.f32 %v514, %v282
    %v561 = vmul.f32 %v510, %v283
    %v562 = vmul.f32 %v514, %v284
    %v563 = vmul.f32 %v510, %v285
    %v564 = vmul.f32 %v514, %v286
    %v565 = vpack.c.bf16 %v558, %v557
    %v566 = vpack.c.bf16 %v560, %v559
    %v567 = vpack.c.bf16 %v562, %v561
    %v568 = vpack.c.bf16 %v564, %v563
    %v569 = vmul.f32 %v551, %v279
    %v570 = vmul.f32 %v554, %v280
    %v571 = vmul.f32 %v551, %v281
    %v572 = vmul.f32 %v554, %v282
    %v573 = vmul.f32 %v551, %v283
    %v574 = vmul.f32 %v554, %v284
    %v575 = vmul.f32 %v551, %v285
    %v576 = vmul.f32 %v554, %v286
    %v577 = vpack.c.bf16 %v570, %v569
    %v578 = vpack.c.bf16 %v572, %v571
    %v579 = vpack.c.bf16 %v574, %v573
    %v580 = vpack.c.bf16 %v576, %v575
    %v581 = vpack.c.bf16 %v512, %v508
    %582 = vmatprep.subr.bf16.mxu0 0
    %583 = vmatpush1.bf16.xpose.msra.mxu0 0
    %584 = vmatprep.subr.bf16.mxu0 0
    %585 = vmatpush1.bf16.xpose.msra.mxu0 0
    %586 = vmatprep.subr.bf16.mxu0 0
    %587 = vmatpush1.bf16.xpose.msra.mxu0 0
    %588 = vmatprep.subr.bf16.mxu0 0
    %589 = vmatpush1.bf16.xpose.msra.mxu0 0
    %590 = vmatprep.subr.bf16.mxu0 0
    %591 = vmatpush1.bf16.xpose.msra.mxu0 %v568
    %592 = vmatprep.subr.bf16.mxu0 0
    %593 = vmatpush1.bf16.xpose.msra.mxu0 %v567
    %594 = vmatprep.subr.bf16.mxu0 0
    %595 = vmatpush1.bf16.xpose.msra.mxu0 %v566
    %596 = vmatprep.subr.bf16.mxu0 0
    %597 = vmatpush1.bf16.xpose.msra.mxu0 %v565
    %598 = vmatprep.subr.bf16.mxu0 0
    %599 = vmatpush2.bf16.xpose.msra.mxu0 0
    %600 = vmatprep.subr.bf16.mxu0 0
    %601 = vmatpush2.bf16.xpose.msra.mxu0 0
    %602 = vmatprep.subr.bf16.mxu0 0
    %603 = vmatpush2.bf16.xpose.msra.mxu0 0
    %604 = vmatprep.subr.bf16.mxu0 0
    %605 = vmatpush2.bf16.xpose.msra.mxu0 0
    %606 = vmatprep.subr.bf16.mxu0 0
    %607 = vmatpush2.bf16.xpose.msra.mxu0 0
    %608 = vmatprep.subr.bf16.mxu0 0
    %609 = vmatpush2.bf16.xpose.msra.mxu0 0
    %610 = vmatprep.subr.bf16.mxu0 0
    %611 = vmatpush2.bf16.xpose.msra.mxu0 0
    %612 = vmatprep.subr.bf16.mxu0 0
    %613 = vmatpush2.bf16.xpose.msra.mxu0 0
    %614 = vmatprep.mubr.bf16.mxu0 0
    %615 = vmatmul.mubr.bf16.gmra.mxu0 %v581
    %v616 = vpop.f32.mrf.mxu0
    %v617 = vadd.f32 %v277, %v616
    %v618 = vpop.f32.mrf.mxu0
    %v619 = vpop.f32.mrf.mxu0
    %v620 = vadd.f32 %v278, %v619
    %v621 = vpop.f32.mrf.mxu0
    %622 = vdwg.mxu0
    %vm623 = vcmask 523264
    %v624 = vsel %vm623, %v617, -inf
    %625 = vmax.xlane.f32.xlu0 %v624
    %v626 = vpop.xlane.xlu0 %625
    %v627 = vsel %vm623, %v620, -inf
    %628 = vmax.xlane.f32.xlu0 %v627
    %v629 = vpop.xlane.xlu0 %628
    %v630 = vsub.f32 %v617, %v626
    %v631 = vsub.f32 %v620, %v629
    %v632 = vmul.f32 %v630, 1.442695
    %v633 = vpow.pop %v632
    %v634 = vmul.f32 %v631, 1.442695
    %v635 = vpow.pop %v634
    %v637 = vsel %vm623, %v633, 0
    %v640 = vsel %vm623, %v635, 0
    %642 = vmatprep.subr.mxu0 0.0
    %643 = vmatpush1.msra.mxu0 0.0
    %644 = vmatprep.subr.mxu0 0.0
    %645 = vmatpush1.msra.mxu0 0.0
    %646 = vmatprep.subr.mxu0 0.0
    %647 = vmatpush1.msra.mxu0 0.0
    %648 = vmatprep.subr.mxu0 0.0
    %649 = vmatpush1.msra.mxu0 0.0
    %650 = vmatprep.subr.mxu0 0.0
    %651 = vmatpush1.msra.mxu0 0.0
    %652 = vmatprep.subr.mxu0 0.0
    %653 = vmatpush1.msra.mxu0 0.0
    %654 = vmatprep.subr.mxu0 0.0
    %655 = vmatpush1.msra.mxu0 0.0
    %656 = vmatprep.subr.mxu0 0.0
    %657 = vmatpush1.msra.mxu0 0.0
    %658 = vmatprep.subr.mxu0 0.0
    %659 = vmatpush1.msra.mxu0 %v294
    %660 = vmatprep.subr.mxu0 0.0
    %661 = vmatpush1.msra.mxu0 %v293
    %662 = vmatprep.subr.mxu0 0.0
    %663 = vmatpush1.msra.mxu0 %v292
    %664 = vmatprep.subr.mxu0 0.0
    %665 = vmatpush1.msra.mxu0 %v291
    %666 = vmatprep.subr.mxu0 0.0
    %667 = vmatpush1.msra.mxu0 %v290
    %668 = vmatprep.subr.mxu0 0.0
    %669 = vmatpush1.msra.mxu0 %v289
    %670 = vmatprep.subr.mxu0 0.0
    %671 = vmatpush1.msra.mxu0 %v288
    %672 = vmatprep.subr.mxu0 0.0
    %673 = vmatpush1.msra.mxu0 %v287
    %674 = vmatprep.subr.mxu0 0.0
    %675 = vmatpush2.msra.mxu0 0.0
    %676 = vmatprep.subr.mxu0 0.0
    %677 = vmatpush2.msra.mxu0 0.0
    %678 = vmatprep.subr.mxu0 0.0
    %679 = vmatpush2.msra.mxu0 0.0
    %680 = vmatprep.subr.mxu0 0.0
    %681 = vmatpush2.msra.mxu0 0.0
    %682 = vmatprep.subr.mxu0 0.0
    %683 = vmatpush2.msra.mxu0 0.0
    %684 = vmatprep.subr.mxu0 0.0
    %685 = vmatpush2.msra.mxu0 0.0
    %686 = vmatprep.subr.mxu0 0.0
    %687 = vmatpush2.msra.mxu0 0.0
    %688 = vmatprep.subr.mxu0 0.0
    %689 = vmatpush2.msra.mxu0 0.0
    %690 = vmatprep.subr.mxu0 0.0
    %691 = vmatpush2.msra.mxu0 0.0
    %692 = vmatprep.subr.mxu0 0.0
    %693 = vmatpush2.msra.mxu0 0.0
    %694 = vmatprep.subr.mxu0 0.0
    %695 = vmatpush2.msra.mxu0 0.0
    %696 = vmatprep.subr.mxu0 0.0
    %697 = vmatpush2.msra.mxu0 0.0
    %698 = vmatprep.subr.mxu0 0.0
    %699 = vmatpush2.msra.mxu0 0.0
    %700 = vmatprep.subr.mxu0 0.0
    %701 = vmatpush2.msra.mxu0 0.0
    %702 = vmatprep.subr.mxu0 0.0
    %703 = vmatpush2.msra.mxu0 0.0
    %704 = vmatprep.subr.mxu0 0.0
    %705 = vmatpush2.msra.mxu0 0.0
    %706 = vmatprep.mubr.f32.mxu0 0.0
    %707 = vmatmul.mubr.f32.gmra.mxu0 %v637
    %v708 = vpop.f32.mrf.mxu0
    %v709 = vadd.f32 0.0, %v708
    %v710 = vpop.f32.mrf.mxu0
    %711 = vmatprep.mubr.f32.mxu0 0.0
    %712 = vmatmul.mubr.f32.gmra.mxu0 %v640
    %v713 = vpop.f32.mrf.mxu0
    %v714 = vadd.f32 0.0, %v713
    %v715 = vpop.f32.mrf.mxu0
    %716 = vdwg.mxu0
    %v717 = vrcp.pop %v709
    %v718 = vrcp.pop %v714
    %v719 = vmul.f32 %v633, %v717
    %v720 = vmul.f32 %v635, %v718
    %v721 = vpack.c.bf16 %v720, %v719
    %v723 = vsel %vm623, %v721, 0
    %725 = vmatprep.subr.bf16.mxu0 0
    %726 = vmatpush1.bf16.msra.mxu0 0
    %727 = vmatprep.subr.bf16.mxu0 0
    %728 = vmatpush1.bf16.msra.mxu0 0
    %729 = vmatprep.subr.bf16.mxu0 0
    %730 = vmatpush1.bf16.msra.mxu0 0
    %731 = vmatprep.subr.bf16.mxu0 0
    %732 = vmatpush1.bf16.msra.mxu0 0
    %733 = vmatprep.subr.bf16.mxu0 0
    %734 = vmatpush1.bf16.msra.mxu0 %v580
    %735 = vmatprep.subr.bf16.mxu0 0
    %736 = vmatpush1.bf16.msra.mxu0 %v579
    %737 = vmatprep.subr.bf16.mxu0 0
    %738 = vmatpush1.bf16.msra.mxu0 %v578
    %739 = vmatprep.subr.bf16.mxu0 0
    %740 = vmatpush1.bf16.msra.mxu0 %v577
    %741 = vmatprep.subr.bf16.mxu0 0
    %742 = vmatpush2.bf16.msra.mxu0 0
    %743 = vmatprep.subr.bf16.mxu0 0
    %744 = vmatpush2.bf16.msra.mxu0 0
    %745 = vmatprep.subr.bf16.mxu0 0
    %746 = vmatpush2.bf16.msra.mxu0 0
    %747 = vmatprep.subr.bf16.mxu0 0
    %748 = vmatpush2.bf16.msra.mxu0 0
    %749 = vmatprep.subr.bf16.mxu0 0
    %750 = vmatpush2.bf16.msra.mxu0 0
    %751 = vmatprep.subr.bf16.mxu0 0
    %752 = vmatpush2.bf16.msra.mxu0 0
    %753 = vmatprep.subr.bf16.mxu0 0
    %754 = vmatpush2.bf16.msra.mxu0 0
    %755 = vmatprep.subr.bf16.mxu0 0
    %756 = vmatpush2.bf16.msra.mxu0 0
    %757 = vmatprep.mubr.bf16.mxu0 0
    %758 = vmatmul.mubr.bf16.gmra.mxu0 %v723
    %v759 = vpop.f32.mrf.mxu0
    %v760 = vadd.f32 0.0, %v759
    %v761 = vpop.f32.mrf.mxu0
    %v762 = vpop.f32.mrf.mxu0
    %v763 = vadd.f32 0.0, %v762
    %v764 = vpop.f32.mrf.mxu0
    %765 = vdwg.mxu0
    %v766 = vpack.c.bf16 %v763, %v760
    %v767 = vld [vmem:[#allocation16] sm:$0xf]
    %v768 = vld [vmem:[#allocation16 + $0x4] sm:$0xf]
    %v769 = vld [vmem:[#allocation16 + $0x8] sm:$0xf]
    %v770 = vld [vmem:[#allocation16 + $0xc] sm:$0xf]
    %v771 = vld [vmem:[#allocation16 + $0x10] sm:$0xf]
    %v772 = vld [vmem:[#allocation16 + $0x14] sm:$0xf]
    %v773 = vld [vmem:[#allocation16 + $0x18] sm:$0xf]
    %v774 = vld [vmem:[#allocation16 + $0x1c] sm:$0xf]
    %v775 = vld [vmem:[#allocation16 + $0x20] sm:$0xf]
    %v776 = vld [vmem:[#allocation16 + $0x24] sm:$0xf]
    %v777 = vld [vmem:[#allocation16 + $0x28] sm:$0xf]
    %v778 = vld [vmem:[#allocation16 + $0x2c] sm:$0xf]
    %v779 = vld [vmem:[#allocation16 + $0x30] sm:$0xf]
    %v780 = vld [vmem:[#allocation16 + $0x34] sm:$0xf]
    %v781 = vld [vmem:[#allocation16 + $0x38] sm:$0xf]
    %v782 = vld [vmem:[#allocation16 + $0x3c] sm:$0xf]
    %v783 = vld [vmem:[#allocation18] sm:$0x1]
    %v785 = vlaneseq
    %v786 = vshrl.u32 %v785, 7
    %v787 = vsub.s32 0, %v786
    %v788 = vrot.slane %v783, %v787
    %v806 = vunpack.c.l.b16 %v767
    %v807 = vunpack.c.l.b16 %v768
    %v808 = vunpack.c.l.b16 %v769
    %v809 = vunpack.c.l.b16 %v770
    %v810 = vunpack.c.l.b16 %v771
    %v811 = vunpack.c.l.b16 %v772
    %v812 = vunpack.c.l.b16 %v773
    %v813 = vunpack.c.l.b16 %v774
    %v814 = vunpack.c.l.b16 %v775
    %v815 = vunpack.c.l.b16 %v776
    %v816 = vunpack.c.l.b16 %v777
    %v817 = vunpack.c.l.b16 %v778
    %v818 = vunpack.c.l.b16 %v779
    %v819 = vunpack.c.l.b16 %v780
    %v820 = vunpack.c.l.b16 %v781
    %v821 = vunpack.c.l.b16 %v782
    %v822 = vpack.c.b16 %v807, %v806
    %v823 = vpack.c.b16 %v809, %v808
    %v824 = vpack.c.b16 %v811, %v810
    %v825 = vpack.c.b16 %v813, %v812
    %v826 = vpack.c.b16 %v815, %v814
    %v827 = vpack.c.b16 %v817, %v816
    %v828 = vpack.c.b16 %v819, %v818
    %v829 = vpack.c.b16 %v821, %v820
    %838 = vmatprep.subr.bf16.mxu0 0
    %839 = vmatpush1.bf16.msra.mxu0 %v829
    %840 = vmatprep.subr.bf16.mxu0 0
    %841 = vmatpush1.bf16.msra.mxu0 %v828
    %842 = vmatprep.subr.bf16.mxu0 0
    %843 = vmatpush1.bf16.msra.mxu0 %v827
    %844 = vmatprep.subr.bf16.mxu0 0
    %845 = vmatpush1.bf16.msra.mxu0 %v826
    %846 = vmatprep.subr.bf16.mxu0 0
    %847 = vmatpush1.bf16.msra.mxu0 %v825
    %848 = vmatprep.subr.bf16.mxu0 0
    %849 = vmatpush1.bf16.msra.mxu0 %v824
    %850 = vmatprep.subr.bf16.mxu0 0
    %851 = vmatpush1.bf16.msra.mxu0 %v823
    %852 = vmatprep.subr.bf16.mxu0 0
    %853 = vmatpush1.bf16.msra.mxu0 %v822
    %854 = vmatprep.subr.bf16.mxu0 0
    %855 = vmatpush2.bf16.msra.mxu0 0
    %856 = vmatprep.subr.bf16.mxu0 0
    %857 = vmatpush2.bf16.msra.mxu0 0
    %858 = vmatprep.subr.bf16.mxu0 0
    %859 = vmatpush2.bf16.msra.mxu0 0
    %860 = vmatprep.subr.bf16.mxu0 0
    %861 = vmatpush2.bf16.msra.mxu0 0
    %862 = vmatprep.subr.bf16.mxu0 0
    %863 = vmatpush2.bf16.msra.mxu0 0
    %864 = vmatprep.subr.bf16.mxu0 0
    %865 = vmatpush2.bf16.msra.mxu0 0
    %866 = vmatprep.subr.bf16.mxu0 0
    %867 = vmatpush2.bf16.msra.mxu0 0
    %868 = vmatprep.subr.bf16.mxu0 0
    %869 = vmatpush2.bf16.msra.mxu0 0
    %870 = vmatprep.mubr.bf16.mxu0 0
    %871 = vmatmul.mubr.bf16.gmra.mxu0 %v766
    %v872 = vpop.f32.mrf.mxu0
    %v873 = vadd.f32 %v788, %v872
    %v874 = vpop.f32.mrf.mxu0
    %v875 = vpop.f32.mrf.mxu0
    %v876 = vadd.f32 %v788, %v875
    %v877 = vpop.f32.mrf.mxu0
    %878 = vdwg.mxu0
    %v879 = vadd.f32 %v275, %v873
    %v880 = vadd.f32 %v276, %v876
    %v881 = vld [vmem:[#allocation19] sm:$0x1]
    %v882 = vld [vmem:[%s11] sm:$0x1]
    %883 = vadd.xlane.f32.xlu0 %v879
    %v884 = vpop.xlane.xlu0 %883
    %885 = vadd.xlane.f32.xlu0 %v880
    %v886 = vpop.xlane.xlu0 %885
    %v887 = vmul.f32 %v884, %v242
    %v888 = vmul.f32 %v886, %v242
    %v889 = vsub.f32 %v879, %v887
    %v890 = vsub.f32 %v880, %v888
    %v891 = vmul.f32 %v889, %v889
    %v892 = vmul.f32 %v890, %v890
    %893 = vadd.xlane.f32.xlu0 %v891
    %v894 = vpop.xlane.xlu0 %893
    %895 = vadd.xlane.f32.xlu0 %v892
    %v896 = vpop.xlane.xlu0 %895
    %v897 = vmul.f32 %v894, %v242
    %v898 = vmul.f32 %v896, %v242
    %v899 = vadd.f32 %v897, 1e-12
    %v900 = vadd.f32 %v898, 1e-12
    %v901 = vrsqrt.pop %v899
    %v902 = vrsqrt.pop %v900
    %v903 = vmul.f32 %v889, %v901
    %v904 = vmul.f32 %v890, %v902
    %v906 = vlaneseq
    %v907 = vshrl.u32 %v906, 7
    %v908 = vsub.s32 0, %v907
    %v909 = vrot.slane %v881, %v908
    %v911 = vmul.f32 %v903, %v909
    %v912 = vmul.f32 %v904, %v909
    %v914 = vlaneseq
    %v915 = vshrl.u32 %v914, 7
    %v916 = vsub.s32 0, %v915
    %v917 = vrot.slane %v882, %v916
    %v919 = vadd.f32 %v911, %v917
    %v920 = vadd.f32 %v912, %v917
    %v921 = vpack.c.bf16 %v920, %v919
    %v922 = vld [vmem:[#allocation21] sm:$0xff]
    %v923 = vld [vmem:[#allocation21 + $0x8] sm:$0xff]
    %v924 = vld [vmem:[#allocation21 + $0x10] sm:$0xff]
    %v925 = vld [vmem:[#allocation21 + $0x18] sm:$0xff]
    %v926 = vld [vmem:[#allocation21 + $0x20] sm:$0xff]
    %v927 = vld [vmem:[#allocation21 + $0x28] sm:$0xff]
    %v928 = vld [vmem:[#allocation21 + $0x30] sm:$0xff]
    %v929 = vld [vmem:[#allocation21 + $0x38] sm:$0xff]
    %v930 = vld [vmem:[#allocation21 + $0x40] sm:$0xff]
    %v931 = vld [vmem:[#allocation21 + $0x48] sm:$0xff]
    %v932 = vld [vmem:[#allocation21 + $0x50] sm:$0xff]
    %v933 = vld [vmem:[#allocation21 + $0x58] sm:$0xff]
    %v934 = vld [vmem:[#allocation21 + $0x60] sm:$0xff]
    %v935 = vld [vmem:[#allocation21 + $0x68] sm:$0xff]
    %v936 = vld [vmem:[#allocation21 + $0x70] sm:$0xff]
    %v937 = vld [vmem:[#allocation21 + $0x78] sm:$0xff]
    %v938 = vld [vmem:[%s13] sm:$0x3]
    %v940 = vlaneseq
    %v941 = vshrl.u32 %v940, 7
    %v942 = vsub.s32 0, %v941
    %v943 = vrot.slane %v938, %v942
    %v944 = vlaneseq
    %v945 = vshrl.u32 %v944, 7
    %v946 = vsub.s32 1, %v945
    %v947 = vrot.slane %v938, %v946
    %v966 = vunpack.c.l.b16 %v922
    %v967 = vunpack.c.h.b16 %v922
    %v968 = vunpack.c.l.b16 %v923
    %v969 = vunpack.c.h.b16 %v923
    %v970 = vunpack.c.l.b16 %v924
    %v971 = vunpack.c.h.b16 %v924
    %v972 = vunpack.c.l.b16 %v925
    %v973 = vunpack.c.h.b16 %v925
    %v974 = vunpack.c.l.b16 %v926
    %v975 = vunpack.c.h.b16 %v926
    %v976 = vunpack.c.l.b16 %v927
    %v977 = vunpack.c.h.b16 %v927
    %v978 = vunpack.c.l.b16 %v928
    %v979 = vunpack.c.h.b16 %v928
    %v980 = vunpack.c.l.b16 %v929
    %v981 = vunpack.c.h.b16 %v929
    %v982 = vunpack.c.l.b16 %v930
    %v983 = vunpack.c.h.b16 %v930
    %v984 = vunpack.c.l.b16 %v931
    %v985 = vunpack.c.h.b16 %v931
    %v986 = vunpack.c.l.b16 %v932
    %v987 = vunpack.c.h.b16 %v932
    %v988 = vunpack.c.l.b16 %v933
    %v989 = vunpack.c.h.b16 %v933
    %v990 = vunpack.c.l.b16 %v934
    %v991 = vunpack.c.h.b16 %v934
    %v992 = vunpack.c.l.b16 %v935
    %v993 = vunpack.c.h.b16 %v935
    %v994 = vunpack.c.l.b16 %v936
    %v995 = vunpack.c.h.b16 %v936
    %v996 = vunpack.c.l.b16 %v937
    %v997 = vunpack.c.h.b16 %v937
    %v998 = vpack.c.b16 %v968, %v966
    %v999 = vpack.c.b16 %v969, %v967
    %v1000 = vpack.c.b16 %v972, %v970
    %v1001 = vpack.c.b16 %v973, %v971
    %v1002 = vpack.c.b16 %v976, %v974
    %v1003 = vpack.c.b16 %v977, %v975
    %v1004 = vpack.c.b16 %v980, %v978
    %v1005 = vpack.c.b16 %v981, %v979
    %v1006 = vpack.c.b16 %v984, %v982
    %v1007 = vpack.c.b16 %v985, %v983
    %v1008 = vpack.c.b16 %v988, %v986
    %v1009 = vpack.c.b16 %v989, %v987
    %v1010 = vpack.c.b16 %v992, %v990
    %v1011 = vpack.c.b16 %v993, %v991
    %v1012 = vpack.c.b16 %v996, %v994
    %v1013 = vpack.c.b16 %v997, %v995
    %1030 = vmatprep.subr.bf16.mxu0 %v1013
    %1031 = vmatpush1.bf16.msra.mxu0 %v1012
    %1032 = vmatprep.subr.bf16.mxu0 %v1011
    %1033 = vmatpush1.bf16.msra.mxu0 %v1010
    %1034 = vmatprep.subr.bf16.mxu0 %v1009
    %1035 = vmatpush1.bf16.msra.mxu0 %v1008
    %1036 = vmatprep.subr.bf16.mxu0 %v1007
    %1037 = vmatpush1.bf16.msra.mxu0 %v1006
    %1038 = vmatprep.subr.bf16.mxu0 %v1005
    %1039 = vmatpush1.bf16.msra.mxu0 %v1004
    %1040 = vmatprep.subr.bf16.mxu0 %v1003
    %1041 = vmatpush1.bf16.msra.mxu0 %v1002
    %1042 = vmatprep.subr.bf16.mxu0 %v1001
    %1043 = vmatpush1.bf16.msra.mxu0 %v1000
    %1044 = vmatprep.subr.bf16.mxu0 %v999
    %1045 = vmatpush1.bf16.msra.mxu0 %v998
    %1046 = vmatprep.subr.bf16.mxu0 0
    %1047 = vmatpush2.bf16.msra.mxu0 0
    %1048 = vmatprep.subr.bf16.mxu0 0
    %1049 = vmatpush2.bf16.msra.mxu0 0
    %1050 = vmatprep.subr.bf16.mxu0 0
    %1051 = vmatpush2.bf16.msra.mxu0 0
    %1052 = vmatprep.subr.bf16.mxu0 0
    %1053 = vmatpush2.bf16.msra.mxu0 0
    %1054 = vmatprep.subr.bf16.mxu0 0
    %1055 = vmatpush2.bf16.msra.mxu0 0
    %1056 = vmatprep.subr.bf16.mxu0 0
    %1057 = vmatpush2.bf16.msra.mxu0 0
    %1058 = vmatprep.subr.bf16.mxu0 0
    %1059 = vmatpush2.bf16.msra.mxu0 0
    %1060 = vmatprep.subr.bf16.mxu0 0
    %1061 = vmatpush2.bf16.msra.mxu0 0
    %1062 = vmatprep.mubr.bf16.mxu0 0
    %1063 = vmatmul.mubr.bf16.gmra.mxu0 %v921
    %v1064 = vpop.f32.mrf.mxu0
    %v1065 = vadd.f32 %v943, %v1064
    %v1066 = vpop.f32.mrf.mxu0
    %v1067 = vadd.f32 %v947, %v1066
    %v1068 = vpop.f32.mrf.mxu0
    %v1069 = vadd.f32 %v943, %v1068
    %v1070 = vpop.f32.mrf.mxu0
    %v1071 = vadd.f32 %v947, %v1070
    %1072 = vdwg.mxu0
    %v1073 = vmul.f32 %v1065, 0.5
    %v1074 = vmul.f32 %v1067, 0.5
    %v1075 = vmul.f32 %v1069, 0.5
    %v1076 = vmul.f32 %v1071, 0.5
    %v1077 = vmul.f32 %v1065, 0.70710677
    %v1078 = vmul.f32 %v1067, 0.70710677
    %v1079 = vmul.f32 %v1069, 0.70710677
    %v1080 = vmul.f32 %v1071, 0.70710677
    %vm1081 = vcmp.ge.f32.partialorder %v1077, 0.0
    %vm1082 = vcmp.ge.f32.partialorder %v1078, 0.0
    %vm1083 = vcmp.ge.f32.partialorder %v1079, 0.0
    %vm1084 = vcmp.ge.f32.partialorder %v1080, 0.0
    %v1085 = vsel %vm1081, 1.0, -1.0
    %v1086 = vsel %vm1082, 1.0, -1.0
    %v1087 = vsel %vm1083, 1.0, -1.0
    %v1088 = vsel %vm1084, 1.0, -1.0
    %v1089 = vand.u32 2147483647, %v1077
    %v1090 = vand.u32 2147483647, %v1078
    %v1091 = vand.u32 2147483647, %v1079
    %v1092 = vand.u32 2147483647, %v1080
    %v1093 = vmul.f32 %v1089, 0.3275911
    %v1094 = vmul.f32 %v1090, 0.3275911
    %v1095 = vmul.f32 %v1091, 0.3275911
    %v1096 = vmul.f32 %v1092, 0.3275911
    %v1097 = vadd.f32 %v1093, 1.0
    %v1098 = vadd.f32 %v1094, 1.0
    %v1099 = vadd.f32 %v1095, 1.0
    %v1100 = vadd.f32 %v1096, 1.0
    %v1101 = vrcp.pop %v1097
    %v1102 = vmul.f32 1.0, %v1101
    %v1103 = vrcp.pop %v1098
    %v1104 = vmul.f32 1.0, %v1103
    %v1105 = vrcp.pop %v1099
    %v1106 = vmul.f32 1.0, %v1105
    %v1107 = vrcp.pop %v1100
    %v1108 = vmul.f32 1.0, %v1107
    %v1109 = vmul.f32 %v1102, 1.0614054
    %v1110 = vmul.f32 %v1104, 1.0614054
    %v1111 = vmul.f32 %v1106, 1.0614054
    %v1112 = vmul.f32 %v1108, 1.0614054
    %v1113 = vadd.f32 %v1109, -1.4531521
    %v1114 = vadd.f32 %v1110, -1.4531521
    %v1115 = vadd.f32 %v1111, -1.4531521
    %v1116 = vadd.f32 %v1112, -1.4531521
    %v1117 = vmul.f32 %v1113, %v1102
    %v1118 = vmul.f32 %v1114, %v1104
    %v1119 = vmul.f32 %v1115, %v1106
    %v1120 = vmul.f32 %v1116, %v1108
    %v1121 = vadd.f32 %v1117, 1.4214138
    %v1122 = vadd.f32 %v1118, 1.4214138
    %v1123 = vadd.f32 %v1119, 1.4214138
    %v1124 = vadd.f32 %v1120, 1.4214138
    %v1125 = vmul.f32 %v1121, %v1102
    %v1126 = vmul.f32 %v1122, %v1104
    %v1127 = vmul.f32 %v1123, %v1106
    %v1128 = vmul.f32 %v1124, %v1108
    %v1129 = vadd.f32 %v1125, -0.28449672
    %v1130 = vadd.f32 %v1126, -0.28449672
    %v1131 = vadd.f32 %v1127, -0.28449672
    %v1132 = vadd.f32 %v1128, -0.28449672
    %v1133 = vmul.f32 %v1129, %v1102
    %v1134 = vmul.f32 %v1130, %v1104
    %v1135 = vmul.f32 %v1131, %v1106
    %v1136 = vmul.f32 %v1132, %v1108
    %v1137 = vadd.f32 %v1133, 0.2548296
    %v1138 = vadd.f32 %v1134, 0.2548296
    %v1139 = vadd.f32 %v1135, 0.2548296
    %v1140 = vadd.f32 %v1136, 0.2548296
    %v1141 = vmul.f32 %v1137, %v1102
    %v1142 = vmul.f32 %v1138, %v1104
    %v1143 = vmul.f32 %v1139, %v1106
    %v1144 = vmul.f32 %v1140, %v1108
    %v1145 = vsub.f32 0.0, %v1089
    %v1146 = vsub.f32 0.0, %v1090
    %v1147 = vsub.f32 0.0, %v1091
    %v1148 = vsub.f32 0.0, %v1092
    %v1149 = vmul.f32 %v1145, %v1089
    %v1150 = vmul.f32 %v1146, %v1090
    %v1151 = vmul.f32 %v1147, %v1091
    %v1152 = vmul.f32 %v1148, %v1092
    %v1153 = vmul.f32 %v1149, 1.442695
    %v1154 = vpow.pop %v1153
    %v1155 = vmul.f32 %v1150, 1.442695
    %v1156 = vpow.pop %v1155
    %v1157 = vmul.f32 %v1151, 1.442695
    %v1158 = vpow.pop %v1157
    %v1159 = vmul.f32 %v1152, 1.442695
    %v1160 = vpow.pop %v1159
    %v1161 = vmul.f32 %v1141, %v1154
    %v1162 = vmul.f32 %v1142, %v1156
    %v1163 = vmul.f32 %v1143, %v1158
    %v1164 = vmul.f32 %v1144, %v1160
    %v1165 = vsub.f32 1.0, %v1161
    %v1166 = vsub.f32 1.0, %v1162
    %v1167 = vsub.f32 1.0, %v1163
    %v1168 = vsub.f32 1.0, %v1164
    %v1169 = vmul.f32 %v1085, %v1165
    %v1170 = vmul.f32 %v1086, %v1166
    %v1171 = vmul.f32 %v1087, %v1167
    %v1172 = vmul.f32 %v1088, %v1168
    %v1173 = vadd.f32 %v1169, 1.0
    %v1174 = vadd.f32 %v1170, 1.0
    %v1175 = vadd.f32 %v1171, 1.0
    %v1176 = vadd.f32 %v1172, 1.0
    %v1177 = vmul.f32 %v1073, %v1173
    %v1178 = vmul.f32 %v1074, %v1174
    %v1179 = vmul.f32 %v1075, %v1175
    %v1180 = vmul.f32 %v1076, %v1176
    %v1181 = vpack.c.bf16 %v1179, %v1177
    %v1182 = vpack.c.bf16 %v1180, %v1178
    %v1183 = vld [vmem:[#allocation22] sm:$0xf]
    %v1184 = vld [vmem:[#allocation22 + $0x4] sm:$0xf]
    %v1185 = vld [vmem:[#allocation22 + $0x8] sm:$0xf]
    %v1186 = vld [vmem:[#allocation22 + $0xc] sm:$0xf]
    %v1187 = vld [vmem:[#allocation22 + $0x10] sm:$0xf]
    %v1188 = vld [vmem:[#allocation22 + $0x14] sm:$0xf]
    %v1189 = vld [vmem:[#allocation22 + $0x18] sm:$0xf]
    %v1190 = vld [vmem:[#allocation22 + $0x1c] sm:$0xf]
    %v1191 = vld [vmem:[#allocation22 + $0x20] sm:$0xf]
    %v1192 = vld [vmem:[#allocation22 + $0x24] sm:$0xf]
    %v1193 = vld [vmem:[#allocation22 + $0x28] sm:$0xf]
    %v1194 = vld [vmem:[#allocation22 + $0x2c] sm:$0xf]
    %v1195 = vld [vmem:[#allocation22 + $0x30] sm:$0xf]
    %v1196 = vld [vmem:[#allocation22 + $0x34] sm:$0xf]
    %v1197 = vld [vmem:[#allocation22 + $0x38] sm:$0xf]
    %v1198 = vld [vmem:[#allocation22 + $0x3c] sm:$0xf]
    %v1199 = vld [vmem:[#allocation22 + $0x40] sm:$0xf]
    %v1200 = vld [vmem:[#allocation22 + $0x44] sm:$0xf]
    %v1201 = vld [vmem:[#allocation22 + $0x48] sm:$0xf]
    %v1202 = vld [vmem:[#allocation22 + $0x4c] sm:$0xf]
    %v1203 = vld [vmem:[#allocation22 + $0x50] sm:$0xf]
    %v1204 = vld [vmem:[#allocation22 + $0x54] sm:$0xf]
    %v1205 = vld [vmem:[#allocation22 + $0x58] sm:$0xf]
    %v1206 = vld [vmem:[#allocation22 + $0x5c] sm:$0xf]
    %v1207 = vld [vmem:[#allocation22 + $0x60] sm:$0xf]
    %v1208 = vld [vmem:[#allocation22 + $0x64] sm:$0xf]
    %v1209 = vld [vmem:[#allocation22 + $0x68] sm:$0xf]
    %v1210 = vld [vmem:[#allocation22 + $0x6c] sm:$0xf]
    %v1211 = vld [vmem:[#allocation22 + $0x70] sm:$0xf]
    %v1212 = vld [vmem:[#allocation22 + $0x74] sm:$0xf]
    %v1213 = vld [vmem:[#allocation22 + $0x78] sm:$0xf]
    %v1214 = vld [vmem:[#allocation22 + $0x7c] sm:$0xf]
    %v1215 = vld [vmem:[%s15] sm:$0x1]
    %v1217 = vlaneseq
    %v1218 = vshrl.u32 %v1217, 7
    %v1219 = vsub.s32 0, %v1218
    %v1220 = vrot.slane %v1215, %v1219
    %v1254 = vunpack.c.l.b16 %v1183
    %v1255 = vunpack.c.l.b16 %v1184
    %v1256 = vunpack.c.l.b16 %v1185
    %v1257 = vunpack.c.l.b16 %v1186
    %v1258 = vunpack.c.l.b16 %v1187
    %v1259 = vunpack.c.l.b16 %v1188
    %v1260 = vunpack.c.l.b16 %v1189
    %v1261 = vunpack.c.l.b16 %v1190
    %v1262 = vunpack.c.l.b16 %v1191
    %v1263 = vunpack.c.l.b16 %v1192
    %v1264 = vunpack.c.l.b16 %v1193
    %v1265 = vunpack.c.l.b16 %v1194
    %v1266 = vunpack.c.l.b16 %v1195
    %v1267 = vunpack.c.l.b16 %v1196
    %v1268 = vunpack.c.l.b16 %v1197
    %v1269 = vunpack.c.l.b16 %v1198
    %v1270 = vunpack.c.l.b16 %v1199
    %v1271 = vunpack.c.l.b16 %v1200
    %v1272 = vunpack.c.l.b16 %v1201
    %v1273 = vunpack.c.l.b16 %v1202
    %v1274 = vunpack.c.l.b16 %v1203
    %v1275 = vunpack.c.l.b16 %v1204
    %v1276 = vunpack.c.l.b16 %v1205
    %v1277 = vunpack.c.l.b16 %v1206
    %v1278 = vunpack.c.l.b16 %v1207
    %v1279 = vunpack.c.l.b16 %v1208
    %v1280 = vunpack.c.l.b16 %v1209
    %v1281 = vunpack.c.l.b16 %v1210
    %v1282 = vunpack.c.l.b16 %v1211
    %v1283 = vunpack.c.l.b16 %v1212
    %v1284 = vunpack.c.l.b16 %v1213
    %v1285 = vunpack.c.l.b16 %v1214
    %v1286 = vpack.c.b16 %v1255, %v1254
    %v1287 = vpack.c.b16 %v1257, %v1256
    %v1288 = vpack.c.b16 %v1259, %v1258
    %v1289 = vpack.c.b16 %v1261, %v1260
    %v1290 = vpack.c.b16 %v1263, %v1262
    %v1291 = vpack.c.b16 %v1265, %v1264
    %v1292 = vpack.c.b16 %v1267, %v1266
    %v1293 = vpack.c.b16 %v1269, %v1268
    %v1294 = vpack.c.b16 %v1271, %v1270
    %v1295 = vpack.c.b16 %v1273, %v1272
    %v1296 = vpack.c.b16 %v1275, %v1274
    %v1297 = vpack.c.b16 %v1277, %v1276
    %v1298 = vpack.c.b16 %v1279, %v1278
    %v1299 = vpack.c.b16 %v1281, %v1280
    %v1300 = vpack.c.b16 %v1283, %v1282
    %v1301 = vpack.c.b16 %v1285, %v1284
    %1318 = vmatprep.subr.bf16.mxu0 0
    %1319 = vmatpush1.bf16.msra.mxu0 %v1293
    %1320 = vmatprep.subr.bf16.mxu0 0
    %1321 = vmatpush1.bf16.msra.mxu0 %v1292
    %1322 = vmatprep.subr.bf16.mxu0 0
    %1323 = vmatpush1.bf16.msra.mxu0 %v1291
    %1324 = vmatprep.subr.bf16.mxu0 0
    %1325 = vmatpush1.bf16.msra.mxu0 %v1290
    %1326 = vmatprep.subr.bf16.mxu0 0
    %1327 = vmatpush1.bf16.msra.mxu0 %v1289
    %1328 = vmatprep.subr.bf16.mxu0 0
    %1329 = vmatpush1.bf16.msra.mxu0 %v1288
    %1330 = vmatprep.subr.bf16.mxu0 0
    %1331 = vmatpush1.bf16.msra.mxu0 %v1287
    %1332 = vmatprep.subr.bf16.mxu0 0
    %1333 = vmatpush1.bf16.msra.mxu0 %v1286
    %1334 = vmatprep.subr.bf16.mxu0 0
    %1335 = vmatpush2.bf16.msra.mxu0 %v1301
    %1336 = vmatprep.subr.bf16.mxu0 0
    %1337 = vmatpush2.bf16.msra.mxu0 %v1300
    %1338 = vmatprep.subr.bf16.mxu0 0
    %1339 = vmatpush2.bf16.msra.mxu0 %v1299
    %1340 = vmatprep.subr.bf16.mxu0 0
    %1341 = vmatpush2.bf16.msra.mxu0 %v1298
    %1342 = vmatprep.subr.bf16.mxu0 0
    %1343 = vmatpush2.bf16.msra.mxu0 %v1297
    %1344 = vmatprep.subr.bf16.mxu0 0
    %1345 = vmatpush2.bf16.msra.mxu0 %v1296
    %1346 = vmatprep.subr.bf16.mxu0 0
    %1347 = vmatpush2.bf16.msra.mxu0 %v1295
    %1348 = vmatprep.subr.bf16.mxu0 0
    %1349 = vmatpush2.bf16.msra.mxu0 %v1294
    %1350 = vmatprep.mubr.bf16.mxu0 %v1182
    %1351 = vmatmul.mubr.bf16.gmra.mxu0 %v1181
    %v1352 = vpop.f32.mrf.mxu0
    %v1353 = vadd.f32 %v1220, %v1352
    %v1354 = vpop.f32.mrf.mxu0
    %v1355 = vpop.f32.mrf.mxu0
    %v1356 = vadd.f32 %v1220, %v1355
    %v1357 = vpop.f32.mrf.mxu0
    %1358 = vdwg.mxu0
    %v1359 = vadd.f32 %v919, %v1353
    %v1360 = vadd.f32 %v920, %v1356
    %v1361 = vld [vmem:[%s16] sm:$0x1]
    %v1362 = vld [vmem:[%s17] sm:$0x1]
    %1363 = vadd.xlane.f32.xlu0 %v1359
    %v1364 = vpop.xlane.xlu0 %1363
    %1365 = vadd.xlane.f32.xlu0 %v1360
    %v1366 = vpop.xlane.xlu0 %1365
    %v1367 = vmul.f32 %v1364, %v242
    %v1368 = vmul.f32 %v1366, %v242
    %v1369 = vsub.f32 %v1359, %v1367
    %v1370 = vsub.f32 %v1360, %v1368
    %v1371 = vmul.f32 %v1369, %v1369
    %v1372 = vmul.f32 %v1370, %v1370
    %1373 = vadd.xlane.f32.xlu0 %v1371
    %v1374 = vpop.xlane.xlu0 %1373
    %1375 = vadd.xlane.f32.xlu0 %v1372
    %v1376 = vpop.xlane.xlu0 %1375
    %v1377 = vmul.f32 %v1374, %v242
    %v1378 = vmul.f32 %v1376, %v242
    %v1379 = vadd.f32 %v1377, 1e-12
    %v1380 = vadd.f32 %v1378, 1e-12
    %v1381 = vrsqrt.pop %v1379
    %v1382 = vrsqrt.pop %v1380
    %v1383 = vmul.f32 %v1369, %v1381
    %v1384 = vmul.f32 %v1370, %v1382
    %v1386 = vlaneseq
    %v1387 = vshrl.u32 %v1386, 7
    %v1388 = vsub.s32 0, %v1387
    %v1389 = vrot.slane %v1361, %v1388
    %v1391 = vmul.f32 %v1383, %v1389
    %v1392 = vmul.f32 %v1384, %v1389
    %v1394 = vlaneseq
    %v1395 = vshrl.u32 %v1394, 7
    %v1396 = vsub.s32 0, %v1395
    %v1397 = vrot.slane %v1362, %v1396
    %v1399 = vadd.f32 %v1391, %v1397
    %v1400 = vadd.f32 %v1392, %v1397
    %v1401 = vpack.c.bf16 %v1400, %v1399
    %s1402 = scalar_lea.vmem [#allocation15], 192
    %v1403 = vld [vmem:[%s1402] sm:$0xff]
    %v1404 = vld [vmem:[%s1402 + $0x8] sm:$0xf]
    %v1405 = vld [vmem:[%s1402 + $0xc] sm:$0xff]
    %v1406 = vld [vmem:[%s1402 + $0x14] sm:$0xf]
    %v1407 = vld [vmem:[%s1402 + $0x18] sm:$0xff]
    %v1408 = vld [vmem:[%s1402 + $0x20] sm:$0xf]
    %v1409 = vld [vmem:[%s1402 + $0x24] sm:$0xff]
    %v1410 = vld [vmem:[%s1402 + $0x2c] sm:$0xf]
    %v1411 = vld [vmem:[%s1402 + $0x30] sm:$0xff]
    %v1412 = vld [vmem:[%s1402 + $0x38] sm:$0xf]
    %v1413 = vld [vmem:[%s1402 + $0x3c] sm:$0xff]
    %v1414 = vld [vmem:[%s1402 + $0x44] sm:$0xf]
    %v1415 = vld [vmem:[%s1402 + $0x48] sm:$0xff]
    %v1416 = vld [vmem:[%s1402 + $0x50] sm:$0xf]
    %v1417 = vld [vmem:[%s1402 + $0x54] sm:$0xff]
    %v1418 = vld [vmem:[%s1402 + $0x5c] sm:$0xf]
    %v1419 = vld [vmem:[%s1402 + $0x60] sm:$0xff]
    %v1420 = vld [vmem:[%s1402 + $0x68] sm:$0xf]
    %v1421 = vld [vmem:[%s1402 + $0x6c] sm:$0xff]
    %v1422 = vld [vmem:[%s1402 + $0x74] sm:$0xf]
    %v1423 = vld [vmem:[%s1402 + $0x78] sm:$0xff]
    %v1424 = vld [vmem:[%s1402 + $0x80] sm:$0xf]
    %v1425 = vld [vmem:[%s1402 + $0x84] sm:$0xff]
    %v1426 = vld [vmem:[%s1402 + $0x8c] sm:$0xf]
    %v1427 = vld [vmem:[%s1402 + $0x90] sm:$0xff]
    %v1428 = vld [vmem:[%s1402 + $0x98] sm:$0xf]
    %v1429 = vld [vmem:[%s1402 + $0x9c] sm:$0xff]
    %v1430 = vld [vmem:[%s1402 + $0xa4] sm:$0xf]
    %v1431 = vld [vmem:[%s1402 + $0xa8] sm:$0xff]
    %v1432 = vld [vmem:[%s1402 + $0xb0] sm:$0xf]
    %v1433 = vld [vmem:[%s1402 + $0xb4] sm:$0xff]
    %v1434 = vld [vmem:[%s1402 + $0xbc] sm:$0xf]
    %s1435 = scalar_lea.vmem %s7, 3
    %v1436 = vld [vmem:[%s1435] sm:$0x7]
    %v1438 = vlaneseq
    %v1439 = vshrl.u32 %v1438, 7
    %v1440 = vsub.s32 0, %v1439
    %v1441 = vrot.slane %v1436, %v1440
    %v1442 = vlaneseq
    %v1443 = vshrl.u32 %v1442, 7
    %v1444 = vsub.s32 1, %v1443
    %v1445 = vrot.slane %v1436, %v1444
    %v1446 = vlaneseq
    %v1447 = vshrl.u32 %v1446, 7
    %v1448 = vsub.s32 2, %v1447
    %v1449 = vrot.slane %v1436, %v1448
    %v1485 = vunpack.c.l.b16 %v1403
    %v1486 = vunpack.c.h.b16 %v1403
    %v1487 = vunpack.c.l.b16 %v1404
    %v1488 = vunpack.c.l.b16 %v1405
    %v1489 = vunpack.c.h.b16 %v1405
    %v1490 = vunpack.c.l.b16 %v1406
    %v1491 = vunpack.c.l.b16 %v1407
    %v1492 = vunpack.c.h.b16 %v1407
    %v1493 = vunpack.c.l.b16 %v1408
    %v1494 = vunpack.c.l.b16 %v1409
    %v1495 = vunpack.c.h.b16 %v1409
    %v1496 = vunpack.c.l.b16 %v1410
    %v1497 = vunpack.c.l.b16 %v1411
    %v1498 = vunpack.c.h.b16 %v1411
    %v1499 = vunpack.c.l.b16 %v1412
    %v1500 = vunpack.c.l.b16 %v1413
    %v1501 = vunpack.c.h.b16 %v1413
    %v1502 = vunpack.c.l.b16 %v1414
    %v1503 = vunpack.c.l.b16 %v1415
    %v1504 = vunpack.c.h.b16 %v1415
    %v1505 = vunpack.c.l.b16 %v1416
    %v1506 = vunpack.c.l.b16 %v1417
    %v1507 = vunpack.c.h.b16 %v1417
    %v1508 = vunpack.c.l.b16 %v1418
    %v1509 = vunpack.c.l.b16 %v1419
    %v1510 = vunpack.c.h.b16 %v1419
    %v1511 = vunpack.c.l.b16 %v1420
    %v1512 = vunpack.c.l.b16 %v1421
    %v1513 = vunpack.c.h.b16 %v1421
    %v1514 = vunpack.c.l.b16 %v1422
    %v1515 = vunpack.c.l.b16 %v1423
    %v1516 = vunpack.c.h.b16 %v1423
    %v1517 = vunpack.c.l.b16 %v1424
    %v1518 = vunpack.c.l.b16 %v1425
    %v1519 = vunpack.c.h.b16 %v1425
    %v1520 = vunpack.c.l.b16 %v1426
    %v1521 = vunpack.c.l.b16 %v1427
    %v1522 = vunpack.c.h.b16 %v1427
    %v1523 = vunpack.c.l.b16 %v1428
    %v1524 = vunpack.c.l.b16 %v1429
    %v1525 = vunpack.c.h.b16 %v1429
    %v1526 = vunpack.c.l.b16 %v1430
    %v1527 = vunpack.c.l.b16 %v1431
    %v1528 = vunpack.c.h.b16 %v1431
    %v1529 = vunpack.c.l.b16 %v1432
    %v1530 = vunpack.c.l.b16 %v1433
    %v1531 = vunpack.c.h.b16 %v1433
    %v1532 = vunpack.c.l.b16 %v1434
    %v1533 = vpack.c.b16 %v1488, %v1485
    %v1534 = vpack.c.b16 %v1489, %v1486
    %v1535 = vpack.c.b16 %v1490, %v1487
    %v1536 = vpack.c.b16 %v1494, %v1491
    %v1537 = vpack.c.b16 %v1495, %v1492
    %v1538 = vpack.c.b16 %v1496, %v1493
    %v1539 = vpack.c.b16 %v1500, %v1497
    %v1540 = vpack.c.b16 %v1501, %v1498
    %v1541 = vpack.c.b16 %v1502, %v1499
    %v1542 = vpack.c.b16 %v1506, %v1503
    %v1543 = vpack.c.b16 %v1507, %v1504
    %v1544 = vpack.c.b16 %v1508, %v1505
    %v1545 = vpack.c.b16 %v1512, %v1509
    %v1546 = vpack.c.b16 %v1513, %v1510
    %v1547 = vpack.c.b16 %v1514, %v1511
    %v1548 = vpack.c.b16 %v1518, %v1515
    %v1549 = vpack.c.b16 %v1519, %v1516
    %v1550 = vpack.c.b16 %v1520, %v1517
    %v1551 = vpack.c.b16 %v1524, %v1521
    %v1552 = vpack.c.b16 %v1525, %v1522
    %v1553 = vpack.c.b16 %v1526, %v1523
    %v1554 = vpack.c.b16 %v1530, %v1527
    %v1555 = vpack.c.b16 %v1531, %v1528
    %v1556 = vpack.c.b16 %v1532, %v1529
    %1581 = vmatprep.subr.bf16.mxu0 %v1555
    %1582 = vmatpush1.bf16.msra.mxu0 %v1554
    %1583 = vmatprep.subr.bf16.mxu0 %v1552
    %1584 = vmatpush1.bf16.msra.mxu0 %v1551
    %1585 = vmatprep.subr.bf16.mxu0 %v1549
    %1586 = vmatpush1.bf16.msra.mxu0 %v1548
    %1587 = vmatprep.subr.bf16.mxu0 %v1546
    %1588 = vmatpush1.bf16.msra.mxu0 %v1545
    %1589 = vmatprep.subr.bf16.mxu0 %v1543
    %1590 = vmatpush1.bf16.msra.mxu0 %v1542
    %1591 = vmatprep.subr.bf16.mxu0 %v1540
    %1592 = vmatpush1.bf16.msra.mxu0 %v1539
    %1593 = vmatprep.subr.bf16.mxu0 %v1537
    %1594 = vmatpush1.bf16.msra.mxu0 %v1536
    %1595 = vmatprep.subr.bf16.mxu0 %v1534
    %1596 = vmatpush1.bf16.msra.mxu0 %v1533
    %1597 = vmatprep.subr.bf16.mxu0 0
    %1598 = vmatpush2.bf16.msra.mxu0 0
    %1599 = vmatprep.subr.bf16.mxu0 0
    %1600 = vmatpush2.bf16.msra.mxu0 0
    %1601 = vmatprep.subr.bf16.mxu0 0
    %1602 = vmatpush2.bf16.msra.mxu0 0
    %1603 = vmatprep.subr.bf16.mxu0 0
    %1604 = vmatpush2.bf16.msra.mxu0 0
    %1605 = vmatprep.subr.bf16.mxu0 0
    %1606 = vmatpush2.bf16.msra.mxu0 0
    %1607 = vmatprep.subr.bf16.mxu0 0
    %1608 = vmatpush2.bf16.msra.mxu0 0
    %1609 = vmatprep.subr.bf16.mxu0 0
    %1610 = vmatpush2.bf16.msra.mxu0 0
    %1611 = vmatprep.subr.bf16.mxu0 0
    %1612 = vmatpush2.bf16.msra.mxu0 0
    %1613 = vmatprep.mubr.bf16.mxu0 0
    %1614 = vmatmul.mubr.bf16.gmra.mxu0 %v1401
    %v1615 = vpop.f32.mrf.mxu0
    %v1616 = vadd.f32 %v1441, %v1615
    %v1617 = vpop.f32.mrf.mxu0
    %v1618 = vadd.f32 %v1445, %v1617
    %v1619 = vpop.f32.mrf.mxu0
    %v1620 = vadd.f32 %v1441, %v1619
    %v1621 = vpop.f32.mrf.mxu0
    %v1622 = vadd.f32 %v1445, %v1621
    %1623 = vdwg.mxu0
    %1624 = vmatprep.subr.bf16.mxu0 0
    %1625 = vmatpush1.bf16.msra.mxu0 %v1556
    %1626 = vmatprep.subr.bf16.mxu0 0
    %1627 = vmatpush1.bf16.msra.mxu0 %v1553
    %1628 = vmatprep.subr.bf16.mxu0 0
    %1629 = vmatpush1.bf16.msra.mxu0 %v1550
    %1630 = vmatprep.subr.bf16.mxu0 0
    %1631 = vmatpush1.bf16.msra.mxu0 %v1547
    %1632 = vmatprep.subr.bf16.mxu0 0
    %1633 = vmatpush1.bf16.msra.mxu0 %v1544
    %1634 = vmatprep.subr.bf16.mxu0 0
    %1635 = vmatpush1.bf16.msra.mxu0 %v1541
    %1636 = vmatprep.subr.bf16.mxu0 0
    %1637 = vmatpush1.bf16.msra.mxu0 %v1538
    %1638 = vmatprep.subr.bf16.mxu0 0
    %1639 = vmatpush1.bf16.msra.mxu0 %v1535
    %1640 = vmatprep.subr.bf16.mxu0 0
    %1641 = vmatpush2.bf16.msra.mxu0 0
    %1642 = vmatprep.subr.bf16.mxu0 0
    %1643 = vmatpush2.bf16.msra.mxu0 0
    %1644 = vmatprep.subr.bf16.mxu0 0
    %1645 = vmatpush2.bf16.msra.mxu0 0
    %1646 = vmatprep.subr.bf16.mxu0 0
    %1647 = vmatpush2.bf16.msra.mxu0 0
    %1648 = vmatprep.subr.bf16.mxu0 0
    %1649 = vmatpush2.bf16.msra.mxu0 0
    %1650 = vmatprep.subr.bf16.mxu0 0
    %1651 = vmatpush2.bf16.msra.mxu0 0
    %1652 = vmatprep.subr.bf16.mxu0 0
    %1653 = vmatpush2.bf16.msra.mxu0 0
    %1654 = vmatprep.subr.bf16.mxu0 0
    %1655 = vmatpush2.bf16.msra.mxu0 0
    %1656 = vmatprep.mubr.bf16.mxu0 0
    %1657 = vmatmul.mubr.bf16.gmra.mxu0 %v1401
    %v1658 = vpop.f32.mrf.mxu0
    %v1659 = vadd.f32 %v1449, %v1658
    %v1660 = vpop.f32.mrf.mxu0
    %v1661 = vpop.f32.mrf.mxu0
    %v1662 = vadd.f32 %v1449, %v1661
    %v1663 = vpop.f32.mrf.mxu0
    %1664 = vdwg.mxu0
    %v1665 = vmul.f32 %v1618, %v279
    %v1666 = vmul.f32 %v1622, %v280
    %v1667 = vmul.f32 %v1618, %v281
    %v1668 = vmul.f32 %v1622, %v282
    %v1669 = vmul.f32 %v1618, %v283
    %v1670 = vmul.f32 %v1622, %v284
    %v1671 = vmul.f32 %v1618, %v285
    %v1672 = vmul.f32 %v1622, %v286
    %v1673 = vpack.c.bf16 %v1666, %v1665
    %v1674 = vpack.c.bf16 %v1668, %v1667
    %v1675 = vpack.c.bf16 %v1670, %v1669
    %v1676 = vpack.c.bf16 %v1672, %v1671
    %v1677 = vmul.f32 %v1659, %v279
    %v1678 = vmul.f32 %v1662, %v280
    %v1679 = vmul.f32 %v1659, %v281
    %v1680 = vmul.f32 %v1662, %v282
    %v1681 = vmul.f32 %v1659, %v283
    %v1682 = vmul.f32 %v1662, %v284
    %v1683 = vmul.f32 %v1659, %v285
    %v1684 = vmul.f32 %v1662, %v286
    %v1685 = vpack.c.bf16 %v1678, %v1677
    %v1686 = vpack.c.bf16 %v1680, %v1679
    %v1687 = vpack.c.bf16 %v1682, %v1681
    %v1688 = vpack.c.bf16 %v1684, %v1683
    %v1689 = vpack.c.bf16 %v1620, %v1616
    %1690 = vmatprep.subr.bf16.mxu0 0
    %1691 = vmatpush1.bf16.xpose.msra.mxu0 0
    %1692 = vmatprep.subr.bf16.mxu0 0
    %1693 = vmatpush1.bf16.xpose.msra.mxu0 0
    %1694 = vmatprep.subr.bf16.mxu0 0
    %1695 = vmatpush1.bf16.xpose.msra.mxu0 0
    %1696 = vmatprep.subr.bf16.mxu0 0
    %1697 = vmatpush1.bf16.xpose.msra.mxu0 0
    %1698 = vmatprep.subr.bf16.mxu0 0
    %1699 = vmatpush1.bf16.xpose.msra.mxu0 %v1676
    %1700 = vmatprep.subr.bf16.mxu0 0
    %1701 = vmatpush1.bf16.xpose.msra.mxu0 %v1675
    %1702 = vmatprep.subr.bf16.mxu0 0
    %1703 = vmatpush1.bf16.xpose.msra.mxu0 %v1674
    %1704 = vmatprep.subr.bf16.mxu0 0
    %1705 = vmatpush1.bf16.xpose.msra.mxu0 %v1673
    %1706 = vmatprep.subr.bf16.mxu0 0
    %1707 = vmatpush2.bf16.xpose.msra.mxu0 0
    %1708 = vmatprep.subr.bf16.mxu0 0
    %1709 = vmatpush2.bf16.xpose.msra.mxu0 0
    %1710 = vmatprep.subr.bf16.mxu0 0
    %1711 = vmatpush2.bf16.xpose.msra.mxu0 0
    %1712 = vmatprep.subr.bf16.mxu0 0
    %1713 = vmatpush2.bf16.xpose.msra.mxu0 0
    %1714 = vmatprep.subr.bf16.mxu0 0
    %1715 = vmatpush2.bf16.xpose.msra.mxu0 0
    %1716 = vmatprep.subr.bf16.mxu0 0
    %1717 = vmatpush2.bf16.xpose.msra.mxu0 0
    %1718 = vmatprep.subr.bf16.mxu0 0
    %1719 = vmatpush2.bf16.xpose.msra.mxu0 0
    %1720 = vmatprep.subr.bf16.mxu0 0
    %1721 = vmatpush2.bf16.xpose.msra.mxu0 0
    %1722 = vmatprep.mubr.bf16.mxu0 0
    %1723 = vmatmul.mubr.bf16.gmra.mxu0 %v1689
    %v1724 = vpop.f32.mrf.mxu0
    %v1725 = vadd.f32 %v277, %v1724
    %v1726 = vpop.f32.mrf.mxu0
    %v1727 = vpop.f32.mrf.mxu0
    %v1728 = vadd.f32 %v278, %v1727
    %v1729 = vpop.f32.mrf.mxu0
    %1730 = vdwg.mxu0
    %v1731 = vsel %vm623, %v1725, -inf
    %1732 = vmax.xlane.f32.xlu0 %v1731
    %v1733 = vpop.xlane.xlu0 %1732
    %v1734 = vsel %vm623, %v1728, -inf
    %1735 = vmax.xlane.f32.xlu0 %v1734
    %v1736 = vpop.xlane.xlu0 %1735
    %v1737 = vsub.f32 %v1725, %v1733
    %v1738 = vsub.f32 %v1728, %v1736
    %v1739 = vmul.f32 %v1737, 1.442695
    %v1740 = vpow.pop %v1739
    %v1741 = vmul.f32 %v1738, 1.442695
    %v1742 = vpow.pop %v1741
    %v1744 = vsel %vm623, %v1740, 0
    %v1747 = vsel %vm623, %v1742, 0
    %1749 = vmatprep.subr.mxu0 0.0
    %1750 = vmatpush1.msra.mxu0 0.0
    %1751 = vmatprep.subr.mxu0 0.0
    %1752 = vmatpush1.msra.mxu0 0.0
    %1753 = vmatprep.subr.mxu0 0.0
    %1754 = vmatpush1.msra.mxu0 0.0
    %1755 = vmatprep.subr.mxu0 0.0
    %1756 = vmatpush1.msra.mxu0 0.0
    %1757 = vmatprep.subr.mxu0 0.0
    %1758 = vmatpush1.msra.mxu0 0.0
    %1759 = vmatprep.subr.mxu0 0.0
    %1760 = vmatpush1.msra.mxu0 0.0
    %1761 = vmatprep.subr.mxu0 0.0
    %1762 = vmatpush1.msra.mxu0 0.0
    %1763 = vmatprep.subr.mxu0 0.0
    %1764 = vmatpush1.msra.mxu0 0.0
    %1765 = vmatprep.subr.mxu0 0.0
    %1766 = vmatpush1.msra.mxu0 %v294
    %1767 = vmatprep.subr.mxu0 0.0
    %1768 = vmatpush1.msra.mxu0 %v293
    %1769 = vmatprep.subr.mxu0 0.0
    %1770 = vmatpush1.msra.mxu0 %v292
    %1771 = vmatprep.subr.mxu0 0.0
    %1772 = vmatpush1.msra.mxu0 %v291
    %1773 = vmatprep.subr.mxu0 0.0
    %1774 = vmatpush1.msra.mxu0 %v290
    %1775 = vmatprep.subr.mxu0 0.0
    %1776 = vmatpush1.msra.mxu0 %v289
    %1777 = vmatprep.subr.mxu0 0.0
    %1778 = vmatpush1.msra.mxu0 %v288
    %1779 = vmatprep.subr.mxu0 0.0
    %1780 = vmatpush1.msra.mxu0 %v287
    %1781 = vmatprep.subr.mxu0 0.0
    %1782 = vmatpush2.msra.mxu0 0.0
    %1783 = vmatprep.subr.mxu0 0.0
    %1784 = vmatpush2.msra.mxu0 0.0
    %1785 = vmatprep.subr.mxu0 0.0
    %1786 = vmatpush2.msra.mxu0 0.0
    %1787 = vmatprep.subr.mxu0 0.0
    %1788 = vmatpush2.msra.mxu0 0.0
    %1789 = vmatprep.subr.mxu0 0.0
    %1790 = vmatpush2.msra.mxu0 0.0
    %1791 = vmatprep.subr.mxu0 0.0
    %1792 = vmatpush2.msra.mxu0 0.0
    %1793 = vmatprep.subr.mxu0 0.0
    %1794 = vmatpush2.msra.mxu0 0.0
    %1795 = vmatprep.subr.mxu0 0.0
    %1796 = vmatpush2.msra.mxu0 0.0
    %1797 = vmatprep.subr.mxu0 0.0
    %1798 = vmatpush2.msra.mxu0 0.0
    %1799 = vmatprep.subr.mxu0 0.0
    %1800 = vmatpush2.msra.mxu0 0.0
    %1801 = vmatprep.subr.mxu0 0.0
    %1802 = vmatpush2.msra.mxu0 0.0
    %1803 = vmatprep.subr.mxu0 0.0
    %1804 = vmatpush2.msra.mxu0 0.0
    %1805 = vmatprep.subr.mxu0 0.0
    %1806 = vmatpush2.msra.mxu0 0.0
    %1807 = vmatprep.subr.mxu0 0.0
    %1808 = vmatpush2.msra.mxu0 0.0
    %1809 = vmatprep.subr.mxu0 0.0
    %1810 = vmatpush2.msra.mxu0 0.0
    %1811 = vmatprep.subr.mxu0 0.0
    %1812 = vmatpush2.msra.mxu0 0.0
    %1813 = vmatprep.mubr.f32.mxu0 0.0
    %1814 = vmatmul.mubr.f32.gmra.mxu0 %v1744
    %v1815 = vpop.f32.mrf.mxu0
    %v1816 = vadd.f32 0.0, %v1815
    %v1817 = vpop.f32.mrf.mxu0
    %1818 = vmatprep.mubr.f32.mxu0 0.0
    %1819 = vmatmul.mubr.f32.gmra.mxu0 %v1747
    %v1820 = vpop.f32.mrf.mxu0
    %v1821 = vadd.f32 0.0, %v1820
    %v1822 = vpop.f32.mrf.mxu0
    %1823 = vdwg.mxu0
    %v1824 = vrcp.pop %v1816
    %v1825 = vrcp.pop %v1821
    %v1826 = vmul.f32 %v1740, %v1824
    %v1827 = vmul.f32 %v1742, %v1825
    %v1828 = vpack.c.bf16 %v1827, %v1826
    %v1830 = vsel %vm623, %v1828, 0
    %1832 = vmatprep.subr.bf16.mxu0 0
    %1833 = vmatpush1.bf16.msra.mxu0 0
    %1834 = vmatprep.subr.bf16.mxu0 0
    %1835 = vmatpush1.bf16.msra.mxu0 0
    %1836 = vmatprep.subr.bf16.mxu0 0
    %1837 = vmatpush1.bf16.msra.mxu0 0
    %1838 = vmatprep.subr.bf16.mxu0 0
    %1839 = vmatpush1.bf16.msra.mxu0 0
    %1840 = vmatprep.subr.bf16.mxu0 0
    %1841 = vmatpush1.bf16.msra.mxu0 %v1688
    %1842 = vmatprep.subr.bf16.mxu0 0
    %1843 = vmatpush1.bf16.msra.mxu0 %v1687
    %1844 = vmatprep.subr.bf16.mxu0 0
    %1845 = vmatpush1.bf16.msra.mxu0 %v1686
    %1846 = vmatprep.subr.bf16.mxu0 0
    %1847 = vmatpush1.bf16.msra.mxu0 %v1685
    %1848 = vmatprep.subr.bf16.mxu0 0
    %1849 = vmatpush2.bf16.msra.mxu0 0
    %1850 = vmatprep.subr.bf16.mxu0 0
    %1851 = vmatpush2.bf16.msra.mxu0 0
    %1852 = vmatprep.subr.bf16.mxu0 0
    %1853 = vmatpush2.bf16.msra.mxu0 0
    %1854 = vmatprep.subr.bf16.mxu0 0
    %1855 = vmatpush2.bf16.msra.mxu0 0
    %1856 = vmatprep.subr.bf16.mxu0 0
    %1857 = vmatpush2.bf16.msra.mxu0 0
    %1858 = vmatprep.subr.bf16.mxu0 0
    %1859 = vmatpush2.bf16.msra.mxu0 0
    %1860 = vmatprep.subr.bf16.mxu0 0
    %1861 = vmatpush2.bf16.msra.mxu0 0
    %1862 = vmatprep.subr.bf16.mxu0 0
    %1863 = vmatpush2.bf16.msra.mxu0 0
    %1864 = vmatprep.mubr.bf16.mxu0 0
    %1865 = vmatmul.mubr.bf16.gmra.mxu0 %v1830
    %v1866 = vpop.f32.mrf.mxu0
    %v1867 = vadd.f32 0.0, %v1866
    %v1868 = vpop.f32.mrf.mxu0
    %v1869 = vpop.f32.mrf.mxu0
    %v1870 = vadd.f32 0.0, %v1869
    %v1871 = vpop.f32.mrf.mxu0
    %1872 = vdwg.mxu0
    %v1873 = vpack.c.bf16 %v1870, %v1867
    %s1874 = scalar_lea.vmem [#allocation16], 64
    %v1875 = vld [vmem:[%s1874] sm:$0xf]
    %v1876 = vld [vmem:[%s1874 + $0x4] sm:$0xf]
    %v1877 = vld [vmem:[%s1874 + $0x8] sm:$0xf]
    %v1878 = vld [vmem:[%s1874 + $0xc] sm:$0xf]
    %v1879 = vld [vmem:[%s1874 + $0x10] sm:$0xf]
    %v1880 = vld [vmem:[%s1874 + $0x14] sm:$0xf]
    %v1881 = vld [vmem:[%s1874 + $0x18] sm:$0xf]
    %v1882 = vld [vmem:[%s1874 + $0x1c] sm:$0xf]
    %v1883 = vld [vmem:[%s1874 + $0x20] sm:$0xf]
    %v1884 = vld [vmem:[%s1874 + $0x24] sm:$0xf]
    %v1885 = vld [vmem:[%s1874 + $0x28] sm:$0xf]
    %v1886 = vld [vmem:[%s1874 + $0x2c] sm:$0xf]
    %v1887 = vld [vmem:[%s1874 + $0x30] sm:$0xf]
    %v1888 = vld [vmem:[%s1874 + $0x34] sm:$0xf]
    %v1889 = vld [vmem:[%s1874 + $0x38] sm:$0xf]
    %v1890 = vld [vmem:[%s1874 + $0x3c] sm:$0xf]
    %s1891 = scalar_lea.vmem [#allocation18], 1
    %v1892 = vld [vmem:[%s1891] sm:$0x1]
    %v1894 = vlaneseq
    %v1895 = vshrl.u32 %v1894, 7
    %v1896 = vsub.s32 0, %v1895
    %v1897 = vrot.slane %v1892, %v1896
    %v1915 = vunpack.c.l.b16 %v1875
    %v1916 = vunpack.c.l.b16 %v1876
    %v1917 = vunpack.c.l.b16 %v1877
    %v1918 = vunpack.c.l.b16 %v1878
    %v1919 = vunpack.c.l.b16 %v1879
    %v1920 = vunpack.c.l.b16 %v1880
    %v1921 = vunpack.c.l.b16 %v1881
    %v1922 = vunpack.c.l.b16 %v1882
    %v1923 = vunpack.c.l.b16 %v1883
    %v1924 = vunpack.c.l.b16 %v1884
    %v1925 = vunpack.c.l.b16 %v1885
    %v1926 = vunpack.c.l.b16 %v1886
    %v1927 = vunpack.c.l.b16 %v1887
    %v1928 = vunpack.c.l.b16 %v1888
    %v1929 = vunpack.c.l.b16 %v1889
    %v1930 = vunpack.c.l.b16 %v1890
    %v1931 = vpack.c.b16 %v1916, %v1915
    %v1932 = vpack.c.b16 %v1918, %v1917
    %v1933 = vpack.c.b16 %v1920, %v1919
    %v1934 = vpack.c.b16 %v1922, %v1921
    %v1935 = vpack.c.b16 %v1924, %v1923
    %v1936 = vpack.c.b16 %v1926, %v1925
    %v1937 = vpack.c.b16 %v1928, %v1927
    %v1938 = vpack.c.b16 %v1930, %v1929
    %1947 = vmatprep.subr.bf16.mxu0 0
    %1948 = vmatpush1.bf16.msra.mxu0 %v1938
    %1949 = vmatprep.subr.bf16.mxu0 0
    %1950 = vmatpush1.bf16.msra.mxu0 %v1937
    %1951 = vmatprep.subr.bf16.mxu0 0
    %1952 = vmatpush1.bf16.msra.mxu0 %v1936
    %1953 = vmatprep.subr.bf16.mxu0 0
    %1954 = vmatpush1.bf16.msra.mxu0 %v1935
    %1955 = vmatprep.subr.bf16.mxu0 0
    %1956 = vmatpush1.bf16.msra.mxu0 %v1934
    %1957 = vmatprep.subr.bf16.mxu0 0
    %1958 = vmatpush1.bf16.msra.mxu0 %v1933
    %1959 = vmatprep.subr.bf16.mxu0 0
    %1960 = vmatpush1.bf16.msra.mxu0 %v1932
    %1961 = vmatprep.subr.bf16.mxu0 0
    %1962 = vmatpush1.bf16.msra.mxu0 %v1931
    %1963 = vmatprep.subr.bf16.mxu0 0
    %1964 = vmatpush2.bf16.msra.mxu0 0
    %1965 = vmatprep.subr.bf16.mxu0 0
    %1966 = vmatpush2.bf16.msra.mxu0 0
    %1967 = vmatprep.subr.bf16.mxu0 0
    %1968 = vmatpush2.bf16.msra.mxu0 0
    %1969 = vmatprep.subr.bf16.mxu0 0
    %1970 = vmatpush2.bf16.msra.mxu0 0
    %1971 = vmatprep.subr.bf16.mxu0 0
    %1972 = vmatpush2.bf16.msra.mxu0 0
    %1973 = vmatprep.subr.bf16.mxu0 0
    %1974 = vmatpush2.bf16.msra.mxu0 0
    %1975 = vmatprep.subr.bf16.mxu0 0
    %1976 = vmatpush2.bf16.msra.mxu0 0
    %1977 = vmatprep.subr.bf16.mxu0 0
    %1978 = vmatpush2.bf16.msra.mxu0 0
    %1979 = vmatprep.mubr.bf16.mxu0 0
    %1980 = vmatmul.mubr.bf16.gmra.mxu0 %v1873
    %v1981 = vpop.f32.mrf.mxu0
    %v1982 = vadd.f32 %v1897, %v1981
    %v1983 = vpop.f32.mrf.mxu0
    %v1984 = vpop.f32.mrf.mxu0
    %v1985 = vadd.f32 %v1897, %v1984
    %v1986 = vpop.f32.mrf.mxu0
    %1987 = vdwg.mxu0
    %v1988 = vadd.f32 %v1399, %v1982
    %v1989 = vadd.f32 %v1400, %v1985
    %s1990 = scalar_lea.vmem [#allocation19], 1
    %v1991 = vld [vmem:[%s1990] sm:$0x1]
    %s1992 = scalar_lea.vmem %s11, 1
    %v1993 = vld [vmem:[%s1992] sm:$0x1]
    %1994 = vadd.xlane.f32.xlu0 %v1988
    %v1995 = vpop.xlane.xlu0 %1994
    %1996 = vadd.xlane.f32.xlu0 %v1989
    %v1997 = vpop.xlane.xlu0 %1996
    %v1998 = vmul.f32 %v1995, %v242
    %v1999 = vmul.f32 %v1997, %v242
    %v2000 = vsub.f32 %v1988, %v1998
    %v2001 = vsub.f32 %v1989, %v1999
    %v2002 = vmul.f32 %v2000, %v2000
    %v2003 = vmul.f32 %v2001, %v2001
    %2004 = vadd.xlane.f32.xlu0 %v2002
    %v2005 = vpop.xlane.xlu0 %2004
    %2006 = vadd.xlane.f32.xlu0 %v2003
    %v2007 = vpop.xlane.xlu0 %2006
    %v2008 = vmul.f32 %v2005, %v242
    %v2009 = vmul.f32 %v2007, %v242
    %v2010 = vadd.f32 %v2008, 1e-12
    %v2011 = vadd.f32 %v2009, 1e-12
    %v2012 = vrsqrt.pop %v2010
    %v2013 = vrsqrt.pop %v2011
    %v2014 = vmul.f32 %v2000, %v2012
    %v2015 = vmul.f32 %v2001, %v2013
    %v2017 = vlaneseq
    %v2018 = vshrl.u32 %v2017, 7
    %v2019 = vsub.s32 0, %v2018
    %v2020 = vrot.slane %v1991, %v2019
    %v2022 = vmul.f32 %v2014, %v2020
    %v2023 = vmul.f32 %v2015, %v2020
    %v2025 = vlaneseq
    %v2026 = vshrl.u32 %v2025, 7
    %v2027 = vsub.s32 0, %v2026
    %v2028 = vrot.slane %v1993, %v2027
    %v2030 = vadd.f32 %v2022, %v2028
    %v2031 = vadd.f32 %v2023, %v2028
    %v2032 = vpack.c.bf16 %v2031, %v2030
    %s2033 = scalar_lea.vmem [#allocation21], 128
    %v2034 = vld [vmem:[%s2033] sm:$0xff]
    %v2035 = vld [vmem:[%s2033 + $0x8] sm:$0xff]
    %v2036 = vld [vmem:[%s2033 + $0x10] sm:$0xff]
    %v2037 = vld [vmem:[%s2033 + $0x18] sm:$0xff]
    %v2038 = vld [vmem:[%s2033 + $0x20] sm:$0xff]
    %v2039 = vld [vmem:[%s2033 + $0x28] sm:$0xff]
    %v2040 = vld [vmem:[%s2033 + $0x30] sm:$0xff]
    %v2041 = vld [vmem:[%s2033 + $0x38] sm:$0xff]
    %v2042 = vld [vmem:[%s2033 + $0x40] sm:$0xff]
    %v2043 = vld [vmem:[%s2033 + $0x48] sm:$0xff]
    %v2044 = vld [vmem:[%s2033 + $0x50] sm:$0xff]
    %v2045 = vld [vmem:[%s2033 + $0x58] sm:$0xff]
    %v2046 = vld [vmem:[%s2033 + $0x60] sm:$0xff]
    %v2047 = vld [vmem:[%s2033 + $0x68] sm:$0xff]
    %v2048 = vld [vmem:[%s2033 + $0x70] sm:$0xff]
    %v2049 = vld [vmem:[%s2033 + $0x78] sm:$0xff]
    %s2050 = scalar_lea.vmem %s13, 2
    %v2051 = vld [vmem:[%s2050] sm:$0x3]
    %v2053 = vlaneseq
    %v2054 = vshrl.u32 %v2053, 7
    %v2055 = vsub.s32 0, %v2054
    %v2056 = vrot.slane %v2051, %v2055
    %v2057 = vlaneseq
    %v2058 = vshrl.u32 %v2057, 7
    %v2059 = vsub.s32 1, %v2058
    %v2060 = vrot.slane %v2051, %v2059
    %v2079 = vunpack.c.l.b16 %v2034
    %v2080 = vunpack.c.h.b16 %v2034
    %v2081 = vunpack.c.l.b16 %v2035
    %v2082 = vunpack.c.h.b16 %v2035
    %v2083 = vunpack.c.l.b16 %v2036
    %v2084 = vunpack.c.h.b16 %v2036
    %v2085 = vunpack.c.l.b16 %v2037
    %v2086 = vunpack.c.h.b16 %v2037
    %v2087 = vunpack.c.l.b16 %v2038
    %v2088 = vunpack.c.h.b16 %v2038
    %v2089 = vunpack.c.l.b16 %v2039
    %v2090 = vunpack.c.h.b16 %v2039
    %v2091 = vunpack.c.l.b16 %v2040
    %v2092 = vunpack.c.h.b16 %v2040
    %v2093 = vunpack.c.l.b16 %v2041
    %v2094 = vunpack.c.h.b16 %v2041
    %v2095 = vunpack.c.l.b16 %v2042
    %v2096 = vunpack.c.h.b16 %v2042
    %v2097 = vunpack.c.l.b16 %v2043
    %v2098 = vunpack.c.h.b16 %v2043
    %v2099 = vunpack.c.l.b16 %v2044
    %v2100 = vunpack.c.h.b16 %v2044
    %v2101 = vunpack.c.l.b16 %v2045
    %v2102 = vunpack.c.h.b16 %v2045
    %v2103 = vunpack.c.l.b16 %v2046
    %v2104 = vunpack.c.h.b16 %v2046
    %v2105 = vunpack.c.l.b16 %v2047
    %v2106 = vunpack.c.h.b16 %v2047
    %v2107 = vunpack.c.l.b16 %v2048
    %v2108 = vunpack.c.h.b16 %v2048
    %v2109 = vunpack.c.l.b16 %v2049
    %v2110 = vunpack.c.h.b16 %v2049
    %v2111 = vpack.c.b16 %v2081, %v2079
    %v2112 = vpack.c.b16 %v2082, %v2080
    %v2113 = vpack.c.b16 %v2085, %v2083
    %v2114 = vpack.c.b16 %v2086, %v2084
    %v2115 = vpack.c.b16 %v2089, %v2087
    %v2116 = vpack.c.b16 %v2090, %v2088
    %v2117 = vpack.c.b16 %v2093, %v2091
    %v2118 = vpack.c.b16 %v2094, %v2092
    %v2119 = vpack.c.b16 %v2097, %v2095
    %v2120 = vpack.c.b16 %v2098, %v2096
    %v2121 = vpack.c.b16 %v2101, %v2099
    %v2122 = vpack.c.b16 %v2102, %v2100
    %v2123 = vpack.c.b16 %v2105, %v2103
    %v2124 = vpack.c.b16 %v2106, %v2104
    %v2125 = vpack.c.b16 %v2109, %v2107
    %v2126 = vpack.c.b16 %v2110, %v2108
    %2143 = vmatprep.subr.bf16.mxu0 %v2126
    %2144 = vmatpush1.bf16.msra.mxu0 %v2125
    %2145 = vmatprep.subr.bf16.mxu0 %v2124
    %2146 = vmatpush1.bf16.msra.mxu0 %v2123
    %2147 = vmatprep.subr.bf16.mxu0 %v2122
    %2148 = vmatpush1.bf16.msra.mxu0 %v2121
    %2149 = vmatprep.subr.bf16.mxu0 %v2120
    %2150 = vmatpush1.bf16.msra.mxu0 %v2119
    %2151 = vmatprep.subr.bf16.mxu0 %v2118
    %2152 = vmatpush1.bf16.msra.mxu0 %v2117
    %2153 = vmatprep.subr.bf16.mxu0 %v2116
    %2154 = vmatpush1.bf16.msra.mxu0 %v2115
    %2155 = vmatprep.subr.bf16.mxu0 %v2114
    %2156 = vmatpush1.bf16.msra.mxu0 %v2113
    %2157 = vmatprep.subr.bf16.mxu0 %v2112
    %2158 = vmatpush1.bf16.msra.mxu0 %v2111
    %2159 = vmatprep.subr.bf16.mxu0 0
    %2160 = vmatpush2.bf16.msra.mxu0 0
    %2161 = vmatprep.subr.bf16.mxu0 0
    %2162 = vmatpush2.bf16.msra.mxu0 0
    %2163 = vmatprep.subr.bf16.mxu0 0
    %2164 = vmatpush2.bf16.msra.mxu0 0
    %2165 = vmatprep.subr.bf16.mxu0 0
    %2166 = vmatpush2.bf16.msra.mxu0 0
    %2167 = vmatprep.subr.bf16.mxu0 0
    %2168 = vmatpush2.bf16.msra.mxu0 0
    %2169 = vmatprep.subr.bf16.mxu0 0
    %2170 = vmatpush2.bf16.msra.mxu0 0
    %2171 = vmatprep.subr.bf16.mxu0 0
    %2172 = vmatpush2.bf16.msra.mxu0 0
    %2173 = vmatprep.subr.bf16.mxu0 0
    %2174 = vmatpush2.bf16.msra.mxu0 0
    %2175 = vmatprep.mubr.bf16.mxu0 0
    %2176 = vmatmul.mubr.bf16.gmra.mxu0 %v2032
    %v2177 = vpop.f32.mrf.mxu0
    %v2178 = vadd.f32 %v2056, %v2177
    %v2179 = vpop.f32.mrf.mxu0
    %v2180 = vadd.f32 %v2060, %v2179
    %v2181 = vpop.f32.mrf.mxu0
    %v2182 = vadd.f32 %v2056, %v2181
    %v2183 = vpop.f32.mrf.mxu0
    %v2184 = vadd.f32 %v2060, %v2183
    %2185 = vdwg.mxu0
    %v2186 = vmul.f32 %v2178, 0.5
    %v2187 = vmul.f32 %v2180, 0.5
    %v2188 = vmul.f32 %v2182, 0.5
    %v2189 = vmul.f32 %v2184, 0.5
    %v2190 = vmul.f32 %v2178, 0.70710677
    %v2191 = vmul.f32 %v2180, 0.70710677
    %v2192 = vmul.f32 %v2182, 0.70710677
    %v2193 = vmul.f32 %v2184, 0.70710677
    %vm2194 = vcmp.ge.f32.partialorder %v2190, 0.0
    %vm2195 = vcmp.ge.f32.partialorder %v2191, 0.0
    %vm2196 = vcmp.ge.f32.partialorder %v2192, 0.0
    %vm2197 = vcmp.ge.f32.partialorder %v2193, 0.0
    %v2198 = vsel %vm2194, 1.0, -1.0
    %v2199 = vsel %vm2195, 1.0, -1.0
    %v2200 = vsel %vm2196, 1.0, -1.0
    %v2201 = vsel %vm2197, 1.0, -1.0
    %v2202 = vand.u32 2147483647, %v2190
    %v2203 = vand.u32 2147483647, %v2191
    %v2204 = vand.u32 2147483647, %v2192
    %v2205 = vand.u32 2147483647, %v2193
    %v2206 = vmul.f32 %v2202, 0.3275911
    %v2207 = vmul.f32 %v2203, 0.3275911
    %v2208 = vmul.f32 %v2204, 0.3275911
    %v2209 = vmul.f32 %v2205, 0.3275911
    %v2210 = vadd.f32 %v2206, 1.0
    %v2211 = vadd.f32 %v2207, 1.0
    %v2212 = vadd.f32 %v2208, 1.0
    %v2213 = vadd.f32 %v2209, 1.0
    %v2214 = vrcp.pop %v2210
    %v2215 = vmul.f32 1.0, %v2214
    %v2216 = vrcp.pop %v2211
    %v2217 = vmul.f32 1.0, %v2216
    %v2218 = vrcp.pop %v2212
    %v2219 = vmul.f32 1.0, %v2218
    %v2220 = vrcp.pop %v2213
    %v2221 = vmul.f32 1.0, %v2220
    %v2222 = vmul.f32 %v2215, 1.0614054
    %v2223 = vmul.f32 %v2217, 1.0614054
    %v2224 = vmul.f32 %v2219, 1.0614054
    %v2225 = vmul.f32 %v2221, 1.0614054
    %v2226 = vadd.f32 %v2222, -1.4531521
    %v2227 = vadd.f32 %v2223, -1.4531521
    %v2228 = vadd.f32 %v2224, -1.4531521
    %v2229 = vadd.f32 %v2225, -1.4531521
    %v2230 = vmul.f32 %v2226, %v2215
    %v2231 = vmul.f32 %v2227, %v2217
    %v2232 = vmul.f32 %v2228, %v2219
    %v2233 = vmul.f32 %v2229, %v2221
    %v2234 = vadd.f32 %v2230, 1.4214138
    %v2235 = vadd.f32 %v2231, 1.4214138
    %v2236 = vadd.f32 %v2232, 1.4214138
    %v2237 = vadd.f32 %v2233, 1.4214138
    %v2238 = vmul.f32 %v2234, %v2215
    %v2239 = vmul.f32 %v2235, %v2217
    %v2240 = vmul.f32 %v2236, %v2219
    %v2241 = vmul.f32 %v2237, %v2221
    %v2242 = vadd.f32 %v2238, -0.28449672
    %v2243 = vadd.f32 %v2239, -0.28449672
    %v2244 = vadd.f32 %v2240, -0.28449672
    %v2245 = vadd.f32 %v2241, -0.28449672
    %v2246 = vmul.f32 %v2242, %v2215
    %v2247 = vmul.f32 %v2243, %v2217
    %v2248 = vmul.f32 %v2244, %v2219
    %v2249 = vmul.f32 %v2245, %v2221
    %v2250 = vadd.f32 %v2246, 0.2548296
    %v2251 = vadd.f32 %v2247, 0.2548296
    %v2252 = vadd.f32 %v2248, 0.2548296
    %v2253 = vadd.f32 %v2249, 0.2548296
    %v2254 = vmul.f32 %v2250, %v2215
    %v2255 = vmul.f32 %v2251, %v2217
    %v2256 = vmul.f32 %v2252, %v2219
    %v2257 = vmul.f32 %v2253, %v2221
    %v2258 = vsub.f32 0.0, %v2202
    %v2259 = vsub.f32 0.0, %v2203
    %v2260 = vsub.f32 0.0, %v2204
    %v2261 = vsub.f32 0.0, %v2205
    %v2262 = vmul.f32 %v2258, %v2202
    %v2263 = vmul.f32 %v2259, %v2203
    %v2264 = vmul.f32 %v2260, %v2204
    %v2265 = vmul.f32 %v2261, %v2205
    %v2266 = vmul.f32 %v2262, 1.442695
    %v2267 = vpow.pop %v2266
    %v2268 = vmul.f32 %v2263, 1.442695
    %v2269 = vpow.pop %v2268
    %v2270 = vmul.f32 %v2264, 1.442695
    %v2271 = vpow.pop %v2270
    %v2272 = vmul.f32 %v2265, 1.442695
    %v2273 = vpow.pop %v2272
    %v2274 = vmul.f32 %v2254, %v2267
    %v2275 = vmul.f32 %v2255, %v2269
    %v2276 = vmul.f32 %v2256, %v2271
    %v2277 = vmul.f32 %v2257, %v2273
    %v2278 = vsub.f32 1.0, %v2274
    %v2279 = vsub.f32 1.0, %v2275
    %v2280 = vsub.f32 1.0, %v2276
    %v2281 = vsub.f32 1.0, %v2277
    %v2282 = vmul.f32 %v2198, %v2278
    %v2283 = vmul.f32 %v2199, %v2279
    %v2284 = vmul.f32 %v2200, %v2280
    %v2285 = vmul.f32 %v2201, %v2281
    %v2286 = vadd.f32 %v2282, 1.0
    %v2287 = vadd.f32 %v2283, 1.0
    %v2288 = vadd.f32 %v2284, 1.0
    %v2289 = vadd.f32 %v2285, 1.0
    %v2290 = vmul.f32 %v2186, %v2286
    %v2291 = vmul.f32 %v2187, %v2287
    %v2292 = vmul.f32 %v2188, %v2288
    %v2293 = vmul.f32 %v2189, %v2289
    %v2294 = vpack.c.bf16 %v2292, %v2290
    %v2295 = vpack.c.bf16 %v2293, %v2291
    %s2296 = scalar_lea.vmem [#allocation22], 128
    %v2297 = vld [vmem:[%s2296] sm:$0xf]
    %v2298 = vld [vmem:[%s2296 + $0x4] sm:$0xf]
    %v2299 = vld [vmem:[%s2296 + $0x8] sm:$0xf]
    %v2300 = vld [vmem:[%s2296 + $0xc] sm:$0xf]
    %v2301 = vld [vmem:[%s2296 + $0x10] sm:$0xf]
    %v2302 = vld [vmem:[%s2296 + $0x14] sm:$0xf]
    %v2303 = vld [vmem:[%s2296 + $0x18] sm:$0xf]
    %v2304 = vld [vmem:[%s2296 + $0x1c] sm:$0xf]
    %v2305 = vld [vmem:[%s2296 + $0x20] sm:$0xf]
    %v2306 = vld [vmem:[%s2296 + $0x24] sm:$0xf]
    %v2307 = vld [vmem:[%s2296 + $0x28] sm:$0xf]
    %v2308 = vld [vmem:[%s2296 + $0x2c] sm:$0xf]
    %v2309 = vld [vmem:[%s2296 + $0x30] sm:$0xf]
    %v2310 = vld [vmem:[%s2296 + $0x34] sm:$0xf]
    %v2311 = vld [vmem:[%s2296 + $0x38] sm:$0xf]
    %v2312 = vld [vmem:[%s2296 + $0x3c] sm:$0xf]
    %v2313 = vld [vmem:[%s2296 + $0x40] sm:$0xf]
    %v2314 = vld [vmem:[%s2296 + $0x44] sm:$0xf]
    %v2315 = vld [vmem:[%s2296 + $0x48] sm:$0xf]
    %v2316 = vld [vmem:[%s2296 + $0x4c] sm:$0xf]
    %v2317 = vld [vmem:[%s2296 + $0x50] sm:$0xf]
    %v2318 = vld [vmem:[%s2296 + $0x54] sm:$0xf]
    %v2319 = vld [vmem:[%s2296 + $0x58] sm:$0xf]
    %v2320 = vld [vmem:[%s2296 + $0x5c] sm:$0xf]
    %v2321 = vld [vmem:[%s2296 + $0x60] sm:$0xf]
    %v2322 = vld [vmem:[%s2296 + $0x64] sm:$0xf]
    %v2323 = vld [vmem:[%s2296 + $0x68] sm:$0xf]
    %v2324 = vld [vmem:[%s2296 + $0x6c] sm:$0xf]
    %v2325 = vld [vmem:[%s2296 + $0x70] sm:$0xf]
    %v2326 = vld [vmem:[%s2296 + $0x74] sm:$0xf]
    %v2327 = vld [vmem:[%s2296 + $0x78] sm:$0xf]
    %v2328 = vld [vmem:[%s2296 + $0x7c] sm:$0xf]
    %s2329 = scalar_lea.vmem %s15, 1
    %v2330 = vld [vmem:[%s2329] sm:$0x1]
    %v2332 = vlaneseq
    %v2333 = vshrl.u32 %v2332, 7
    %v2334 = vsub.s32 0, %v2333
    %v2335 = vrot.slane %v2330, %v2334
    %v2369 = vunpack.c.l.b16 %v2297
    %v2370 = vunpack.c.l.b16 %v2298
    %v2371 = vunpack.c.l.b16 %v2299
    %v2372 = vunpack.c.l.b16 %v2300
    %v2373 = vunpack.c.l.b16 %v2301
    %v2374 = vunpack.c.l.b16 %v2302
    %v2375 = vunpack.c.l.b16 %v2303
    %v2376 = vunpack.c.l.b16 %v2304
    %v2377 = vunpack.c.l.b16 %v2305
    %v2378 = vunpack.c.l.b16 %v2306
    %v2379 = vunpack.c.l.b16 %v2307
    %v2380 = vunpack.c.l.b16 %v2308
    %v2381 = vunpack.c.l.b16 %v2309
    %v2382 = vunpack.c.l.b16 %v2310
    %v2383 = vunpack.c.l.b16 %v2311
    %v2384 = vunpack.c.l.b16 %v2312
    %v2385 = vunpack.c.l.b16 %v2313
    %v2386 = vunpack.c.l.b16 %v2314
    %v2387 = vunpack.c.l.b16 %v2315
    %v2388 = vunpack.c.l.b16 %v2316
    %v2389 = vunpack.c.l.b16 %v2317
    %v2390 = vunpack.c.l.b16 %v2318
    %v2391 = vunpack.c.l.b16 %v2319
    %v2392 = vunpack.c.l.b16 %v2320
    %v2393 = vunpack.c.l.b16 %v2321
    %v2394 = vunpack.c.l.b16 %v2322
    %v2395 = vunpack.c.l.b16 %v2323
    %v2396 = vunpack.c.l.b16 %v2324
    %v2397 = vunpack.c.l.b16 %v2325
    %v2398 = vunpack.c.l.b16 %v2326
    %v2399 = vunpack.c.l.b16 %v2327
    %v2400 = vunpack.c.l.b16 %v2328
    %v2401 = vpack.c.b16 %v2370, %v2369
    %v2402 = vpack.c.b16 %v2372, %v2371
    %v2403 = vpack.c.b16 %v2374, %v2373
    %v2404 = vpack.c.b16 %v2376, %v2375
    %v2405 = vpack.c.b16 %v2378, %v2377
    %v2406 = vpack.c.b16 %v2380, %v2379
    %v2407 = vpack.c.b16 %v2382, %v2381
    %v2408 = vpack.c.b16 %v2384, %v2383
    %v2409 = vpack.c.b16 %v2386, %v2385
    %v2410 = vpack.c.b16 %v2388, %v2387
    %v2411 = vpack.c.b16 %v2390, %v2389
    %v2412 = vpack.c.b16 %v2392, %v2391
    %v2413 = vpack.c.b16 %v2394, %v2393
    %v2414 = vpack.c.b16 %v2396, %v2395
    %v2415 = vpack.c.b16 %v2398, %v2397
    %v2416 = vpack.c.b16 %v2400, %v2399
    %2433 = vmatprep.subr.bf16.mxu0 0
    %2434 = vmatpush1.bf16.msra.mxu0 %v2408
    %2435 = vmatprep.subr.bf16.mxu0 0
    %2436 = vmatpush1.bf16.msra.mxu0 %v2407
    %2437 = vmatprep.subr.bf16.mxu0 0
    %2438 = vmatpush1.bf16.msra.mxu0 %v2406
    %2439 = vmatprep.subr.bf16.mxu0 0
    %2440 = vmatpush1.bf16.msra.mxu0 %v2405
    %2441 = vmatprep.subr.bf16.mxu0 0
    %2442 = vmatpush1.bf16.msra.mxu0 %v2404
    %2443 = vmatprep.subr.bf16.mxu0 0
    %2444 = vmatpush1.bf16.msra.mxu0 %v2403
    %2445 = vmatprep.subr.bf16.mxu0 0
    %2446 = vmatpush1.bf16.msra.mxu0 %v2402
    %2447 = vmatprep.subr.bf16.mxu0 0
    %2448 = vmatpush1.bf16.msra.mxu0 %v2401
    %2449 = vmatprep.subr.bf16.mxu0 0
    %2450 = vmatpush2.bf16.msra.mxu0 %v2416
    %2451 = vmatprep.subr.bf16.mxu0 0
    %2452 = vmatpush2.bf16.msra.mxu0 %v2415
    %2453 = vmatprep.subr.bf16.mxu0 0
    %2454 = vmatpush2.bf16.msra.mxu0 %v2414
    %2455 = vmatprep.subr.bf16.mxu0 0
    %2456 = vmatpush2.bf16.msra.mxu0 %v2413
    %2457 = vmatprep.subr.bf16.mxu0 0
    %2458 = vmatpush2.bf16.msra.mxu0 %v2412
    %2459 = vmatprep.subr.bf16.mxu0 0
    %2460 = vmatpush2.bf16.msra.mxu0 %v2411
    %2461 = vmatprep.subr.bf16.mxu0 0
    %2462 = vmatpush2.bf16.msra.mxu0 %v2410
    %2463 = vmatprep.subr.bf16.mxu0 0
    %2464 = vmatpush2.bf16.msra.mxu0 %v2409
    %2465 = vmatprep.mubr.bf16.mxu0 %v2295
    %2466 = vmatmul.mubr.bf16.gmra.mxu0 %v2294
    %v2467 = vpop.f32.mrf.mxu0
    %v2468 = vadd.f32 %v2335, %v2467
    %v2469 = vpop.f32.mrf.mxu0
    %v2470 = vpop.f32.mrf.mxu0
    %v2471 = vadd.f32 %v2335, %v2470
    %v2472 = vpop.f32.mrf.mxu0
    %2473 = vdwg.mxu0
    %v2474 = vadd.f32 %v2030, %v2468
    %v2475 = vadd.f32 %v2031, %v2471
    %s2476 = scalar_lea.vmem %s16, 1
    %v2477 = vld [vmem:[%s2476] sm:$0x1]
    %s2478 = scalar_lea.vmem %s17, 1
    %v2479 = vld [vmem:[%s2478] sm:$0x1]
    %2480 = vadd.xlane.f32.xlu0 %v2474
    %v2481 = vpop.xlane.xlu0 %2480
    %2482 = vadd.xlane.f32.xlu0 %v2475
    %v2483 = vpop.xlane.xlu0 %2482
    %v2484 = vmul.f32 %v2481, %v242
    %v2485 = vmul.f32 %v2483, %v242
    %v2486 = vsub.f32 %v2474, %v2484
    %v2487 = vsub.f32 %v2475, %v2485
    %v2488 = vmul.f32 %v2486, %v2486
    %v2489 = vmul.f32 %v2487, %v2487
    %2490 = vadd.xlane.f32.xlu0 %v2488
    %v2491 = vpop.xlane.xlu0 %2490
    %2492 = vadd.xlane.f32.xlu0 %v2489
    %v2493 = vpop.xlane.xlu0 %2492
    %v2494 = vmul.f32 %v2491, %v242
    %v2495 = vmul.f32 %v2493, %v242
    %v2496 = vadd.f32 %v2494, 1e-12
    %v2497 = vadd.f32 %v2495, 1e-12
    %v2498 = vrsqrt.pop %v2496
    %v2499 = vrsqrt.pop %v2497
    %v2500 = vmul.f32 %v2486, %v2498
    %v2501 = vmul.f32 %v2487, %v2499
    %v2503 = vlaneseq
    %v2504 = vshrl.u32 %v2503, 7
    %v2505 = vsub.s32 0, %v2504
    %v2506 = vrot.slane %v2477, %v2505
    %v2508 = vmul.f32 %v2500, %v2506
    %v2509 = vmul.f32 %v2501, %v2506
    %v2511 = vlaneseq
    %v2512 = vshrl.u32 %v2511, 7
    %v2513 = vsub.s32 0, %v2512
    %v2514 = vrot.slane %v2479, %v2513
    %v2516 = vadd.f32 %v2508, %v2514
    %v2517 = vadd.f32 %v2509, %v2514
    %v2518 = vpack.c.bf16 %v2517, %v2516
    %s2519 = scalar_lea.vmem [#allocation15], 384
    %v2520 = vld [vmem:[%s2519] sm:$0xff]
    %v2521 = vld [vmem:[%s2519 + $0x8] sm:$0xf]
    %v2522 = vld [vmem:[%s2519 + $0xc] sm:$0xff]
    %v2523 = vld [vmem:[%s2519 + $0x14] sm:$0xf]
    %v2524 = vld [vmem:[%s2519 + $0x18] sm:$0xff]
    %v2525 = vld [vmem:[%s2519 + $0x20] sm:$0xf]
    %v2526 = vld [vmem:[%s2519 + $0x24] sm:$0xff]
    %v2527 = vld [vmem:[%s2519 + $0x2c] sm:$0xf]
    %v2528 = vld [vmem:[%s2519 + $0x30] sm:$0xff]
    %v2529 = vld [vmem:[%s2519 + $0x38] sm:$0xf]
    %v2530 = vld [vmem:[%s2519 + $0x3c] sm:$0xff]
    %v2531 = vld [vmem:[%s2519 + $0x44] sm:$0xf]
    %v2532 = vld [vmem:[%s2519 + $0x48] sm:$0xff]
    %v2533 = vld [vmem:[%s2519 + $0x50] sm:$0xf]
    %v2534 = vld [vmem:[%s2519 + $0x54] sm:$0xff]
    %v2535 = vld [vmem:[%s2519 + $0x5c] sm:$0xf]
    %v2536 = vld [vmem:[%s2519 + $0x60] sm:$0xff]
    %v2537 = vld [vmem:[%s2519 + $0x68] sm:$0xf]
    %v2538 = vld [vmem:[%s2519 + $0x6c] sm:$0xff]
    %v2539 = vld [vmem:[%s2519 + $0x74] sm:$0xf]
    %v2540 = vld [vmem:[%s2519 + $0x78] sm:$0xff]
    %v2541 = vld [vmem:[%s2519 + $0x80] sm:$0xf]
    %v2542 = vld [vmem:[%s2519 + $0x84] sm:$0xff]
    %v2543 = vld [vmem:[%s2519 + $0x8c] sm:$0xf]
    %v2544 = vld [vmem:[%s2519 + $0x90] sm:$0xff]
    %v2545 = vld [vmem:[%s2519 + $0x98] sm:$0xf]
    %v2546 = vld [vmem:[%s2519 + $0x9c] sm:$0xff]
    %v2547 = vld [vmem:[%s2519 + $0xa4] sm:$0xf]
    %v2548 = vld [vmem:[%s2519 + $0xa8] sm:$0xff]
    %v2549 = vld [vmem:[%s2519 + $0xb0] sm:$0xf]
    %v2550 = vld [vmem:[%s2519 + $0xb4] sm:$0xff]
    %v2551 = vld [vmem:[%s2519 + $0xbc] sm:$0xf]
    %s2552 = scalar_lea.vmem %s7, 6
    %v2553 = vld [vmem:[%s2552] sm:$0x7]
    %v2555 = vlaneseq
    %v2556 = vshrl.u32 %v2555, 7
    %v2557 = vsub.s32 0, %v2556
    %v2558 = vrot.slane %v2553, %v2557
    %v2559 = vlaneseq
    %v2560 = vshrl.u32 %v2559, 7
    %v2561 = vsub.s32 1, %v2560
    %v2562 = vrot.slane %v2553, %v2561
    %v2563 = vlaneseq
    %v2564 = vshrl.u32 %v2563, 7
    %v2565 = vsub.s32 2, %v2564
    %v2566 = vrot.slane %v2553, %v2565
    %v2602 = vunpack.c.l.b16 %v2520
    %v2603 = vunpack.c.h.b16 %v2520
    %v2604 = vunpack.c.l.b16 %v2521
    %v2605 = vunpack.c.l.b16 %v2522
    %v2606 = vunpack.c.h.b16 %v2522
    %v2607 = vunpack.c.l.b16 %v2523
    %v2608 = vunpack.c.l.b16 %v2524
    %v2609 = vunpack.c.h.b16 %v2524
    %v2610 = vunpack.c.l.b16 %v2525
    %v2611 = vunpack.c.l.b16 %v2526
    %v2612 = vunpack.c.h.b16 %v2526
    %v2613 = vunpack.c.l.b16 %v2527
    %v2614 = vunpack.c.l.b16 %v2528
    %v2615 = vunpack.c.h.b16 %v2528
    %v2616 = vunpack.c.l.b16 %v2529
    %v2617 = vunpack.c.l.b16 %v2530
    %v2618 = vunpack.c.h.b16 %v2530
    %v2619 = vunpack.c.l.b16 %v2531
    %v2620 = vunpack.c.l.b16 %v2532
    %v2621 = vunpack.c.h.b16 %v2532
    %v2622 = vunpack.c.l.b16 %v2533
    %v2623 = vunpack.c.l.b16 %v2534
    %v2624 = vunpack.c.h.b16 %v2534
    %v2625 = vunpack.c.l.b16 %v2535
    %v2626 = vunpack.c.l.b16 %v2536
    %v2627 = vunpack.c.h.b16 %v2536
    %v2628 = vunpack.c.l.b16 %v2537
    %v2629 = vunpack.c.l.b16 %v2538
    %v2630 = vunpack.c.h.b16 %v2538
    %v2631 = vunpack.c.l.b16 %v2539
    %v2632 = vunpack.c.l.b16 %v2540
    %v2633 = vunpack.c.h.b16 %v2540
    %v2634 = vunpack.c.l.b16 %v2541
    %v2635 = vunpack.c.l.b16 %v2542
    %v2636 = vunpack.c.h.b16 %v2542
    %v2637 = vunpack.c.l.b16 %v2543
    %v2638 = vunpack.c.l.b16 %v2544
    %v2639 = vunpack.c.h.b16 %v2544
    %v2640 = vunpack.c.l.b16 %v2545
    %v2641 = vunpack.c.l.b16 %v2546
    %v2642 = vunpack.c.h.b16 %v2546
    %v2643 = vunpack.c.l.b16 %v2547
    %v2644 = vunpack.c.l.b16 %v2548
    %v2645 = vunpack.c.h.b16 %v2548
    %v2646 = vunpack.c.l.b16 %v2549
    %v2647 = vunpack.c.l.b16 %v2550
    %v2648 = vunpack.c.h.b16 %v2550
    %v2649 = vunpack.c.l.b16 %v2551
    %v2650 = vpack.c.b16 %v2605, %v2602
    %v2651 = vpack.c.b16 %v2606, %v2603
    %v2652 = vpack.c.b16 %v2607, %v2604
    %v2653 = vpack.c.b16 %v2611, %v2608
    %v2654 = vpack.c.b16 %v2612, %v2609
    %v2655 = vpack.c.b16 %v2613, %v2610
    %v2656 = vpack.c.b16 %v2617, %v2614
    %v2657 = vpack.c.b16 %v2618, %v2615
    %v2658 = vpack.c.b16 %v2619, %v2616
    %v2659 = vpack.c.b16 %v2623, %v2620
    %v2660 = vpack.c.b16 %v2624, %v2621
    %v2661 = vpack.c.b16 %v2625, %v2622
    %v2662 = vpack.c.b16 %v2629, %v2626
    %v2663 = vpack.c.b16 %v2630, %v2627
    %v2664 = vpack.c.b16 %v2631, %v2628
    %v2665 = vpack.c.b16 %v2635, %v2632
    %v2666 = vpack.c.b16 %v2636, %v2633
    %v2667 = vpack.c.b16 %v2637, %v2634
    %v2668 = vpack.c.b16 %v2641, %v2638
    %v2669 = vpack.c.b16 %v2642, %v2639
    %v2670 = vpack.c.b16 %v2643, %v2640
    %v2671 = vpack.c.b16 %v2647, %v2644
    %v2672 = vpack.c.b16 %v2648, %v2645
    %v2673 = vpack.c.b16 %v2649, %v2646
    %2698 = vmatprep.subr.bf16.mxu0 %v2672
    %2699 = vmatpush1.bf16.msra.mxu0 %v2671
    %2700 = vmatprep.subr.bf16.mxu0 %v2669
    %2701 = vmatpush1.bf16.msra.mxu0 %v2668
    %2702 = vmatprep.subr.bf16.mxu0 %v2666
    %2703 = vmatpush1.bf16.msra.mxu0 %v2665
    %2704 = vmatprep.subr.bf16.mxu0 %v2663
    %2705 = vmatpush1.bf16.msra.mxu0 %v2662
    %2706 = vmatprep.subr.bf16.mxu0 %v2660
    %2707 = vmatpush1.bf16.msra.mxu0 %v2659
    %2708 = vmatprep.subr.bf16.mxu0 %v2657
    %2709 = vmatpush1.bf16.msra.mxu0 %v2656
    %2710 = vmatprep.subr.bf16.mxu0 %v2654
    %2711 = vmatpush1.bf16.msra.mxu0 %v2653
    %2712 = vmatprep.subr.bf16.mxu0 %v2651
    %2713 = vmatpush1.bf16.msra.mxu0 %v2650
    %2714 = vmatprep.subr.bf16.mxu0 0
    %2715 = vmatpush2.bf16.msra.mxu0 0
    %2716 = vmatprep.subr.bf16.mxu0 0
    %2717 = vmatpush2.bf16.msra.mxu0 0
    %2718 = vmatprep.subr.bf16.mxu0 0
    %2719 = vmatpush2.bf16.msra.mxu0 0
    %2720 = vmatprep.subr.bf16.mxu0 0
    %2721 = vmatpush2.bf16.msra.mxu0 0
    %2722 = vmatprep.subr.bf16.mxu0 0
    %2723 = vmatpush2.bf16.msra.mxu0 0
    %2724 = vmatprep.subr.bf16.mxu0 0
    %2725 = vmatpush2.bf16.msra.mxu0 0
    %2726 = vmatprep.subr.bf16.mxu0 0
    %2727 = vmatpush2.bf16.msra.mxu0 0
    %2728 = vmatprep.subr.bf16.mxu0 0
    %2729 = vmatpush2.bf16.msra.mxu0 0
    %2730 = vmatprep.mubr.bf16.mxu0 0
    %2731 = vmatmul.mubr.bf16.gmra.mxu0 %v2518
    %v2732 = vpop.f32.mrf.mxu0
    %v2733 = vadd.f32 %v2558, %v2732
    %v2734 = vpop.f32.mrf.mxu0
    %v2735 = vadd.f32 %v2562, %v2734
    %v2736 = vpop.f32.mrf.mxu0
    %v2737 = vadd.f32 %v2558, %v2736
    %v2738 = vpop.f32.mrf.mxu0
    %v2739 = vadd.f32 %v2562, %v2738
    %2740 = vdwg.mxu0
    %2741 = vmatprep.subr.bf16.mxu0 0
    %2742 = vmatpush1.bf16.msra.mxu0 %v2673
    %2743 = vmatprep.subr.bf16.mxu0 0
    %2744 = vmatpush1.bf16.msra.mxu0 %v2670
    %2745 = vmatprep.subr.bf16.mxu0 0
    %2746 = vmatpush1.bf16.msra.mxu0 %v2667
    %2747 = vmatprep.subr.bf16.mxu0 0
    %2748 = vmatpush1.bf16.msra.mxu0 %v2664
    %2749 = vmatprep.subr.bf16.mxu0 0
    %2750 = vmatpush1.bf16.msra.mxu0 %v2661
    %2751 = vmatprep.subr.bf16.mxu0 0
    %2752 = vmatpush1.bf16.msra.mxu0 %v2658
    %2753 = vmatprep.subr.bf16.mxu0 0
    %2754 = vmatpush1.bf16.msra.mxu0 %v2655
    %2755 = vmatprep.subr.bf16.mxu0 0
    %2756 = vmatpush1.bf16.msra.mxu0 %v2652
    %2757 = vmatprep.subr.bf16.mxu0 0
    %2758 = vmatpush2.bf16.msra.mxu0 0
    %2759 = vmatprep.subr.bf16.mxu0 0
    %2760 = vmatpush2.bf16.msra.mxu0 0
    %2761 = vmatprep.subr.bf16.mxu0 0
    %2762 = vmatpush2.bf16.msra.mxu0 0
    %2763 = vmatprep.subr.bf16.mxu0 0
    %2764 = vmatpush2.bf16.msra.mxu0 0
    %2765 = vmatprep.subr.bf16.mxu0 0
    %2766 = vmatpush2.bf16.msra.mxu0 0
    %2767 = vmatprep.subr.bf16.mxu0 0
    %2768 = vmatpush2.bf16.msra.mxu0 0
    %2769 = vmatprep.subr.bf16.mxu0 0
    %2770 = vmatpush2.bf16.msra.mxu0 0
    %2771 = vmatprep.subr.bf16.mxu0 0
    %2772 = vmatpush2.bf16.msra.mxu0 0
    %2773 = vmatprep.mubr.bf16.mxu0 0
    %2774 = vmatmul.mubr.bf16.gmra.mxu0 %v2518
    %v2775 = vpop.f32.mrf.mxu0
    %v2776 = vadd.f32 %v2566, %v2775
    %v2777 = vpop.f32.mrf.mxu0
    %v2778 = vpop.f32.mrf.mxu0
    %v2779 = vadd.f32 %v2566, %v2778
    %v2780 = vpop.f32.mrf.mxu0
    %2781 = vdwg.mxu0
    %v2782 = vmul.f32 %v2735, %v279
    %v2783 = vmul.f32 %v2739, %v280
    %v2784 = vmul.f32 %v2735, %v281
    %v2785 = vmul.f32 %v2739, %v282
    %v2786 = vmul.f32 %v2735, %v283
    %v2787 = vmul.f32 %v2739, %v284
    %v2788 = vmul.f32 %v2735, %v285
    %v2789 = vmul.f32 %v2739, %v286
    %v2790 = vpack.c.bf16 %v2783, %v2782
    %v2791 = vpack.c.bf16 %v2785, %v2784
    %v2792 = vpack.c.bf16 %v2787, %v2786
    %v2793 = vpack.c.bf16 %v2789, %v2788
    %v2794 = vmul.f32 %v2776, %v279
    %v2795 = vmul.f32 %v2779, %v280
    %v2796 = vmul.f32 %v2776, %v281
    %v2797 = vmul.f32 %v2779, %v282
    %v2798 = vmul.f32 %v2776, %v283
    %v2799 = vmul.f32 %v2779, %v284
    %v2800 = vmul.f32 %v2776, %v285
    %v2801 = vmul.f32 %v2779, %v286
    %v2802 = vpack.c.bf16 %v2795, %v2794
    %v2803 = vpack.c.bf16 %v2797, %v2796
    %v2804 = vpack.c.bf16 %v2799, %v2798
    %v2805 = vpack.c.bf16 %v2801, %v2800
    %v2806 = vpack.c.bf16 %v2737, %v2733
    %2807 = vmatprep.subr.bf16.mxu0 0
    %2808 = vmatpush1.bf16.xpose.msra.mxu0 0
    %2809 = vmatprep.subr.bf16.mxu0 0
    %2810 = vmatpush1.bf16.xpose.msra.mxu0 0
    %2811 = vmatprep.subr.bf16.mxu0 0
    %2812 = vmatpush1.bf16.xpose.msra.mxu0 0
    %2813 = vmatprep.subr.bf16.mxu0 0
    %2814 = vmatpush1.bf16.xpose.msra.mxu0 0
    %2815 = vmatprep.subr.bf16.mxu0 0
    %2816 = vmatpush1.bf16.xpose.msra.mxu0 %v2793
    %2817 = vmatprep.subr.bf16.mxu0 0
    %2818 = vmatpush1.bf16.xpose.msra.mxu0 %v2792
    %2819 = vmatprep.subr.bf16.mxu0 0
    %2820 = vmatpush1.bf16.xpose.msra.mxu0 %v2791
    %2821 = vmatprep.subr.bf16.mxu0 0
    %2822 = vmatpush1.bf16.xpose.msra.mxu0 %v2790
    %2823 = vmatprep.subr.bf16.mxu0 0
    %2824 = vmatpush2.bf16.xpose.msra.mxu0 0
    %2825 = vmatprep.subr.bf16.mxu0 0
    %2826 = vmatpush2.bf16.xpose.msra.mxu0 0
    %2827 = vmatprep.subr.bf16.mxu0 0
    %2828 = vmatpush2.bf16.xpose.msra.mxu0 0
    %2829 = vmatprep.subr.bf16.mxu0 0
    %2830 = vmatpush2.bf16.xpose.msra.mxu0 0
    %2831 = vmatprep.subr.bf16.mxu0 0
    %2832 = vmatpush2.bf16.xpose.msra.mxu0 0
    %2833 = vmatprep.subr.bf16.mxu0 0
    %2834 = vmatpush2.bf16.xpose.msra.mxu0 0
    %2835 = vmatprep.subr.bf16.mxu0 0
    %2836 = vmatpush2.bf16.xpose.msra.mxu0 0
    %2837 = vmatprep.subr.bf16.mxu0 0
    %2838 = vmatpush2.bf16.xpose.msra.mxu0 0
    %2839 = vmatprep.mubr.bf16.mxu0 0
    %2840 = vmatmul.mubr.bf16.gmra.mxu0 %v2806
    %v2841 = vpop.f32.mrf.mxu0
    %v2842 = vadd.f32 %v277, %v2841
    %v2843 = vpop.f32.mrf.mxu0
    %v2844 = vpop.f32.mrf.mxu0
    %v2845 = vadd.f32 %v278, %v2844
    %v2846 = vpop.f32.mrf.mxu0
    %2847 = vdwg.mxu0
    %v2848 = vsel %vm623, %v2842, -inf
    %2849 = vmax.xlane.f32.xlu0 %v2848
    %v2850 = vpop.xlane.xlu0 %2849
    %v2851 = vsel %vm623, %v2845, -inf
    %2852 = vmax.xlane.f32.xlu0 %v2851
    %v2853 = vpop.xlane.xlu0 %2852
    %v2854 = vsub.f32 %v2842, %v2850
    %v2855 = vsub.f32 %v2845, %v2853
    %v2856 = vmul.f32 %v2854, 1.442695
    %v2857 = vpow.pop %v2856
    %v2858 = vmul.f32 %v2855, 1.442695
    %v2859 = vpow.pop %v2858
    %v2861 = vsel %vm623, %v2857, 0
    %v2864 = vsel %vm623, %v2859, 0
    %2866 = vmatprep.subr.mxu0 0.0
    %2867 = vmatpush1.msra.mxu0 0.0
    %2868 = vmatprep.subr.mxu0 0.0
    %2869 = vmatpush1.msra.mxu0 0.0
    %2870 = vmatprep.subr.mxu0 0.0
    %2871 = vmatpush1.msra.mxu0 0.0
    %2872 = vmatprep.subr.mxu0 0.0
    %2873 = vmatpush1.msra.mxu0 0.0
    %2874 = vmatprep.subr.mxu0 0.0
    %2875 = vmatpush1.msra.mxu0 0.0
    %2876 = vmatprep.subr.mxu0 0.0
    %2877 = vmatpush1.msra.mxu0 0.0
    %2878 = vmatprep.subr.mxu0 0.0
    %2879 = vmatpush1.msra.mxu0 0.0
    %2880 = vmatprep.subr.mxu0 0.0
    %2881 = vmatpush1.msra.mxu0 0.0
    %2882 = vmatprep.subr.mxu0 0.0
    %2883 = vmatpush1.msra.mxu0 %v294
    %2884 = vmatprep.subr.mxu0 0.0
    %2885 = vmatpush1.msra.mxu0 %v293
    %2886 = vmatprep.subr.mxu0 0.0
    %2887 = vmatpush1.msra.mxu0 %v292
    %2888 = vmatprep.subr.mxu0 0.0
    %2889 = vmatpush1.msra.mxu0 %v291
    %2890 = vmatprep.subr.mxu0 0.0
    %2891 = vmatpush1.msra.mxu0 %v290
    %2892 = vmatprep.subr.mxu0 0.0
    %2893 = vmatpush1.msra.mxu0 %v289
    %2894 = vmatprep.subr.mxu0 0.0
    %2895 = vmatpush1.msra.mxu0 %v288
    %2896 = vmatprep.subr.mxu0 0.0
    %2897 = vmatpush1.msra.mxu0 %v287
    %2898 = vmatprep.subr.mxu0 0.0
    %2899 = vmatpush2.msra.mxu0 0.0
    %2900 = vmatprep.subr.mxu0 0.0
    %2901 = vmatpush2.msra.mxu0 0.0
    %2902 = vmatprep.subr.mxu0 0.0
    %2903 = vmatpush2.msra.mxu0 0.0
    %2904 = vmatprep.subr.mxu0 0.0
    %2905 = vmatpush2.msra.mxu0 0.0
    %2906 = vmatprep.subr.mxu0 0.0
    %2907 = vmatpush2.msra.mxu0 0.0
    %2908 = vmatprep.subr.mxu0 0.0
    %2909 = vmatpush2.msra.mxu0 0.0
    %2910 = vmatprep.subr.mxu0 0.0
    %2911 = vmatpush2.msra.mxu0 0.0
    %2912 = vmatprep.subr.mxu0 0.0
    %2913 = vmatpush2.msra.mxu0 0.0
    %2914 = vmatprep.subr.mxu0 0.0
    %2915 = vmatpush2.msra.mxu0 0.0
    %2916 = vmatprep.subr.mxu0 0.0
    %2917 = vmatpush2.msra.mxu0 0.0
    %2918 = vmatprep.subr.mxu0 0.0
    %2919 = vmatpush2.msra.mxu0 0.0
    %2920 = vmatprep.subr.mxu0 0.0
    %2921 = vmatpush2.msra.mxu0 0.0
    %2922 = vmatprep.subr.mxu0 0.0
    %2923 = vmatpush2.msra.mxu0 0.0
    %2924 = vmatprep.subr.mxu0 0.0
    %2925 = vmatpush2.msra.mxu0 0.0
    %2926 = vmatprep.subr.mxu0 0.0
    %2927 = vmatpush2.msra.mxu0 0.0
    %2928 = vmatprep.subr.mxu0 0.0
    %2929 = vmatpush2.msra.mxu0 0.0
    %2930 = vmatprep.mubr.f32.mxu0 0.0
    %2931 = vmatmul.mubr.f32.gmra.mxu0 %v2861
    %v2932 = vpop.f32.mrf.mxu0
    %v2933 = vadd.f32 0.0, %v2932
    %v2934 = vpop.f32.mrf.mxu0
    %2935 = vmatprep.mubr.f32.mxu0 0.0
    %2936 = vmatmul.mubr.f32.gmra.mxu0 %v2864
    %v2937 = vpop.f32.mrf.mxu0
    %v2938 = vadd.f32 0.0, %v2937
    %v2939 = vpop.f32.mrf.mxu0
    %2940 = vdwg.mxu0
    %v2941 = vrcp.pop %v2933
    %v2942 = vrcp.pop %v2938
    %v2943 = vmul.f32 %v2857, %v2941
    %v2944 = vmul.f32 %v2859, %v2942
    %v2945 = vpack.c.bf16 %v2944, %v2943
    %v2947 = vsel %vm623, %v2945, 0
    %2949 = vmatprep.subr.bf16.mxu0 0
    %2950 = vmatpush1.bf16.msra.mxu0 0
    %2951 = vmatprep.subr.bf16.mxu0 0
    %2952 = vmatpush1.bf16.msra.mxu0 0
    %2953 = vmatprep.subr.bf16.mxu0 0
    %2954 = vmatpush1.bf16.msra.mxu0 0
    %2955 = vmatprep.subr.bf16.mxu0 0
    %2956 = vmatpush1.bf16.msra.mxu0 0
    %2957 = vmatprep.subr.bf16.mxu0 0
    %2958 = vmatpush1.bf16.msra.mxu0 %v2805
    %2959 = vmatprep.subr.bf16.mxu0 0
    %2960 = vmatpush1.bf16.msra.mxu0 %v2804
    %2961 = vmatprep.subr.bf16.mxu0 0
    %2962 = vmatpush1.bf16.msra.mxu0 %v2803
    %2963 = vmatprep.subr.bf16.mxu0 0
    %2964 = vmatpush1.bf16.msra.mxu0 %v2802
    %2965 = vmatprep.subr.bf16.mxu0 0
    %2966 = vmatpush2.bf16.msra.mxu0 0
    %2967 = vmatprep.subr.bf16.mxu0 0
    %2968 = vmatpush2.bf16.msra.mxu0 0
    %2969 = vmatprep.subr.bf16.mxu0 0
    %2970 = vmatpush2.bf16.msra.mxu0 0
    %2971 = vmatprep.subr.bf16.mxu0 0
    %2972 = vmatpush2.bf16.msra.mxu0 0
    %2973 = vmatprep.subr.bf16.mxu0 0
    %2974 = vmatpush2.bf16.msra.mxu0 0
    %2975 = vmatprep.subr.bf16.mxu0 0
    %2976 = vmatpush2.bf16.msra.mxu0 0
    %2977 = vmatprep.subr.bf16.mxu0 0
    %2978 = vmatpush2.bf16.msra.mxu0 0
    %2979 = vmatprep.subr.bf16.mxu0 0
    %2980 = vmatpush2.bf16.msra.mxu0 0
    %2981 = vmatprep.mubr.bf16.mxu0 0
    %2982 = vmatmul.mubr.bf16.gmra.mxu0 %v2947
    %v2983 = vpop.f32.mrf.mxu0
    %v2984 = vadd.f32 0.0, %v2983
    %v2985 = vpop.f32.mrf.mxu0
    %v2986 = vpop.f32.mrf.mxu0
    %v2987 = vadd.f32 0.0, %v2986
    %v2988 = vpop.f32.mrf.mxu0
    %2989 = vdwg.mxu0
    %v2990 = vpack.c.bf16 %v2987, %v2984
    %s2991 = scalar_lea.vmem [#allocation16], 128
    %v2992 = vld [vmem:[%s2991] sm:$0xf]
    %v2993 = vld [vmem:[%s2991 + $0x4] sm:$0xf]
    %v2994 = vld [vmem:[%s2991 + $0x8] sm:$0xf]
    %v2995 = vld [vmem:[%s2991 + $0xc] sm:$0xf]
    %v2996 = vld [vmem:[%s2991 + $0x10] sm:$0xf]
    %v2997 = vld [vmem:[%s2991 + $0x14] sm:$0xf]
    %v2998 = vld [vmem:[%s2991 + $0x18] sm:$0xf]
    %v2999 = vld [vmem:[%s2991 + $0x1c] sm:$0xf]
    %v3000 = vld [vmem:[%s2991 + $0x20] sm:$0xf]
    %v3001 = vld [vmem:[%s2991 + $0x24] sm:$0xf]
    %v3002 = vld [vmem:[%s2991 + $0x28] sm:$0xf]
    %v3003 = vld [vmem:[%s2991 + $0x2c] sm:$0xf]
    %v3004 = vld [vmem:[%s2991 + $0x30] sm:$0xf]
    %v3005 = vld [vmem:[%s2991 + $0x34] sm:$0xf]
    %v3006 = vld [vmem:[%s2991 + $0x38] sm:$0xf]
    %v3007 = vld [vmem:[%s2991 + $0x3c] sm:$0xf]
    %s3008 = scalar_lea.vmem [#allocation18], 2
    %v3009 = vld [vmem:[%s3008] sm:$0x1]
    %v3011 = vlaneseq
    %v3012 = vshrl.u32 %v3011, 7
    %v3013 = vsub.s32 0, %v3012
    %v3014 = vrot.slane %v3009, %v3013
    %v3032 = vunpack.c.l.b16 %v2992
    %v3033 = vunpack.c.l.b16 %v2993
    %v3034 = vunpack.c.l.b16 %v2994
    %v3035 = vunpack.c.l.b16 %v2995
    %v3036 = vunpack.c.l.b16 %v2996
    %v3037 = vunpack.c.l.b16 %v2997
    %v3038 = vunpack.c.l.b16 %v2998
    %v3039 = vunpack.c.l.b16 %v2999
    %v3040 = vunpack.c.l.b16 %v3000
    %v3041 = vunpack.c.l.b16 %v3001
    %v3042 = vunpack.c.l.b16 %v3002
    %v3043 = vunpack.c.l.b16 %v3003
    %v3044 = vunpack.c.l.b16 %v3004
    %v3045 = vunpack.c.l.b16 %v3005
    %v3046 = vunpack.c.l.b16 %v3006
    %v3047 = vunpack.c.l.b16 %v3007
    %v3048 = vpack.c.b16 %v3033, %v3032
    %v3049 = vpack.c.b16 %v3035, %v3034
    %v3050 = vpack.c.b16 %v3037, %v3036
    %v3051 = vpack.c.b16 %v3039, %v3038
    %v3052 = vpack.c.b16 %v3041, %v3040
    %v3053 = vpack.c.b16 %v3043, %v3042
    %v3054 = vpack.c.b16 %v3045, %v3044
    %v3055 = vpack.c.b16 %v3047, %v3046
    %3064 = vmatprep.subr.bf16.mxu0 0
    %3065 = vmatpush1.bf16.msra.mxu0 %v3055
    %3066 = vmatprep.subr.bf16.mxu0 0
    %3067 = vmatpush1.bf16.msra.mxu0 %v3054
    %3068 = vmatprep.subr.bf16.mxu0 0
    %3069 = vmatpush1.bf16.msra.mxu0 %v3053
    %3070 = vmatprep.subr.bf16.mxu0 0
    %3071 = vmatpush1.bf16.msra.mxu0 %v3052
    %3072 = vmatprep.subr.bf16.mxu0 0
    %3073 = vmatpush1.bf16.msra.mxu0 %v3051
    %3074 = vmatprep.subr.bf16.mxu0 0
    %3075 = vmatpush1.bf16.msra.mxu0 %v3050
    %3076 = vmatprep.subr.bf16.mxu0 0
    %3077 = vmatpush1.bf16.msra.mxu0 %v3049
    %3078 = vmatprep.subr.bf16.mxu0 0
    %3079 = vmatpush1.bf16.msra.mxu0 %v3048
    %3080 = vmatprep.subr.bf16.mxu0 0
    %3081 = vmatpush2.bf16.msra.mxu0 0
    %3082 = vmatprep.subr.bf16.mxu0 0
    %3083 = vmatpush2.bf16.msra.mxu0 0
    %3084 = vmatprep.subr.bf16.mxu0 0
    %3085 = vmatpush2.bf16.msra.mxu0 0
    %3086 = vmatprep.subr.bf16.mxu0 0
    %3087 = vmatpush2.bf16.msra.mxu0 0
    %3088 = vmatprep.subr.bf16.mxu0 0
    %3089 = vmatpush2.bf16.msra.mxu0 0
    %3090 = vmatprep.subr.bf16.mxu0 0
    %3091 = vmatpush2.bf16.msra.mxu0 0
    %3092 = vmatprep.subr.bf16.mxu0 0
    %3093 = vmatpush2.bf16.msra.mxu0 0
    %3094 = vmatprep.subr.bf16.mxu0 0
    %3095 = vmatpush2.bf16.msra.mxu0 0
    %3096 = vmatprep.mubr.bf16.mxu0 0
    %3097 = vmatmul.mubr.bf16.gmra.mxu0 %v2990
    %v3098 = vpop.f32.mrf.mxu0
    %v3099 = vadd.f32 %v3014, %v3098
    %v3100 = vpop.f32.mrf.mxu0
    %v3101 = vpop.f32.mrf.mxu0
    %v3102 = vadd.f32 %v3014, %v3101
    %v3103 = vpop.f32.mrf.mxu0
    %3104 = vdwg.mxu0
    %v3105 = vadd.f32 %v2516, %v3099
    %v3106 = vadd.f32 %v2517, %v3102
    %s3107 = scalar_lea.vmem [#allocation19], 2
    %v3108 = vld [vmem:[%s3107] sm:$0x1]
    %s3109 = scalar_lea.vmem %s11, 2
    %v3110 = vld [vmem:[%s3109] sm:$0x1]
    %3111 = vadd.xlane.f32.xlu0 %v3105
    %v3112 = vpop.xlane.xlu0 %3111
    %3113 = vadd.xlane.f32.xlu0 %v3106
    %v3114 = vpop.xlane.xlu0 %3113
    %v3115 = vmul.f32 %v3112, %v242
    %v3116 = vmul.f32 %v3114, %v242
    %v3117 = vsub.f32 %v3105, %v3115
    %v3118 = vsub.f32 %v3106, %v3116
    %v3119 = vmul.f32 %v3117, %v3117
    %v3120 = vmul.f32 %v3118, %v3118
    %3121 = vadd.xlane.f32.xlu0 %v3119
    %v3122 = vpop.xlane.xlu0 %3121
    %3123 = vadd.xlane.f32.xlu0 %v3120
    %v3124 = vpop.xlane.xlu0 %3123
    %v3125 = vmul.f32 %v3122, %v242
    %v3126 = vmul.f32 %v3124, %v242
    %v3127 = vadd.f32 %v3125, 1e-12
    %v3128 = vadd.f32 %v3126, 1e-12
    %v3129 = vrsqrt.pop %v3127
    %v3130 = vrsqrt.pop %v3128
    %v3131 = vmul.f32 %v3117, %v3129
    %v3132 = vmul.f32 %v3118, %v3130
    %v3134 = vlaneseq
    %v3135 = vshrl.u32 %v3134, 7
    %v3136 = vsub.s32 0, %v3135
    %v3137 = vrot.slane %v3108, %v3136
    %v3139 = vmul.f32 %v3131, %v3137
    %v3140 = vmul.f32 %v3132, %v3137
    %v3142 = vlaneseq
    %v3143 = vshrl.u32 %v3142, 7
    %v3144 = vsub.s32 0, %v3143
    %v3145 = vrot.slane %v3110, %v3144
    %v3147 = vadd.f32 %v3139, %v3145
    %v3148 = vadd.f32 %v3140, %v3145
    %v3149 = vpack.c.bf16 %v3148, %v3147
    %s3150 = scalar_lea.vmem [#allocation21], 256
    %v3151 = vld [vmem:[%s3150] sm:$0xff]
    %v3152 = vld [vmem:[%s3150 + $0x8] sm:$0xff]
    %v3153 = vld [vmem:[%s3150 + $0x10] sm:$0xff]
    %v3154 = vld [vmem:[%s3150 + $0x18] sm:$0xff]
    %v3155 = vld [vmem:[%s3150 + $0x20] sm:$0xff]
    %v3156 = vld [vmem:[%s3150 + $0x28] sm:$0xff]
    %v3157 = vld [vmem:[%s3150 + $0x30] sm:$0xff]
    %v3158 = vld [vmem:[%s3150 + $0x38] sm:$0xff]
    %v3159 = vld [vmem:[%s3150 + $0x40] sm:$0xff]
    %v3160 = vld [vmem:[%s3150 + $0x48] sm:$0xff]
    %v3161 = vld [vmem:[%s3150 + $0x50] sm:$0xff]
    %v3162 = vld [vmem:[%s3150 + $0x58] sm:$0xff]
    %v3163 = vld [vmem:[%s3150 + $0x60] sm:$0xff]
    %v3164 = vld [vmem:[%s3150 + $0x68] sm:$0xff]
    %v3165 = vld [vmem:[%s3150 + $0x70] sm:$0xff]
    %v3166 = vld [vmem:[%s3150 + $0x78] sm:$0xff]
    %s3167 = scalar_lea.vmem %s13, 4
    %v3168 = vld [vmem:[%s3167] sm:$0x3]
    %v3170 = vlaneseq
    %v3171 = vshrl.u32 %v3170, 7
    %v3172 = vsub.s32 0, %v3171
    %v3173 = vrot.slane %v3168, %v3172
    %v3174 = vlaneseq
    %v3175 = vshrl.u32 %v3174, 7
    %v3176 = vsub.s32 1, %v3175
    %v3177 = vrot.slane %v3168, %v3176
    %v3196 = vunpack.c.l.b16 %v3151
    %v3197 = vunpack.c.h.b16 %v3151
    %v3198 = vunpack.c.l.b16 %v3152
    %v3199 = vunpack.c.h.b16 %v3152
    %v3200 = vunpack.c.l.b16 %v3153
    %v3201 = vunpack.c.h.b16 %v3153
    %v3202 = vunpack.c.l.b16 %v3154
    %v3203 = vunpack.c.h.b16 %v3154
    %v3204 = vunpack.c.l.b16 %v3155
    %v3205 = vunpack.c.h.b16 %v3155
    %v3206 = vunpack.c.l.b16 %v3156
    %v3207 = vunpack.c.h.b16 %v3156
    %v3208 = vunpack.c.l.b16 %v3157
    %v3209 = vunpack.c.h.b16 %v3157
    %v3210 = vunpack.c.l.b16 %v3158
    %v3211 = vunpack.c.h.b16 %v3158
    %v3212 = vunpack.c.l.b16 %v3159
    %v3213 = vunpack.c.h.b16 %v3159
    %v3214 = vunpack.c.l.b16 %v3160
    %v3215 = vunpack.c.h.b16 %v3160
    %v3216 = vunpack.c.l.b16 %v3161
    %v3217 = vunpack.c.h.b16 %v3161
    %v3218 = vunpack.c.l.b16 %v3162
    %v3219 = vunpack.c.h.b16 %v3162
    %v3220 = vunpack.c.l.b16 %v3163
    %v3221 = vunpack.c.h.b16 %v3163
    %v3222 = vunpack.c.l.b16 %v3164
    %v3223 = vunpack.c.h.b16 %v3164
    %v3224 = vunpack.c.l.b16 %v3165
    %v3225 = vunpack.c.h.b16 %v3165
    %v3226 = vunpack.c.l.b16 %v3166
    %v3227 = vunpack.c.h.b16 %v3166
    %v3228 = vpack.c.b16 %v3198, %v3196
    %v3229 = vpack.c.b16 %v3199, %v3197
    %v3230 = vpack.c.b16 %v3202, %v3200
    %v3231 = vpack.c.b16 %v3203, %v3201
    %v3232 = vpack.c.b16 %v3206, %v3204
    %v3233 = vpack.c.b16 %v3207, %v3205
    %v3234 = vpack.c.b16 %v3210, %v3208
    %v3235 = vpack.c.b16 %v3211, %v3209
    %v3236 = vpack.c.b16 %v3214, %v3212
    %v3237 = vpack.c.b16 %v3215, %v3213
    %v3238 = vpack.c.b16 %v3218, %v3216
    %v3239 = vpack.c.b16 %v3219, %v3217
    %v3240 = vpack.c.b16 %v3222, %v3220
    %v3241 = vpack.c.b16 %v3223, %v3221
    %v3242 = vpack.c.b16 %v3226, %v3224
    %v3243 = vpack.c.b16 %v3227, %v3225
    %3260 = vmatprep.subr.bf16.mxu0 %v3243
    %3261 = vmatpush1.bf16.msra.mxu0 %v3242
    %3262 = vmatprep.subr.bf16.mxu0 %v3241
    %3263 = vmatpush1.bf16.msra.mxu0 %v3240
    %3264 = vmatprep.subr.bf16.mxu0 %v3239
    %3265 = vmatpush1.bf16.msra.mxu0 %v3238
    %3266 = vmatprep.subr.bf16.mxu0 %v3237
    %3267 = vmatpush1.bf16.msra.mxu0 %v3236
    %3268 = vmatprep.subr.bf16.mxu0 %v3235
    %3269 = vmatpush1.bf16.msra.mxu0 %v3234
    %3270 = vmatprep.subr.bf16.mxu0 %v3233
    %3271 = vmatpush1.bf16.msra.mxu0 %v3232
    %3272 = vmatprep.subr.bf16.mxu0 %v3231
    %3273 = vmatpush1.bf16.msra.mxu0 %v3230
    %3274 = vmatprep.subr.bf16.mxu0 %v3229
    %3275 = vmatpush1.bf16.msra.mxu0 %v3228
    %3276 = vmatprep.subr.bf16.mxu0 0
    %3277 = vmatpush2.bf16.msra.mxu0 0
    %3278 = vmatprep.subr.bf16.mxu0 0
    %3279 = vmatpush2.bf16.msra.mxu0 0
    %3280 = vmatprep.subr.bf16.mxu0 0
    %3281 = vmatpush2.bf16.msra.mxu0 0
    %3282 = vmatprep.subr.bf16.mxu0 0
    %3283 = vmatpush2.bf16.msra.mxu0 0
    %3284 = vmatprep.subr.bf16.mxu0 0
    %3285 = vmatpush2.bf16.msra.mxu0 0
    %3286 = vmatprep.subr.bf16.mxu0 0
    %3287 = vmatpush2.bf16.msra.mxu0 0
    %3288 = vmatprep.subr.bf16.mxu0 0
    %3289 = vmatpush2.bf16.msra.mxu0 0
    %3290 = vmatprep.subr.bf16.mxu0 0
    %3291 = vmatpush2.bf16.msra.mxu0 0
    %3292 = vmatprep.mubr.bf16.mxu0 0
    %3293 = vmatmul.mubr.bf16.gmra.mxu0 %v3149
    %v3294 = vpop.f32.mrf.mxu0
    %v3295 = vadd.f32 %v3173, %v3294
    %v3296 = vpop.f32.mrf.mxu0
    %v3297 = vadd.f32 %v3177, %v3296
    %v3298 = vpop.f32.mrf.mxu0
    %v3299 = vadd.f32 %v3173, %v3298
    %v3300 = vpop.f32.mrf.mxu0
    %v3301 = vadd.f32 %v3177, %v3300
    %3302 = vdwg.mxu0
    %v3303 = vmul.f32 %v3295, 0.5
    %v3304 = vmul.f32 %v3297, 0.5
    %v3305 = vmul.f32 %v3299, 0.5
    %v3306 = vmul.f32 %v3301, 0.5
    %v3307 = vmul.f32 %v3295, 0.70710677
    %v3308 = vmul.f32 %v3297, 0.70710677
    %v3309 = vmul.f32 %v3299, 0.70710677
    %v3310 = vmul.f32 %v3301, 0.70710677
    %vm3311 = vcmp.ge.f32.partialorder %v3307, 0.0
    %vm3312 = vcmp.ge.f32.partialorder %v3308, 0.0
    %vm3313 = vcmp.ge.f32.partialorder %v3309, 0.0
    %vm3314 = vcmp.ge.f32.partialorder %v3310, 0.0
    %v3315 = vsel %vm3311, 1.0, -1.0
    %v3316 = vsel %vm3312, 1.0, -1.0
    %v3317 = vsel %vm3313, 1.0, -1.0
    %v3318 = vsel %vm3314, 1.0, -1.0
    %v3319 = vand.u32 2147483647, %v3307
    %v3320 = vand.u32 2147483647, %v3308
    %v3321 = vand.u32 2147483647, %v3309
    %v3322 = vand.u32 2147483647, %v3310
    %v3323 = vmul.f32 %v3319, 0.3275911
    %v3324 = vmul.f32 %v3320, 0.3275911
    %v3325 = vmul.f32 %v3321, 0.3275911
    %v3326 = vmul.f32 %v3322, 0.3275911
    %v3327 = vadd.f32 %v3323, 1.0
    %v3328 = vadd.f32 %v3324, 1.0
    %v3329 = vadd.f32 %v3325, 1.0
    %v3330 = vadd.f32 %v3326, 1.0
    %v3331 = vrcp.pop %v3327
    %v3332 = vmul.f32 1.0, %v3331
    %v3333 = vrcp.pop %v3328
    %v3334 = vmul.f32 1.0, %v3333
    %v3335 = vrcp.pop %v3329
    %v3336 = vmul.f32 1.0, %v3335
    %v3337 = vrcp.pop %v3330
    %v3338 = vmul.f32 1.0, %v3337
    %v3339 = vmul.f32 %v3332, 1.0614054
    %v3340 = vmul.f32 %v3334, 1.0614054
    %v3341 = vmul.f32 %v3336, 1.0614054
    %v3342 = vmul.f32 %v3338, 1.0614054
    %v3343 = vadd.f32 %v3339, -1.4531521
    %v3344 = vadd.f32 %v3340, -1.4531521
    %v3345 = vadd.f32 %v3341, -1.4531521
    %v3346 = vadd.f32 %v3342, -1.4531521
    %v3347 = vmul.f32 %v3343, %v3332
    %v3348 = vmul.f32 %v3344, %v3334
    %v3349 = vmul.f32 %v3345, %v3336
    %v3350 = vmul.f32 %v3346, %v3338
    %v3351 = vadd.f32 %v3347, 1.4214138
    %v3352 = vadd.f32 %v3348, 1.4214138
    %v3353 = vadd.f32 %v3349, 1.4214138
    %v3354 = vadd.f32 %v3350, 1.4214138
    %v3355 = vmul.f32 %v3351, %v3332
    %v3356 = vmul.f32 %v3352, %v3334
    %v3357 = vmul.f32 %v3353, %v3336
    %v3358 = vmul.f32 %v3354, %v3338
    %v3359 = vadd.f32 %v3355, -0.28449672
    %v3360 = vadd.f32 %v3356, -0.28449672
    %v3361 = vadd.f32 %v3357, -0.28449672
    %v3362 = vadd.f32 %v3358, -0.28449672
    %v3363 = vmul.f32 %v3359, %v3332
    %v3364 = vmul.f32 %v3360, %v3334
    %v3365 = vmul.f32 %v3361, %v3336
    %v3366 = vmul.f32 %v3362, %v3338
    %v3367 = vadd.f32 %v3363, 0.2548296
    %v3368 = vadd.f32 %v3364, 0.2548296
    %v3369 = vadd.f32 %v3365, 0.2548296
    %v3370 = vadd.f32 %v3366, 0.2548296
    %v3371 = vmul.f32 %v3367, %v3332
    %v3372 = vmul.f32 %v3368, %v3334
    %v3373 = vmul.f32 %v3369, %v3336
    %v3374 = vmul.f32 %v3370, %v3338
    %v3375 = vsub.f32 0.0, %v3319
    %v3376 = vsub.f32 0.0, %v3320
    %v3377 = vsub.f32 0.0, %v3321
    %v3378 = vsub.f32 0.0, %v3322
    %v3379 = vmul.f32 %v3375, %v3319
    %v3380 = vmul.f32 %v3376, %v3320
    %v3381 = vmul.f32 %v3377, %v3321
    %v3382 = vmul.f32 %v3378, %v3322
    %v3383 = vmul.f32 %v3379, 1.442695
    %v3384 = vpow.pop %v3383
    %v3385 = vmul.f32 %v3380, 1.442695
    %v3386 = vpow.pop %v3385
    %v3387 = vmul.f32 %v3381, 1.442695
    %v3388 = vpow.pop %v3387
    %v3389 = vmul.f32 %v3382, 1.442695
    %v3390 = vpow.pop %v3389
    %v3391 = vmul.f32 %v3371, %v3384
    %v3392 = vmul.f32 %v3372, %v3386
    %v3393 = vmul.f32 %v3373, %v3388
    %v3394 = vmul.f32 %v3374, %v3390
    %v3395 = vsub.f32 1.0, %v3391
    %v3396 = vsub.f32 1.0, %v3392
    %v3397 = vsub.f32 1.0, %v3393
    %v3398 = vsub.f32 1.0, %v3394
    %v3399 = vmul.f32 %v3315, %v3395
    %v3400 = vmul.f32 %v3316, %v3396
    %v3401 = vmul.f32 %v3317, %v3397
    %v3402 = vmul.f32 %v3318, %v3398
    %v3403 = vadd.f32 %v3399, 1.0
    %v3404 = vadd.f32 %v3400, 1.0
    %v3405 = vadd.f32 %v3401, 1.0
    %v3406 = vadd.f32 %v3402, 1.0
    %v3407 = vmul.f32 %v3303, %v3403
    %v3408 = vmul.f32 %v3304, %v3404
    %v3409 = vmul.f32 %v3305, %v3405
    %v3410 = vmul.f32 %v3306, %v3406
    %v3411 = vpack.c.bf16 %v3409, %v3407
    %v3412 = vpack.c.bf16 %v3410, %v3408
    %s3413 = scalar_lea.vmem [#allocation22], 256
    %v3414 = vld [vmem:[%s3413] sm:$0xf]
    %v3415 = vld [vmem:[%s3413 + $0x4] sm:$0xf]
    %v3416 = vld [vmem:[%s3413 + $0x8] sm:$0xf]
    %v3417 = vld [vmem:[%s3413 + $0xc] sm:$0xf]
    %v3418 = vld [vmem:[%s3413 + $0x10] sm:$0xf]
    %v3419 = vld [vmem:[%s3413 + $0x14] sm:$0xf]
    %v3420 = vld [vmem:[%s3413 + $0x18] sm:$0xf]
    %v3421 = vld [vmem:[%s3413 + $0x1c] sm:$0xf]
    %v3422 = vld [vmem:[%s3413 + $0x20] sm:$0xf]
    %v3423 = vld [vmem:[%s3413 + $0x24] sm:$0xf]
    %v3424 = vld [vmem:[%s3413 + $0x28] sm:$0xf]
    %v3425 = vld [vmem:[%s3413 + $0x2c] sm:$0xf]
    %v3426 = vld [vmem:[%s3413 + $0x30] sm:$0xf]
    %v3427 = vld [vmem:[%s3413 + $0x34] sm:$0xf]
    %v3428 = vld [vmem:[%s3413 + $0x38] sm:$0xf]
    %v3429 = vld [vmem:[%s3413 + $0x3c] sm:$0xf]
    %v3430 = vld [vmem:[%s3413 + $0x40] sm:$0xf]
    %v3431 = vld [vmem:[%s3413 + $0x44] sm:$0xf]
    %v3432 = vld [vmem:[%s3413 + $0x48] sm:$0xf]
    %v3433 = vld [vmem:[%s3413 + $0x4c] sm:$0xf]
    %v3434 = vld [vmem:[%s3413 + $0x50] sm:$0xf]
    %v3435 = vld [vmem:[%s3413 + $0x54] sm:$0xf]
    %v3436 = vld [vmem:[%s3413 + $0x58] sm:$0xf]
    %v3437 = vld [vmem:[%s3413 + $0x5c] sm:$0xf]
    %v3438 = vld [vmem:[%s3413 + $0x60] sm:$0xf]
    %v3439 = vld [vmem:[%s3413 + $0x64] sm:$0xf]
    %v3440 = vld [vmem:[%s3413 + $0x68] sm:$0xf]
    %v3441 = vld [vmem:[%s3413 + $0x6c] sm:$0xf]
    %v3442 = vld [vmem:[%s3413 + $0x70] sm:$0xf]
    %v3443 = vld [vmem:[%s3413 + $0x74] sm:$0xf]
    %v3444 = vld [vmem:[%s3413 + $0x78] sm:$0xf]
    %v3445 = vld [vmem:[%s3413 + $0x7c] sm:$0xf]
    %s3446 = scalar_lea.vmem %s15, 2
    %v3447 = vld [vmem:[%s3446] sm:$0x1]
    %v3449 = vlaneseq
    %v3450 = vshrl.u32 %v3449, 7
    %v3451 = vsub.s32 0, %v3450
    %v3452 = vrot.slane %v3447, %v3451
    %v3486 = vunpack.c.l.b16 %v3414
    %v3487 = vunpack.c.l.b16 %v3415
    %v3488 = vunpack.c.l.b16 %v3416
    %v3489 = vunpack.c.l.b16 %v3417
    %v3490 = vunpack.c.l.b16 %v3418
    %v3491 = vunpack.c.l.b16 %v3419
    %v3492 = vunpack.c.l.b16 %v3420
    %v3493 = vunpack.c.l.b16 %v3421
    %v3494 = vunpack.c.l.b16 %v3422
    %v3495 = vunpack.c.l.b16 %v3423
    %v3496 = vunpack.c.l.b16 %v3424
    %v3497 = vunpack.c.l.b16 %v3425
    %v3498 = vunpack.c.l.b16 %v3426
    %v3499 = vunpack.c.l.b16 %v3427
    %v3500 = vunpack.c.l.b16 %v3428
    %v3501 = vunpack.c.l.b16 %v3429
    %v3502 = vunpack.c.l.b16 %v3430
    %v3503 = vunpack.c.l.b16 %v3431
    %v3504 = vunpack.c.l.b16 %v3432
    %v3505 = vunpack.c.l.b16 %v3433
    %v3506 = vunpack.c.l.b16 %v3434
    %v3507 = vunpack.c.l.b16 %v3435
    %v3508 = vunpack.c.l.b16 %v3436
    %v3509 = vunpack.c.l.b16 %v3437
    %v3510 = vunpack.c.l.b16 %v3438
    %v3511 = vunpack.c.l.b16 %v3439
    %v3512 = vunpack.c.l.b16 %v3440
    %v3513 = vunpack.c.l.b16 %v3441
    %v3514 = vunpack.c.l.b16 %v3442
    %v3515 = vunpack.c.l.b16 %v3443
    %v3516 = vunpack.c.l.b16 %v3444
    %v3517 = vunpack.c.l.b16 %v3445
    %v3518 = vpack.c.b16 %v3487, %v3486
    %v3519 = vpack.c.b16 %v3489, %v3488
    %v3520 = vpack.c.b16 %v3491, %v3490
    %v3521 = vpack.c.b16 %v3493, %v3492
    %v3522 = vpack.c.b16 %v3495, %v3494
    %v3523 = vpack.c.b16 %v3497, %v3496
    %v3524 = vpack.c.b16 %v3499, %v3498
    %v3525 = vpack.c.b16 %v3501, %v3500
    %v3526 = vpack.c.b16 %v3503, %v3502
    %v3527 = vpack.c.b16 %v3505, %v3504
    %v3528 = vpack.c.b16 %v3507, %v3506
    %v3529 = vpack.c.b16 %v3509, %v3508
    %v3530 = vpack.c.b16 %v3511, %v3510
    %v3531 = vpack.c.b16 %v3513, %v3512
    %v3532 = vpack.c.b16 %v3515, %v3514
    %v3533 = vpack.c.b16 %v3517, %v3516
    %3550 = vmatprep.subr.bf16.mxu0 0
    %3551 = vmatpush1.bf16.msra.mxu0 %v3525
    %3552 = vmatprep.subr.bf16.mxu0 0
    %3553 = vmatpush1.bf16.msra.mxu0 %v3524
    %3554 = vmatprep.subr.bf16.mxu0 0
    %3555 = vmatpush1.bf16.msra.mxu0 %v3523
    %3556 = vmatprep.subr.bf16.mxu0 0
    %3557 = vmatpush1.bf16.msra.mxu0 %v3522
    %3558 = vmatprep.subr.bf16.mxu0 0
    %3559 = vmatpush1.bf16.msra.mxu0 %v3521
    %3560 = vmatprep.subr.bf16.mxu0 0
    %3561 = vmatpush1.bf16.msra.mxu0 %v3520
    %3562 = vmatprep.subr.bf16.mxu0 0
    %3563 = vmatpush1.bf16.msra.mxu0 %v3519
    %3564 = vmatprep.subr.bf16.mxu0 0
    %3565 = vmatpush1.bf16.msra.mxu0 %v3518
    %3566 = vmatprep.subr.bf16.mxu0 0
    %3567 = vmatpush2.bf16.msra.mxu0 %v3533
    %3568 = vmatprep.subr.bf16.mxu0 0
    %3569 = vmatpush2.bf16.msra.mxu0 %v3532
    %3570 = vmatprep.subr.bf16.mxu0 0
    %3571 = vmatpush2.bf16.msra.mxu0 %v3531
    %3572 = vmatprep.subr.bf16.mxu0 0
    %3573 = vmatpush2.bf16.msra.mxu0 %v3530
    %3574 = vmatprep.subr.bf16.mxu0 0
    %3575 = vmatpush2.bf16.msra.mxu0 %v3529
    %3576 = vmatprep.subr.bf16.mxu0 0
    %3577 = vmatpush2.bf16.msra.mxu0 %v3528
    %3578 = vmatprep.subr.bf16.mxu0 0
    %3579 = vmatpush2.bf16.msra.mxu0 %v3527
    %3580 = vmatprep.subr.bf16.mxu0 0
    %3581 = vmatpush2.bf16.msra.mxu0 %v3526
    %3582 = vmatprep.mubr.bf16.mxu0 %v3412
    %3583 = vmatmul.mubr.bf16.gmra.mxu0 %v3411
    %v3584 = vpop.f32.mrf.mxu0
    %v3585 = vadd.f32 %v3452, %v3584
    %v3586 = vpop.f32.mrf.mxu0
    %v3587 = vpop.f32.mrf.mxu0
    %v3588 = vadd.f32 %v3452, %v3587
    %v3589 = vpop.f32.mrf.mxu0
    %3590 = vdwg.mxu0
    %v3591 = vadd.f32 %v3147, %v3585
    %v3592 = vadd.f32 %v3148, %v3588
    %s3593 = scalar_lea.vmem %s16, 2
    %v3594 = vld [vmem:[%s3593] sm:$0x1]
    %s3595 = scalar_lea.vmem %s17, 2
    %v3596 = vld [vmem:[%s3595] sm:$0x1]
    %3597 = vadd.xlane.f32.xlu0 %v3591
    %v3598 = vpop.xlane.xlu0 %3597
    %3599 = vadd.xlane.f32.xlu0 %v3592
    %v3600 = vpop.xlane.xlu0 %3599
    %v3601 = vmul.f32 %v3598, %v242
    %v3602 = vmul.f32 %v3600, %v242
    %v3603 = vsub.f32 %v3591, %v3601
    %v3604 = vsub.f32 %v3592, %v3602
    %v3605 = vmul.f32 %v3603, %v3603
    %v3606 = vmul.f32 %v3604, %v3604
    %3607 = vadd.xlane.f32.xlu0 %v3605
    %v3608 = vpop.xlane.xlu0 %3607
    %3609 = vadd.xlane.f32.xlu0 %v3606
    %v3610 = vpop.xlane.xlu0 %3609
    %v3611 = vmul.f32 %v3608, %v242
    %v3612 = vmul.f32 %v3610, %v242
    %v3613 = vadd.f32 %v3611, 1e-12
    %v3614 = vadd.f32 %v3612, 1e-12
    %v3615 = vrsqrt.pop %v3613
    %v3616 = vrsqrt.pop %v3614
    %v3617 = vmul.f32 %v3603, %v3615
    %v3618 = vmul.f32 %v3604, %v3616
    %v3620 = vlaneseq
    %v3621 = vshrl.u32 %v3620, 7
    %v3622 = vsub.s32 0, %v3621
    %v3623 = vrot.slane %v3594, %v3622
    %v3625 = vmul.f32 %v3617, %v3623
    %v3626 = vmul.f32 %v3618, %v3623
    %v3628 = vlaneseq
    %v3629 = vshrl.u32 %v3628, 7
    %v3630 = vsub.s32 0, %v3629
    %v3631 = vrot.slane %v3596, %v3630
    %v3633 = vadd.f32 %v3625, %v3631
    %v3634 = vadd.f32 %v3626, %v3631
    %v3635 = vpack.c.bf16 %v3634, %v3633
    %s3636 = scalar_lea.vmem [#allocation15], 576
    %v3637 = vld [vmem:[%s3636] sm:$0xff]
    %v3638 = vld [vmem:[%s3636 + $0x8] sm:$0xf]
    %v3639 = vld [vmem:[%s3636 + $0xc] sm:$0xff]
    %v3640 = vld [vmem:[%s3636 + $0x14] sm:$0xf]
    %v3641 = vld [vmem:[%s3636 + $0x18] sm:$0xff]
    %v3642 = vld [vmem:[%s3636 + $0x20] sm:$0xf]
    %v3643 = vld [vmem:[%s3636 + $0x24] sm:$0xff]
    %v3644 = vld [vmem:[%s3636 + $0x2c] sm:$0xf]
    %v3645 = vld [vmem:[%s3636 + $0x30] sm:$0xff]
    %v3646 = vld [vmem:[%s3636 + $0x38] sm:$0xf]
    %v3647 = vld [vmem:[%s3636 + $0x3c] sm:$0xff]
    %v3648 = vld [vmem:[%s3636 + $0x44] sm:$0xf]
    %v3649 = vld [vmem:[%s3636 + $0x48] sm:$0xff]
    %v3650 = vld [vmem:[%s3636 + $0x50] sm:$0xf]
    %v3651 = vld [vmem:[%s3636 + $0x54] sm:$0xff]
    %v3652 = vld [vmem:[%s3636 + $0x5c] sm:$0xf]
    %v3653 = vld [vmem:[%s3636 + $0x60] sm:$0xff]
    %v3654 = vld [vmem:[%s3636 + $0x68] sm:$0xf]
    %v3655 = vld [vmem:[%s3636 + $0x6c] sm:$0xff]
    %v3656 = vld [vmem:[%s3636 + $0x74] sm:$0xf]
    %v3657 = vld [vmem:[%s3636 + $0x78] sm:$0xff]
    %v3658 = vld [vmem:[%s3636 + $0x80] sm:$0xf]
    %v3659 = vld [vmem:[%s3636 + $0x84] sm:$0xff]
    %v3660 = vld [vmem:[%s3636 + $0x8c] sm:$0xf]
    %v3661 = vld [vmem:[%s3636 + $0x90] sm:$0xff]
    %v3662 = vld [vmem:[%s3636 + $0x98] sm:$0xf]
    %v3663 = vld [vmem:[%s3636 + $0x9c] sm:$0xff]
    %v3664 = vld [vmem:[%s3636 + $0xa4] sm:$0xf]
    %v3665 = vld [vmem:[%s3636 + $0xa8] sm:$0xff]
    %v3666 = vld [vmem:[%s3636 + $0xb0] sm:$0xf]
    %v3667 = vld [vmem:[%s3636 + $0xb4] sm:$0xff]
    %v3668 = vld [vmem:[%s3636 + $0xbc] sm:$0xf]
    %s3669 = scalar_lea.vmem %s7, 9
    %v3670 = vld [vmem:[%s3669] sm:$0x7]
    %v3672 = vlaneseq
    %v3673 = vshrl.u32 %v3672, 7
    %v3674 = vsub.s32 0, %v3673
    %v3675 = vrot.slane %v3670, %v3674
    %v3676 = vlaneseq
    %v3677 = vshrl.u32 %v3676, 7
    %v3678 = vsub.s32 1, %v3677
    %v3679 = vrot.slane %v3670, %v3678
    %v3680 = vlaneseq
    %v3681 = vshrl.u32 %v3680, 7
    %v3682 = vsub.s32 2, %v3681
    %v3683 = vrot.slane %v3670, %v3682
    %v3719 = vunpack.c.l.b16 %v3637
    %v3720 = vunpack.c.h.b16 %v3637
    %v3721 = vunpack.c.l.b16 %v3638
    %v3722 = vunpack.c.l.b16 %v3639
    %v3723 = vunpack.c.h.b16 %v3639
    %v3724 = vunpack.c.l.b16 %v3640
    %v3725 = vunpack.c.l.b16 %v3641
    %v3726 = vunpack.c.h.b16 %v3641
    %v3727 = vunpack.c.l.b16 %v3642
    %v3728 = vunpack.c.l.b16 %v3643
    %v3729 = vunpack.c.h.b16 %v3643
    %v3730 = vunpack.c.l.b16 %v3644
    %v3731 = vunpack.c.l.b16 %v3645
    %v3732 = vunpack.c.h.b16 %v3645
    %v3733 = vunpack.c.l.b16 %v3646
    %v3734 = vunpack.c.l.b16 %v3647
    %v3735 = vunpack.c.h.b16 %v3647
    %v3736 = vunpack.c.l.b16 %v3648
    %v3737 = vunpack.c.l.b16 %v3649
    %v3738 = vunpack.c.h.b16 %v3649
    %v3739 = vunpack.c.l.b16 %v3650
    %v3740 = vunpack.c.l.b16 %v3651
    %v3741 = vunpack.c.h.b16 %v3651
    %v3742 = vunpack.c.l.b16 %v3652
    %v3743 = vunpack.c.l.b16 %v3653
    %v3744 = vunpack.c.h.b16 %v3653
    %v3745 = vunpack.c.l.b16 %v3654
    %v3746 = vunpack.c.l.b16 %v3655
    %v3747 = vunpack.c.h.b16 %v3655
    %v3748 = vunpack.c.l.b16 %v3656
    %v3749 = vunpack.c.l.b16 %v3657
    %v3750 = vunpack.c.h.b16 %v3657
    %v3751 = vunpack.c.l.b16 %v3658
    %v3752 = vunpack.c.l.b16 %v3659
    %v3753 = vunpack.c.h.b16 %v3659
    %v3754 = vunpack.c.l.b16 %v3660
    %v3755 = vunpack.c.l.b16 %v3661
    %v3756 = vunpack.c.h.b16 %v3661
    %v3757 = vunpack.c.l.b16 %v3662
    %v3758 = vunpack.c.l.b16 %v3663
    %v3759 = vunpack.c.h.b16 %v3663
    %v3760 = vunpack.c.l.b16 %v3664
    %v3761 = vunpack.c.l.b16 %v3665
    %v3762 = vunpack.c.h.b16 %v3665
    %v3763 = vunpack.c.l.b16 %v3666
    %v3764 = vunpack.c.l.b16 %v3667
    %v3765 = vunpack.c.h.b16 %v3667
    %v3766 = vunpack.c.l.b16 %v3668
    %v3767 = vpack.c.b16 %v3722, %v3719
    %v3768 = vpack.c.b16 %v3723, %v3720
    %v3769 = vpack.c.b16 %v3724, %v3721
    %v3770 = vpack.c.b16 %v3728, %v3725
    %v3771 = vpack.c.b16 %v3729, %v3726
    %v3772 = vpack.c.b16 %v3730, %v3727
    %v3773 = vpack.c.b16 %v3734, %v3731
    %v3774 = vpack.c.b16 %v3735, %v3732
    %v3775 = vpack.c.b16 %v3736, %v3733
    %v3776 = vpack.c.b16 %v3740, %v3737
    %v3777 = vpack.c.b16 %v3741, %v3738
    %v3778 = vpack.c.b16 %v3742, %v3739
    %v3779 = vpack.c.b16 %v3746, %v3743
    %v3780 = vpack.c.b16 %v3747, %v3744
    %v3781 = vpack.c.b16 %v3748, %v3745
    %v3782 = vpack.c.b16 %v3752, %v3749
    %v3783 = vpack.c.b16 %v3753, %v3750
    %v3784 = vpack.c.b16 %v3754, %v3751
    %v3785 = vpack.c.b16 %v3758, %v3755
    %v3786 = vpack.c.b16 %v3759, %v3756
    %v3787 = vpack.c.b16 %v3760, %v3757
    %v3788 = vpack.c.b16 %v3764, %v3761
    %v3789 = vpack.c.b16 %v3765, %v3762
    %v3790 = vpack.c.b16 %v3766, %v3763
    %3815 = vmatprep.subr.bf16.mxu0 %v3789
    %3816 = vmatpush1.bf16.msra.mxu0 %v3788
    %3817 = vmatprep.subr.bf16.mxu0 %v3786
    %3818 = vmatpush1.bf16.msra.mxu0 %v3785
    %3819 = vmatprep.subr.bf16.mxu0 %v3783
    %3820 = vmatpush1.bf16.msra.mxu0 %v3782
    %3821 = vmatprep.subr.bf16.mxu0 %v3780
    %3822 = vmatpush1.bf16.msra.mxu0 %v3779
    %3823 = vmatprep.subr.bf16.mxu0 %v3777
    %3824 = vmatpush1.bf16.msra.mxu0 %v3776
    %3825 = vmatprep.subr.bf16.mxu0 %v3774
    %3826 = vmatpush1.bf16.msra.mxu0 %v3773
    %3827 = vmatprep.subr.bf16.mxu0 %v3771
    %3828 = vmatpush1.bf16.msra.mxu0 %v3770
    %3829 = vmatprep.subr.bf16.mxu0 %v3768
    %3830 = vmatpush1.bf16.msra.mxu0 %v3767
    %3831 = vmatprep.subr.bf16.mxu0 0
    %3832 = vmatpush2.bf16.msra.mxu0 0
    %3833 = vmatprep.subr.bf16.mxu0 0
    %3834 = vmatpush2.bf16.msra.mxu0 0
    %3835 = vmatprep.subr.bf16.mxu0 0
    %3836 = vmatpush2.bf16.msra.mxu0 0
    %3837 = vmatprep.subr.bf16.mxu0 0
    %3838 = vmatpush2.bf16.msra.mxu0 0
    %3839 = vmatprep.subr.bf16.mxu0 0
    %3840 = vmatpush2.bf16.msra.mxu0 0
    %3841 = vmatprep.subr.bf16.mxu0 0
    %3842 = vmatpush2.bf16.msra.mxu0 0
    %3843 = vmatprep.subr.bf16.mxu0 0
    %3844 = vmatpush2.bf16.msra.mxu0 0
    %3845 = vmatprep.subr.bf16.mxu0 0
    %3846 = vmatpush2.bf16.msra.mxu0 0
    %3847 = vmatprep.mubr.bf16.mxu0 0
    %3848 = vmatmul.mubr.bf16.gmra.mxu0 %v3635
    %v3849 = vpop.f32.mrf.mxu0
    %v3850 = vadd.f32 %v3675, %v3849
    %v3851 = vpop.f32.mrf.mxu0
    %v3852 = vadd.f32 %v3679, %v3851
    %v3853 = vpop.f32.mrf.mxu0
    %v3854 = vadd.f32 %v3675, %v3853
    %v3855 = vpop.f32.mrf.mxu0
    %v3856 = vadd.f32 %v3679, %v3855
    %3857 = vdwg.mxu0
    %3858 = vmatprep.subr.bf16.mxu0 0
    %3859 = vmatpush1.bf16.msra.mxu0 %v3790
    %3860 = vmatprep.subr.bf16.mxu0 0
    %3861 = vmatpush1.bf16.msra.mxu0 %v3787
    %3862 = vmatprep.subr.bf16.mxu0 0
    %3863 = vmatpush1.bf16.msra.mxu0 %v3784
    %3864 = vmatprep.subr.bf16.mxu0 0
    %3865 = vmatpush1.bf16.msra.mxu0 %v3781
    %3866 = vmatprep.subr.bf16.mxu0 0
    %3867 = vmatpush1.bf16.msra.mxu0 %v3778
    %3868 = vmatprep.subr.bf16.mxu0 0
    %3869 = vmatpush1.bf16.msra.mxu0 %v3775
    %3870 = vmatprep.subr.bf16.mxu0 0
    %3871 = vmatpush1.bf16.msra.mxu0 %v3772
    %3872 = vmatprep.subr.bf16.mxu0 0
    %3873 = vmatpush1.bf16.msra.mxu0 %v3769
    %3874 = vmatprep.subr.bf16.mxu0 0
    %3875 = vmatpush2.bf16.msra.mxu0 0
    %3876 = vmatprep.subr.bf16.mxu0 0
    %3877 = vmatpush2.bf16.msra.mxu0 0
    %3878 = vmatprep.subr.bf16.mxu0 0
    %3879 = vmatpush2.bf16.msra.mxu0 0
    %3880 = vmatprep.subr.bf16.mxu0 0
    %3881 = vmatpush2.bf16.msra.mxu0 0
    %3882 = vmatprep.subr.bf16.mxu0 0
    %3883 = vmatpush2.bf16.msra.mxu0 0
    %3884 = vmatprep.subr.bf16.mxu0 0
    %3885 = vmatpush2.bf16.msra.mxu0 0
    %3886 = vmatprep.subr.bf16.mxu0 0
    %3887 = vmatpush2.bf16.msra.mxu0 0
    %3888 = vmatprep.subr.bf16.mxu0 0
    %3889 = vmatpush2.bf16.msra.mxu0 0
    %3890 = vmatprep.mubr.bf16.mxu0 0
    %3891 = vmatmul.mubr.bf16.gmra.mxu0 %v3635
    %v3892 = vpop.f32.mrf.mxu0
    %v3893 = vadd.f32 %v3683, %v3892
    %v3894 = vpop.f32.mrf.mxu0
    %v3895 = vpop.f32.mrf.mxu0
    %v3896 = vadd.f32 %v3683, %v3895
    %v3897 = vpop.f32.mrf.mxu0
    %3898 = vdwg.mxu0
    %v3899 = vmul.f32 %v3852, %v279
    %v3900 = vmul.f32 %v3856, %v280
    %v3901 = vmul.f32 %v3852, %v281
    %v3902 = vmul.f32 %v3856, %v282
    %v3903 = vmul.f32 %v3852, %v283
    %v3904 = vmul.f32 %v3856, %v284
    %v3905 = vmul.f32 %v3852, %v285
    %v3906 = vmul.f32 %v3856, %v286
    %v3907 = vpack.c.bf16 %v3900, %v3899
    %v3908 = vpack.c.bf16 %v3902, %v3901
    %v3909 = vpack.c.bf16 %v3904, %v3903
    %v3910 = vpack.c.bf16 %v3906, %v3905
    %v3911 = vmul.f32 %v3893, %v279
    %v3912 = vmul.f32 %v3896, %v280
    %v3913 = vmul.f32 %v3893, %v281
    %v3914 = vmul.f32 %v3896, %v282
    %v3915 = vmul.f32 %v3893, %v283
    %v3916 = vmul.f32 %v3896, %v284
    %v3917 = vmul.f32 %v3893, %v285
    %v3918 = vmul.f32 %v3896, %v286
    %v3919 = vpack.c.bf16 %v3912, %v3911
    %v3920 = vpack.c.bf16 %v3914, %v3913
    %v3921 = vpack.c.bf16 %v3916, %v3915
    %v3922 = vpack.c.bf16 %v3918, %v3917
    %v3923 = vpack.c.bf16 %v3854, %v3850
    %3924 = vmatprep.subr.bf16.mxu0 0
    %3925 = vmatpush1.bf16.xpose.msra.mxu0 0
    %3926 = vmatprep.subr.bf16.mxu0 0
    %3927 = vmatpush1.bf16.xpose.msra.mxu0 0
    %3928 = vmatprep.subr.bf16.mxu0 0
    %3929 = vmatpush1.bf16.xpose.msra.mxu0 0
    %3930 = vmatprep.subr.bf16.mxu0 0
    %3931 = vmatpush1.bf16.xpose.msra.mxu0 0
    %3932 = vmatprep.subr.bf16.mxu0 0
    %3933 = vmatpush1.bf16.xpose.msra.mxu0 %v3910
    %3934 = vmatprep.subr.bf16.mxu0 0
    %3935 = vmatpush1.bf16.xpose.msra.mxu0 %v3909
    %3936 = vmatprep.subr.bf16.mxu0 0
    %3937 = vmatpush1.bf16.xpose.msra.mxu0 %v3908
    %3938 = vmatprep.subr.bf16.mxu0 0
    %3939 = vmatpush1.bf16.xpose.msra.mxu0 %v3907
    %3940 = vmatprep.subr.bf16.mxu0 0
    %3941 = vmatpush2.bf16.xpose.msra.mxu0 0
    %3942 = vmatprep.subr.bf16.mxu0 0
    %3943 = vmatpush2.bf16.xpose.msra.mxu0 0
    %3944 = vmatprep.subr.bf16.mxu0 0
    %3945 = vmatpush2.bf16.xpose.msra.mxu0 0
    %3946 = vmatprep.subr.bf16.mxu0 0
    %3947 = vmatpush2.bf16.xpose.msra.mxu0 0
    %3948 = vmatprep.subr.bf16.mxu0 0
    %3949 = vmatpush2.bf16.xpose.msra.mxu0 0
    %3950 = vmatprep.subr.bf16.mxu0 0
    %3951 = vmatpush2.bf16.xpose.msra.mxu0 0
    %3952 = vmatprep.subr.bf16.mxu0 0
    %3953 = vmatpush2.bf16.xpose.msra.mxu0 0
    %3954 = vmatprep.subr.bf16.mxu0 0
    %3955 = vmatpush2.bf16.xpose.msra.mxu0 0
    %3956 = vmatprep.mubr.bf16.mxu0 0
    %3957 = vmatmul.mubr.bf16.gmra.mxu0 %v3923
    %v3958 = vpop.f32.mrf.mxu0
    %v3959 = vadd.f32 %v277, %v3958
    %v3960 = vpop.f32.mrf.mxu0
    %v3961 = vpop.f32.mrf.mxu0
    %v3962 = vadd.f32 %v278, %v3961
    %v3963 = vpop.f32.mrf.mxu0
    %3964 = vdwg.mxu0
    %v3965 = vsel %vm623, %v3959, -inf
    %3966 = vmax.xlane.f32.xlu0 %v3965
    %v3967 = vpop.xlane.xlu0 %3966
    %v3968 = vsel %vm623, %v3962, -inf
    %3969 = vmax.xlane.f32.xlu0 %v3968
    %v3970 = vpop.xlane.xlu0 %3969
    %v3971 = vsub.f32 %v3959, %v3967
    %v3972 = vsub.f32 %v3962, %v3970
    %v3973 = vmul.f32 %v3971, 1.442695
    %v3974 = vpow.pop %v3973
    %v3975 = vmul.f32 %v3972, 1.442695
    %v3976 = vpow.pop %v3975
    %v3978 = vsel %vm623, %v3974, 0
    %v3981 = vsel %vm623, %v3976, 0
    %3983 = vmatprep.subr.mxu0 0.0
    %3984 = vmatpush1.msra.mxu0 0.0
    %3985 = vmatprep.subr.mxu0 0.0
    %3986 = vmatpush1.msra.mxu0 0.0
    %3987 = vmatprep.subr.mxu0 0.0
    %3988 = vmatpush1.msra.mxu0 0.0
    %3989 = vmatprep.subr.mxu0 0.0
    %3990 = vmatpush1.msra.mxu0 0.0
    %3991 = vmatprep.subr.mxu0 0.0
    %3992 = vmatpush1.msra.mxu0 0.0
    %3993 = vmatprep.subr.mxu0 0.0
    %3994 = vmatpush1.msra.mxu0 0.0
    %3995 = vmatprep.subr.mxu0 0.0
    %3996 = vmatpush1.msra.mxu0 0.0
    %3997 = vmatprep.subr.mxu0 0.0
    %3998 = vmatpush1.msra.mxu0 0.0
    %3999 = vmatprep.subr.mxu0 0.0
    %4000 = vmatpush1.msra.mxu0 %v294
    %4001 = vmatprep.subr.mxu0 0.0
    %4002 = vmatpush1.msra.mxu0 %v293
    %4003 = vmatprep.subr.mxu0 0.0
    %4004 = vmatpush1.msra.mxu0 %v292
    %4005 = vmatprep.subr.mxu0 0.0
    %4006 = vmatpush1.msra.mxu0 %v291
    %4007 = vmatprep.subr.mxu0 0.0
    %4008 = vmatpush1.msra.mxu0 %v290
    %4009 = vmatprep.subr.mxu0 0.0
    %4010 = vmatpush1.msra.mxu0 %v289
    %4011 = vmatprep.subr.mxu0 0.0
    %4012 = vmatpush1.msra.mxu0 %v288
    %4013 = vmatprep.subr.mxu0 0.0
    %4014 = vmatpush1.msra.mxu0 %v287
    %4015 = vmatprep.subr.mxu0 0.0
    %4016 = vmatpush2.msra.mxu0 0.0
    %4017 = vmatprep.subr.mxu0 0.0
    %4018 = vmatpush2.msra.mxu0 0.0
    %4019 = vmatprep.subr.mxu0 0.0
    %4020 = vmatpush2.msra.mxu0 0.0
    %4021 = vmatprep.subr.mxu0 0.0
    %4022 = vmatpush2.msra.mxu0 0.0
    %4023 = vmatprep.subr.mxu0 0.0
    %4024 = vmatpush2.msra.mxu0 0.0
    %4025 = vmatprep.subr.mxu0 0.0
    %4026 = vmatpush2.msra.mxu0 0.0
    %4027 = vmatprep.subr.mxu0 0.0
    %4028 = vmatpush2.msra.mxu0 0.0
    %4029 = vmatprep.subr.mxu0 0.0
    %4030 = vmatpush2.msra.mxu0 0.0
    %4031 = vmatprep.subr.mxu0 0.0
    %4032 = vmatpush2.msra.mxu0 0.0
    %4033 = vmatprep.subr.mxu0 0.0
    %4034 = vmatpush2.msra.mxu0 0.0
    %4035 = vmatprep.subr.mxu0 0.0
    %4036 = vmatpush2.msra.mxu0 0.0
    %4037 = vmatprep.subr.mxu0 0.0
    %4038 = vmatpush2.msra.mxu0 0.0
    %4039 = vmatprep.subr.mxu0 0.0
    %4040 = vmatpush2.msra.mxu0 0.0
    %4041 = vmatprep.subr.mxu0 0.0
    %4042 = vmatpush2.msra.mxu0 0.0
    %4043 = vmatprep.subr.mxu0 0.0
    %4044 = vmatpush2.msra.mxu0 0.0
    %4045 = vmatprep.subr.mxu0 0.0
    %4046 = vmatpush2.msra.mxu0 0.0
    %4047 = vmatprep.mubr.f32.mxu0 0.0
    %4048 = vmatmul.mubr.f32.gmra.mxu0 %v3978
    %v4049 = vpop.f32.mrf.mxu0
    %v4050 = vadd.f32 0.0, %v4049
    %v4051 = vpop.f32.mrf.mxu0
    %4052 = vmatprep.mubr.f32.mxu0 0.0
    %4053 = vmatmul.mubr.f32.gmra.mxu0 %v3981
    %v4054 = vpop.f32.mrf.mxu0
    %v4055 = vadd.f32 0.0, %v4054
    %v4056 = vpop.f32.mrf.mxu0
    %4057 = vdwg.mxu0
    %v4058 = vrcp.pop %v4050
    %v4059 = vrcp.pop %v4055
    %v4060 = vmul.f32 %v3974, %v4058
    %v4061 = vmul.f32 %v3976, %v4059
    %v4062 = vpack.c.bf16 %v4061, %v4060
    %v4064 = vsel %vm623, %v4062, 0
    %4066 = vmatprep.subr.bf16.mxu0 0
    %4067 = vmatpush1.bf16.msra.mxu0 0
    %4068 = vmatprep.subr.bf16.mxu0 0
    %4069 = vmatpush1.bf16.msra.mxu0 0
    %4070 = vmatprep.subr.bf16.mxu0 0
    %4071 = vmatpush1.bf16.msra.mxu0 0
    %4072 = vmatprep.subr.bf16.mxu0 0
    %4073 = vmatpush1.bf16.msra.mxu0 0
    %4074 = vmatprep.subr.bf16.mxu0 0
    %4075 = vmatpush1.bf16.msra.mxu0 %v3922
    %4076 = vmatprep.subr.bf16.mxu0 0
    %4077 = vmatpush1.bf16.msra.mxu0 %v3921
    %4078 = vmatprep.subr.bf16.mxu0 0
    %4079 = vmatpush1.bf16.msra.mxu0 %v3920
    %4080 = vmatprep.subr.bf16.mxu0 0
    %4081 = vmatpush1.bf16.msra.mxu0 %v3919
    %4082 = vmatprep.subr.bf16.mxu0 0
    %4083 = vmatpush2.bf16.msra.mxu0 0
    %4084 = vmatprep.subr.bf16.mxu0 0
    %4085 = vmatpush2.bf16.msra.mxu0 0
    %4086 = vmatprep.subr.bf16.mxu0 0
    %4087 = vmatpush2.bf16.msra.mxu0 0
    %4088 = vmatprep.subr.bf16.mxu0 0
    %4089 = vmatpush2.bf16.msra.mxu0 0
    %4090 = vmatprep.subr.bf16.mxu0 0
    %4091 = vmatpush2.bf16.msra.mxu0 0
    %4092 = vmatprep.subr.bf16.mxu0 0
    %4093 = vmatpush2.bf16.msra.mxu0 0
    %4094 = vmatprep.subr.bf16.mxu0 0
    %4095 = vmatpush2.bf16.msra.mxu0 0
    %4096 = vmatprep.subr.bf16.mxu0 0
    %4097 = vmatpush2.bf16.msra.mxu0 0
    %4098 = vmatprep.mubr.bf16.mxu0 0
    %4099 = vmatmul.mubr.bf16.gmra.mxu0 %v4064
    %v4100 = vpop.f32.mrf.mxu0
    %v4101 = vadd.f32 0.0, %v4100
    %v4102 = vpop.f32.mrf.mxu0
    %v4103 = vpop.f32.mrf.mxu0
    %v4104 = vadd.f32 0.0, %v4103
    %v4105 = vpop.f32.mrf.mxu0
    %4106 = vdwg.mxu0
    %v4107 = vpack.c.bf16 %v4104, %v4101
    %s4108 = scalar_lea.vmem [#allocation16], 192
    %v4109 = vld [vmem:[%s4108] sm:$0xf]
    %v4110 = vld [vmem:[%s4108 + $0x4] sm:$0xf]
    %v4111 = vld [vmem:[%s4108 + $0x8] sm:$0xf]
    %v4112 = vld [vmem:[%s4108 + $0xc] sm:$0xf]
    %v4113 = vld [vmem:[%s4108 + $0x10] sm:$0xf]
    %v4114 = vld [vmem:[%s4108 + $0x14] sm:$0xf]
    %v4115 = vld [vmem:[%s4108 + $0x18] sm:$0xf]
    %v4116 = vld [vmem:[%s4108 + $0x1c] sm:$0xf]
    %v4117 = vld [vmem:[%s4108 + $0x20] sm:$0xf]
    %v4118 = vld [vmem:[%s4108 + $0x24] sm:$0xf]
    %v4119 = vld [vmem:[%s4108 + $0x28] sm:$0xf]
    %v4120 = vld [vmem:[%s4108 + $0x2c] sm:$0xf]
    %v4121 = vld [vmem:[%s4108 + $0x30] sm:$0xf]
    %v4122 = vld [vmem:[%s4108 + $0x34] sm:$0xf]
    %v4123 = vld [vmem:[%s4108 + $0x38] sm:$0xf]
    %v4124 = vld [vmem:[%s4108 + $0x3c] sm:$0xf]
    %s4125 = scalar_lea.vmem [#allocation18], 3
    %v4126 = vld [vmem:[%s4125] sm:$0x1]
    %v4128 = vlaneseq
    %v4129 = vshrl.u32 %v4128, 7
    %v4130 = vsub.s32 0, %v4129
    %v4131 = vrot.slane %v4126, %v4130
    %v4149 = vunpack.c.l.b16 %v4109
    %v4150 = vunpack.c.l.b16 %v4110
    %v4151 = vunpack.c.l.b16 %v4111
    %v4152 = vunpack.c.l.b16 %v4112
    %v4153 = vunpack.c.l.b16 %v4113
    %v4154 = vunpack.c.l.b16 %v4114
    %v4155 = vunpack.c.l.b16 %v4115
    %v4156 = vunpack.c.l.b16 %v4116
    %v4157 = vunpack.c.l.b16 %v4117
    %v4158 = vunpack.c.l.b16 %v4118
    %v4159 = vunpack.c.l.b16 %v4119
    %v4160 = vunpack.c.l.b16 %v4120
    %v4161 = vunpack.c.l.b16 %v4121
    %v4162 = vunpack.c.l.b16 %v4122
    %v4163 = vunpack.c.l.b16 %v4123
    %v4164 = vunpack.c.l.b16 %v4124
    %v4165 = vpack.c.b16 %v4150, %v4149
    %v4166 = vpack.c.b16 %v4152, %v4151
    %v4167 = vpack.c.b16 %v4154, %v4153
    %v4168 = vpack.c.b16 %v4156, %v4155
    %v4169 = vpack.c.b16 %v4158, %v4157
    %v4170 = vpack.c.b16 %v4160, %v4159
    %v4171 = vpack.c.b16 %v4162, %v4161
    %v4172 = vpack.c.b16 %v4164, %v4163
    %4181 = vmatprep.subr.bf16.mxu0 0
    %4182 = vmatpush1.bf16.msra.mxu0 %v4172
    %4183 = vmatprep.subr.bf16.mxu0 0
    %4184 = vmatpush1.bf16.msra.mxu0 %v4171
    %4185 = vmatprep.subr.bf16.mxu0 0
    %4186 = vmatpush1.bf16.msra.mxu0 %v4170
    %4187 = vmatprep.subr.bf16.mxu0 0
    %4188 = vmatpush1.bf16.msra.mxu0 %v4169
    %4189 = vmatprep.subr.bf16.mxu0 0
    %4190 = vmatpush1.bf16.msra.mxu0 %v4168
    %4191 = vmatprep.subr.bf16.mxu0 0
    %4192 = vmatpush1.bf16.msra.mxu0 %v4167
    %4193 = vmatprep.subr.bf16.mxu0 0
    %4194 = vmatpush1.bf16.msra.mxu0 %v4166
    %4195 = vmatprep.subr.bf16.mxu0 0
    %4196 = vmatpush1.bf16.msra.mxu0 %v4165
    %4197 = vmatprep.subr.bf16.mxu0 0
    %4198 = vmatpush2.bf16.msra.mxu0 0
    %4199 = vmatprep.subr.bf16.mxu0 0
    %4200 = vmatpush2.bf16.msra.mxu0 0
    %4201 = vmatprep.subr.bf16.mxu0 0
    %4202 = vmatpush2.bf16.msra.mxu0 0
    %4203 = vmatprep.subr.bf16.mxu0 0
    %4204 = vmatpush2.bf16.msra.mxu0 0
    %4205 = vmatprep.subr.bf16.mxu0 0
    %4206 = vmatpush2.bf16.msra.mxu0 0
    %4207 = vmatprep.subr.bf16.mxu0 0
    %4208 = vmatpush2.bf16.msra.mxu0 0
    %4209 = vmatprep.subr.bf16.mxu0 0
    %4210 = vmatpush2.bf16.msra.mxu0 0
    %4211 = vmatprep.subr.bf16.mxu0 0
    %4212 = vmatpush2.bf16.msra.mxu0 0
    %4213 = vmatprep.mubr.bf16.mxu0 0
    %4214 = vmatmul.mubr.bf16.gmra.mxu0 %v4107
    %v4215 = vpop.f32.mrf.mxu0
    %v4216 = vadd.f32 %v4131, %v4215
    %v4217 = vpop.f32.mrf.mxu0
    %v4218 = vpop.f32.mrf.mxu0
    %v4219 = vadd.f32 %v4131, %v4218
    %v4220 = vpop.f32.mrf.mxu0
    %4221 = vdwg.mxu0
    %v4222 = vadd.f32 %v3633, %v4216
    %v4223 = vadd.f32 %v3634, %v4219
    %s4224 = scalar_lea.vmem [#allocation19], 3
    %v4225 = vld [vmem:[%s4224] sm:$0x1]
    %s4226 = scalar_lea.vmem %s11, 3
    %v4227 = vld [vmem:[%s4226] sm:$0x1]
    %4228 = vadd.xlane.f32.xlu0 %v4222
    %v4229 = vpop.xlane.xlu0 %4228
    %4230 = vadd.xlane.f32.xlu0 %v4223
    %v4231 = vpop.xlane.xlu0 %4230
    %v4232 = vmul.f32 %v4229, %v242
    %v4233 = vmul.f32 %v4231, %v242
    %v4234 = vsub.f32 %v4222, %v4232
    %v4235 = vsub.f32 %v4223, %v4233
    %v4236 = vmul.f32 %v4234, %v4234
    %v4237 = vmul.f32 %v4235, %v4235
    %4238 = vadd.xlane.f32.xlu0 %v4236
    %v4239 = vpop.xlane.xlu0 %4238
    %4240 = vadd.xlane.f32.xlu0 %v4237
    %v4241 = vpop.xlane.xlu0 %4240
    %v4242 = vmul.f32 %v4239, %v242
    %v4243 = vmul.f32 %v4241, %v242
    %v4244 = vadd.f32 %v4242, 1e-12
    %v4245 = vadd.f32 %v4243, 1e-12
    %v4246 = vrsqrt.pop %v4244
    %v4247 = vrsqrt.pop %v4245
    %v4248 = vmul.f32 %v4234, %v4246
    %v4249 = vmul.f32 %v4235, %v4247
    %v4251 = vlaneseq
    %v4252 = vshrl.u32 %v4251, 7
    %v4253 = vsub.s32 0, %v4252
    %v4254 = vrot.slane %v4225, %v4253
    %v4256 = vmul.f32 %v4248, %v4254
    %v4257 = vmul.f32 %v4249, %v4254
    %v4259 = vlaneseq
    %v4260 = vshrl.u32 %v4259, 7
    %v4261 = vsub.s32 0, %v4260
    %v4262 = vrot.slane %v4227, %v4261
    %v4264 = vadd.f32 %v4256, %v4262
    %v4265 = vadd.f32 %v4257, %v4262
    %v4266 = vpack.c.bf16 %v4265, %v4264
    %s4267 = scalar_lea.vmem [#allocation21], 384
    %v4268 = vld [vmem:[%s4267] sm:$0xff]
    %v4269 = vld [vmem:[%s4267 + $0x8] sm:$0xff]
    %v4270 = vld [vmem:[%s4267 + $0x10] sm:$0xff]
    %v4271 = vld [vmem:[%s4267 + $0x18] sm:$0xff]
    %v4272 = vld [vmem:[%s4267 + $0x20] sm:$0xff]
    %v4273 = vld [vmem:[%s4267 + $0x28] sm:$0xff]
    %v4274 = vld [vmem:[%s4267 + $0x30] sm:$0xff]
    %v4275 = vld [vmem:[%s4267 + $0x38] sm:$0xff]
    %v4276 = vld [vmem:[%s4267 + $0x40] sm:$0xff]
    %v4277 = vld [vmem:[%s4267 + $0x48] sm:$0xff]
    %v4278 = vld [vmem:[%s4267 + $0x50] sm:$0xff]
    %v4279 = vld [vmem:[%s4267 + $0x58] sm:$0xff]
    %v4280 = vld [vmem:[%s4267 + $0x60] sm:$0xff]
    %v4281 = vld [vmem:[%s4267 + $0x68] sm:$0xff]
    %v4282 = vld [vmem:[%s4267 + $0x70] sm:$0xff]
    %v4283 = vld [vmem:[%s4267 + $0x78] sm:$0xff]
    %s4284 = scalar_lea.vmem %s13, 6
    %v4285 = vld [vmem:[%s4284] sm:$0x3]
    %v4287 = vlaneseq
    %v4288 = vshrl.u32 %v4287, 7
    %v4289 = vsub.s32 0, %v4288
    %v4290 = vrot.slane %v4285, %v4289
    %v4291 = vlaneseq
    %v4292 = vshrl.u32 %v4291, 7
    %v4293 = vsub.s32 1, %v4292
    %v4294 = vrot.slane %v4285, %v4293
    %v4313 = vunpack.c.l.b16 %v4268
    %v4314 = vunpack.c.h.b16 %v4268
    %v4315 = vunpack.c.l.b16 %v4269
    %v4316 = vunpack.c.h.b16 %v4269
    %v4317 = vunpack.c.l.b16 %v4270
    %v4318 = vunpack.c.h.b16 %v4270
    %v4319 = vunpack.c.l.b16 %v4271
    %v4320 = vunpack.c.h.b16 %v4271
    %v4321 = vunpack.c.l.b16 %v4272
    %v4322 = vunpack.c.h.b16 %v4272
    %v4323 = vunpack.c.l.b16 %v4273
    %v4324 = vunpack.c.h.b16 %v4273
    %v4325 = vunpack.c.l.b16 %v4274
    %v4326 = vunpack.c.h.b16 %v4274
    %v4327 = vunpack.c.l.b16 %v4275
    %v4328 = vunpack.c.h.b16 %v4275
    %v4329 = vunpack.c.l.b16 %v4276
    %v4330 = vunpack.c.h.b16 %v4276
    %v4331 = vunpack.c.l.b16 %v4277
    %v4332 = vunpack.c.h.b16 %v4277
    %v4333 = vunpack.c.l.b16 %v4278
    %v4334 = vunpack.c.h.b16 %v4278
    %v4335 = vunpack.c.l.b16 %v4279
    %v4336 = vunpack.c.h.b16 %v4279
    %v4337 = vunpack.c.l.b16 %v4280
    %v4338 = vunpack.c.h.b16 %v4280
    %v4339 = vunpack.c.l.b16 %v4281
    %v4340 = vunpack.c.h.b16 %v4281
    %v4341 = vunpack.c.l.b16 %v4282
    %v4342 = vunpack.c.h.b16 %v4282
    %v4343 = vunpack.c.l.b16 %v4283
    %v4344 = vunpack.c.h.b16 %v4283
    %v4345 = vpack.c.b16 %v4315, %v4313
    %v4346 = vpack.c.b16 %v4316, %v4314
    %v4347 = vpack.c.b16 %v4319, %v4317
    %v4348 = vpack.c.b16 %v4320, %v4318
    %v4349 = vpack.c.b16 %v4323, %v4321
    %v4350 = vpack.c.b16 %v4324, %v4322
    %v4351 = vpack.c.b16 %v4327, %v4325
    %v4352 = vpack.c.b16 %v4328, %v4326
    %v4353 = vpack.c.b16 %v4331, %v4329
    %v4354 = vpack.c.b16 %v4332, %v4330
    %v4355 = vpack.c.b16 %v4335, %v4333
    %v4356 = vpack.c.b16 %v4336, %v4334
    %v4357 = vpack.c.b16 %v4339, %v4337
    %v4358 = vpack.c.b16 %v4340, %v4338
    %v4359 = vpack.c.b16 %v4343, %v4341
    %v4360 = vpack.c.b16 %v4344, %v4342
    %4377 = vmatprep.subr.bf16.mxu0 %v4360
    %4378 = vmatpush1.bf16.msra.mxu0 %v4359
    %4379 = vmatprep.subr.bf16.mxu0 %v4358
    %4380 = vmatpush1.bf16.msra.mxu0 %v4357
    %4381 = vmatprep.subr.bf16.mxu0 %v4356
    %4382 = vmatpush1.bf16.msra.mxu0 %v4355
    %4383 = vmatprep.subr.bf16.mxu0 %v4354
    %4384 = vmatpush1.bf16.msra.mxu0 %v4353
    %4385 = vmatprep.subr.bf16.mxu0 %v4352
    %4386 = vmatpush1.bf16.msra.mxu0 %v4351
    %4387 = vmatprep.subr.bf16.mxu0 %v4350
    %4388 = vmatpush1.bf16.msra.mxu0 %v4349
    %4389 = vmatprep.subr.bf16.mxu0 %v4348
    %4390 = vmatpush1.bf16.msra.mxu0 %v4347
    %4391 = vmatprep.subr.bf16.mxu0 %v4346
    %4392 = vmatpush1.bf16.msra.mxu0 %v4345
    %4393 = vmatprep.subr.bf16.mxu0 0
    %4394 = vmatpush2.bf16.msra.mxu0 0
    %4395 = vmatprep.subr.bf16.mxu0 0
    %4396 = vmatpush2.bf16.msra.mxu0 0
    %4397 = vmatprep.subr.bf16.mxu0 0
    %4398 = vmatpush2.bf16.msra.mxu0 0
    %4399 = vmatprep.subr.bf16.mxu0 0
    %4400 = vmatpush2.bf16.msra.mxu0 0
    %4401 = vmatprep.subr.bf16.mxu0 0
    %4402 = vmatpush2.bf16.msra.mxu0 0
    %4403 = vmatprep.subr.bf16.mxu0 0
    %4404 = vmatpush2.bf16.msra.mxu0 0
    %4405 = vmatprep.subr.bf16.mxu0 0
    %4406 = vmatpush2.bf16.msra.mxu0 0
    %4407 = vmatprep.subr.bf16.mxu0 0
    %4408 = vmatpush2.bf16.msra.mxu0 0
    %4409 = vmatprep.mubr.bf16.mxu0 0
    %4410 = vmatmul.mubr.bf16.gmra.mxu0 %v4266
    %v4411 = vpop.f32.mrf.mxu0
    %v4412 = vadd.f32 %v4290, %v4411
    %v4413 = vpop.f32.mrf.mxu0
    %v4414 = vadd.f32 %v4294, %v4413
    %v4415 = vpop.f32.mrf.mxu0
    %v4416 = vadd.f32 %v4290, %v4415
    %v4417 = vpop.f32.mrf.mxu0
    %v4418 = vadd.f32 %v4294, %v4417
    %4419 = vdwg.mxu0
    %v4420 = vmul.f32 %v4412, 0.5
    %v4421 = vmul.f32 %v4414, 0.5
    %v4422 = vmul.f32 %v4416, 0.5
    %v4423 = vmul.f32 %v4418, 0.5
    %v4424 = vmul.f32 %v4412, 0.70710677
    %v4425 = vmul.f32 %v4414, 0.70710677
    %v4426 = vmul.f32 %v4416, 0.70710677
    %v4427 = vmul.f32 %v4418, 0.70710677
    %vm4428 = vcmp.ge.f32.partialorder %v4424, 0.0
    %vm4429 = vcmp.ge.f32.partialorder %v4425, 0.0
    %vm4430 = vcmp.ge.f32.partialorder %v4426, 0.0
    %vm4431 = vcmp.ge.f32.partialorder %v4427, 0.0
    %v4432 = vsel %vm4428, 1.0, -1.0
    %v4433 = vsel %vm4429, 1.0, -1.0
    %v4434 = vsel %vm4430, 1.0, -1.0
    %v4435 = vsel %vm4431, 1.0, -1.0
    %v4436 = vand.u32 2147483647, %v4424
    %v4437 = vand.u32 2147483647, %v4425
    %v4438 = vand.u32 2147483647, %v4426
    %v4439 = vand.u32 2147483647, %v4427
    %v4440 = vmul.f32 %v4436, 0.3275911
    %v4441 = vmul.f32 %v4437, 0.3275911
    %v4442 = vmul.f32 %v4438, 0.3275911
    %v4443 = vmul.f32 %v4439, 0.3275911
    %v4444 = vadd.f32 %v4440, 1.0
    %v4445 = vadd.f32 %v4441, 1.0
    %v4446 = vadd.f32 %v4442, 1.0
    %v4447 = vadd.f32 %v4443, 1.0
    %v4448 = vrcp.pop %v4444
    %v4449 = vmul.f32 1.0, %v4448
    %v4450 = vrcp.pop %v4445
    %v4451 = vmul.f32 1.0, %v4450
    %v4452 = vrcp.pop %v4446
    %v4453 = vmul.f32 1.0, %v4452
    %v4454 = vrcp.pop %v4447
    %v4455 = vmul.f32 1.0, %v4454
    %v4456 = vmul.f32 %v4449, 1.0614054
    %v4457 = vmul.f32 %v4451, 1.0614054
    %v4458 = vmul.f32 %v4453, 1.0614054
    %v4459 = vmul.f32 %v4455, 1.0614054
    %v4460 = vadd.f32 %v4456, -1.4531521
    %v4461 = vadd.f32 %v4457, -1.4531521
    %v4462 = vadd.f32 %v4458, -1.4531521
    %v4463 = vadd.f32 %v4459, -1.4531521
    %v4464 = vmul.f32 %v4460, %v4449
    %v4465 = vmul.f32 %v4461, %v4451
    %v4466 = vmul.f32 %v4462, %v4453
    %v4467 = vmul.f32 %v4463, %v4455
    %v4468 = vadd.f32 %v4464, 1.4214138
    %v4469 = vadd.f32 %v4465, 1.4214138
    %v4470 = vadd.f32 %v4466, 1.4214138
    %v4471 = vadd.f32 %v4467, 1.4214138
    %v4472 = vmul.f32 %v4468, %v4449
    %v4473 = vmul.f32 %v4469, %v4451
    %v4474 = vmul.f32 %v4470, %v4453
    %v4475 = vmul.f32 %v4471, %v4455
    %v4476 = vadd.f32 %v4472, -0.28449672
    %v4477 = vadd.f32 %v4473, -0.28449672
    %v4478 = vadd.f32 %v4474, -0.28449672
    %v4479 = vadd.f32 %v4475, -0.28449672
    %v4480 = vmul.f32 %v4476, %v4449
    %v4481 = vmul.f32 %v4477, %v4451
    %v4482 = vmul.f32 %v4478, %v4453
    %v4483 = vmul.f32 %v4479, %v4455
    %v4484 = vadd.f32 %v4480, 0.2548296
    %v4485 = vadd.f32 %v4481, 0.2548296
    %v4486 = vadd.f32 %v4482, 0.2548296
    %v4487 = vadd.f32 %v4483, 0.2548296
    %v4488 = vmul.f32 %v4484, %v4449
    %v4489 = vmul.f32 %v4485, %v4451
    %v4490 = vmul.f32 %v4486, %v4453
    %v4491 = vmul.f32 %v4487, %v4455
    %v4492 = vsub.f32 0.0, %v4436
    %v4493 = vsub.f32 0.0, %v4437
    %v4494 = vsub.f32 0.0, %v4438
    %v4495 = vsub.f32 0.0, %v4439
    %v4496 = vmul.f32 %v4492, %v4436
    %v4497 = vmul.f32 %v4493, %v4437
    %v4498 = vmul.f32 %v4494, %v4438
    %v4499 = vmul.f32 %v4495, %v4439
    %v4500 = vmul.f32 %v4496, 1.442695
    %v4501 = vpow.pop %v4500
    %v4502 = vmul.f32 %v4497, 1.442695
    %v4503 = vpow.pop %v4502
    %v4504 = vmul.f32 %v4498, 1.442695
    %v4505 = vpow.pop %v4504
    %v4506 = vmul.f32 %v4499, 1.442695
    %v4507 = vpow.pop %v4506
    %v4508 = vmul.f32 %v4488, %v4501
    %v4509 = vmul.f32 %v4489, %v4503
    %v4510 = vmul.f32 %v4490, %v4505
    %v4511 = vmul.f32 %v4491, %v4507
    %v4512 = vsub.f32 1.0, %v4508
    %v4513 = vsub.f32 1.0, %v4509
    %v4514 = vsub.f32 1.0, %v4510
    %v4515 = vsub.f32 1.0, %v4511
    %v4516 = vmul.f32 %v4432, %v4512
    %v4517 = vmul.f32 %v4433, %v4513
    %v4518 = vmul.f32 %v4434, %v4514
    %v4519 = vmul.f32 %v4435, %v4515
    %v4520 = vadd.f32 %v4516, 1.0
    %v4521 = vadd.f32 %v4517, 1.0
    %v4522 = vadd.f32 %v4518, 1.0
    %v4523 = vadd.f32 %v4519, 1.0
    %v4524 = vmul.f32 %v4420, %v4520
    %v4525 = vmul.f32 %v4421, %v4521
    %v4526 = vmul.f32 %v4422, %v4522
    %v4527 = vmul.f32 %v4423, %v4523
    %v4528 = vpack.c.bf16 %v4526, %v4524
    %v4529 = vpack.c.bf16 %v4527, %v4525
    %s4530 = scalar_lea.vmem [#allocation22], 384
    %v4531 = vld [vmem:[%s4530] sm:$0xf]
    %v4532 = vld [vmem:[%s4530 + $0x4] sm:$0xf]
    %v4533 = vld [vmem:[%s4530 + $0x8] sm:$0xf]
    %v4534 = vld [vmem:[%s4530 + $0xc] sm:$0xf]
    %v4535 = vld [vmem:[%s4530 + $0x10] sm:$0xf]
    %v4536 = vld [vmem:[%s4530 + $0x14] sm:$0xf]
    %v4537 = vld [vmem:[%s4530 + $0x18] sm:$0xf]
    %v4538 = vld [vmem:[%s4530 + $0x1c] sm:$0xf]
    %v4539 = vld [vmem:[%s4530 + $0x20] sm:$0xf]
    %v4540 = vld [vmem:[%s4530 + $0x24] sm:$0xf]
    %v4541 = vld [vmem:[%s4530 + $0x28] sm:$0xf]
    %v4542 = vld [vmem:[%s4530 + $0x2c] sm:$0xf]
    %v4543 = vld [vmem:[%s4530 + $0x30] sm:$0xf]
    %v4544 = vld [vmem:[%s4530 + $0x34] sm:$0xf]
    %v4545 = vld [vmem:[%s4530 + $0x38] sm:$0xf]
    %v4546 = vld [vmem:[%s4530 + $0x3c] sm:$0xf]
    %v4547 = vld [vmem:[%s4530 + $0x40] sm:$0xf]
    %v4548 = vld [vmem:[%s4530 + $0x44] sm:$0xf]
    %v4549 = vld [vmem:[%s4530 + $0x48] sm:$0xf]
    %v4550 = vld [vmem:[%s4530 + $0x4c] sm:$0xf]
    %v4551 = vld [vmem:[%s4530 + $0x50] sm:$0xf]
    %v4552 = vld [vmem:[%s4530 + $0x54] sm:$0xf]
    %v4553 = vld [vmem:[%s4530 + $0x58] sm:$0xf]
    %v4554 = vld [vmem:[%s4530 + $0x5c] sm:$0xf]
    %v4555 = vld [vmem:[%s4530 + $0x60] sm:$0xf]
    %v4556 = vld [vmem:[%s4530 + $0x64] sm:$0xf]
    %v4557 = vld [vmem:[%s4530 + $0x68] sm:$0xf]
    %v4558 = vld [vmem:[%s4530 + $0x6c] sm:$0xf]
    %v4559 = vld [vmem:[%s4530 + $0x70] sm:$0xf]
    %v4560 = vld [vmem:[%s4530 + $0x74] sm:$0xf]
    %v4561 = vld [vmem:[%s4530 + $0x78] sm:$0xf]
    %v4562 = vld [vmem:[%s4530 + $0x7c] sm:$0xf]
    %s4563 = scalar_lea.vmem %s15, 3
    %v4564 = vld [vmem:[%s4563] sm:$0x1]
    %v4566 = vlaneseq
    %v4567 = vshrl.u32 %v4566, 7
    %v4568 = vsub.s32 0, %v4567
    %v4569 = vrot.slane %v4564, %v4568
    %v4603 = vunpack.c.l.b16 %v4531
    %v4604 = vunpack.c.l.b16 %v4532
    %v4605 = vunpack.c.l.b16 %v4533
    %v4606 = vunpack.c.l.b16 %v4534
    %v4607 = vunpack.c.l.b16 %v4535
    %v4608 = vunpack.c.l.b16 %v4536
    %v4609 = vunpack.c.l.b16 %v4537
    %v4610 = vunpack.c.l.b16 %v4538
    %v4611 = vunpack.c.l.b16 %v4539
    %v4612 = vunpack.c.l.b16 %v4540
    %v4613 = vunpack.c.l.b16 %v4541
    %v4614 = vunpack.c.l.b16 %v4542
    %v4615 = vunpack.c.l.b16 %v4543
    %v4616 = vunpack.c.l.b16 %v4544
    %v4617 = vunpack.c.l.b16 %v4545
    %v4618 = vunpack.c.l.b16 %v4546
    %v4619 = vunpack.c.l.b16 %v4547
    %v4620 = vunpack.c.l.b16 %v4548
    %v4621 = vunpack.c.l.b16 %v4549
    %v4622 = vunpack.c.l.b16 %v4550
    %v4623 = vunpack.c.l.b16 %v4551
    %v4624 = vunpack.c.l.b16 %v4552
    %v4625 = vunpack.c.l.b16 %v4553
    %v4626 = vunpack.c.l.b16 %v4554
    %v4627 = vunpack.c.l.b16 %v4555
    %v4628 = vunpack.c.l.b16 %v4556
    %v4629 = vunpack.c.l.b16 %v4557
    %v4630 = vunpack.c.l.b16 %v4558
    %v4631 = vunpack.c.l.b16 %v4559
    %v4632 = vunpack.c.l.b16 %v4560
    %v4633 = vunpack.c.l.b16 %v4561
    %v4634 = vunpack.c.l.b16 %v4562
    %v4635 = vpack.c.b16 %v4604, %v4603
    %v4636 = vpack.c.b16 %v4606, %v4605
    %v4637 = vpack.c.b16 %v4608, %v4607
    %v4638 = vpack.c.b16 %v4610, %v4609
    %v4639 = vpack.c.b16 %v4612, %v4611
    %v4640 = vpack.c.b16 %v4614, %v4613
    %v4641 = vpack.c.b16 %v4616, %v4615
    %v4642 = vpack.c.b16 %v4618, %v4617
    %v4643 = vpack.c.b16 %v4620, %v4619
    %v4644 = vpack.c.b16 %v4622, %v4621
    %v4645 = vpack.c.b16 %v4624, %v4623
    %v4646 = vpack.c.b16 %v4626, %v4625
    %v4647 = vpack.c.b16 %v4628, %v4627
    %v4648 = vpack.c.b16 %v4630, %v4629
    %v4649 = vpack.c.b16 %v4632, %v4631
    %v4650 = vpack.c.b16 %v4634, %v4633
    %4667 = vmatprep.subr.bf16.mxu0 0
    %4668 = vmatpush1.bf16.msra.mxu0 %v4642
    %4669 = vmatprep.subr.bf16.mxu0 0
    %4670 = vmatpush1.bf16.msra.mxu0 %v4641
    %4671 = vmatprep.subr.bf16.mxu0 0
    %4672 = vmatpush1.bf16.msra.mxu0 %v4640
    %4673 = vmatprep.subr.bf16.mxu0 0
    %4674 = vmatpush1.bf16.msra.mxu0 %v4639
    %4675 = vmatprep.subr.bf16.mxu0 0
    %4676 = vmatpush1.bf16.msra.mxu0 %v4638
    %4677 = vmatprep.subr.bf16.mxu0 0
    %4678 = vmatpush1.bf16.msra.mxu0 %v4637
    %4679 = vmatprep.subr.bf16.mxu0 0
    %4680 = vmatpush1.bf16.msra.mxu0 %v4636
    %4681 = vmatprep.subr.bf16.mxu0 0
    %4682 = vmatpush1.bf16.msra.mxu0 %v4635
    %4683 = vmatprep.subr.bf16.mxu0 0
    %4684 = vmatpush2.bf16.msra.mxu0 %v4650
    %4685 = vmatprep.subr.bf16.mxu0 0
    %4686 = vmatpush2.bf16.msra.mxu0 %v4649
    %4687 = vmatprep.subr.bf16.mxu0 0
    %4688 = vmatpush2.bf16.msra.mxu0 %v4648
    %4689 = vmatprep.subr.bf16.mxu0 0
    %4690 = vmatpush2.bf16.msra.mxu0 %v4647
    %4691 = vmatprep.subr.bf16.mxu0 0
    %4692 = vmatpush2.bf16.msra.mxu0 %v4646
    %4693 = vmatprep.subr.bf16.mxu0 0
    %4694 = vmatpush2.bf16.msra.mxu0 %v4645
    %4695 = vmatprep.subr.bf16.mxu0 0
    %4696 = vmatpush2.bf16.msra.mxu0 %v4644
    %4697 = vmatprep.subr.bf16.mxu0 0
    %4698 = vmatpush2.bf16.msra.mxu0 %v4643
    %4699 = vmatprep.mubr.bf16.mxu0 %v4529
    %4700 = vmatmul.mubr.bf16.gmra.mxu0 %v4528
    %v4701 = vpop.f32.mrf.mxu0
    %v4702 = vadd.f32 %v4569, %v4701
    %v4703 = vpop.f32.mrf.mxu0
    %v4704 = vpop.f32.mrf.mxu0
    %v4705 = vadd.f32 %v4569, %v4704
    %v4706 = vpop.f32.mrf.mxu0
    %4707 = vdwg.mxu0
    %v4708 = vadd.f32 %v4264, %v4702
    %v4709 = vadd.f32 %v4265, %v4705
    %s4710 = scalar_lea.vmem %s16, 3
    %v4711 = vld [vmem:[%s4710] sm:$0x1]
    %s4712 = scalar_lea.vmem %s17, 3
    %v4713 = vld [vmem:[%s4712] sm:$0x1]
    %4714 = vadd.xlane.f32.xlu0 %v4708
    %v4715 = vpop.xlane.xlu0 %4714
    %4716 = vadd.xlane.f32.xlu0 %v4709
    %v4717 = vpop.xlane.xlu0 %4716
    %v4718 = vmul.f32 %v4715, %v242
    %v4719 = vmul.f32 %v4717, %v242
    %v4720 = vsub.f32 %v4708, %v4718
    %v4721 = vsub.f32 %v4709, %v4719
    %v4722 = vmul.f32 %v4720, %v4720
    %v4723 = vmul.f32 %v4721, %v4721
    %4724 = vadd.xlane.f32.xlu0 %v4722
    %v4725 = vpop.xlane.xlu0 %4724
    %4726 = vadd.xlane.f32.xlu0 %v4723
    %v4727 = vpop.xlane.xlu0 %4726
    %v4728 = vmul.f32 %v4725, %v242
    %v4729 = vmul.f32 %v4727, %v242
    %v4730 = vadd.f32 %v4728, 1e-12
    %v4731 = vadd.f32 %v4729, 1e-12
    %v4732 = vrsqrt.pop %v4730
    %v4733 = vrsqrt.pop %v4731
    %v4734 = vmul.f32 %v4720, %v4732
    %v4735 = vmul.f32 %v4721, %v4733
    %v4737 = vlaneseq
    %v4738 = vshrl.u32 %v4737, 7
    %v4739 = vsub.s32 0, %v4738
    %v4740 = vrot.slane %v4711, %v4739
    %v4742 = vmul.f32 %v4734, %v4740
    %v4743 = vmul.f32 %v4735, %v4740
    %v4745 = vlaneseq
    %v4746 = vshrl.u32 %v4745, 7
    %v4747 = vsub.s32 0, %v4746
    %v4748 = vrot.slane %v4713, %v4747
    %v4750 = vadd.f32 %v4742, %v4748
    %v4751 = vadd.f32 %v4743, %v4748
    %4752 = vst [vmem:[#allocation2] sm:$0xff] %v4750
    %4753 = vst [vmem:[#allocation2 + $0x8] sm:$0xff] %v4751
    %v4754 = vld [vmem:[#allocation2] ss:$8 sm:$0x3]
    %v4755 = vld [vmem:[%s18] sm:$0x1]
    %v4757 = vlaneseq
    %v4758 = vshrl.u32 %v4757, 7
    %v4759 = vsub.s32 0, %v4758
    %v4760 = vrot.slane %v4755, %v4759
    %v4762 = vmul.f32 %v4754, %v4760
    %vm4763 = vcmask 1041408
    %v4764 = vsel %vm4763, %v4762, 0.0
    %4765 = vadd.xlane.f32.xlu0 %v4764
    %v4766 = vpop.xlane.xlu0 %4765
    %v4767 = vld [vmem:[#allocation3] sm:$0x1]
    %v4769 = vlaneseq
    %v4770 = vshrl.u32 %v4769, 7
    %v4771 = vsub.s32 0, %v4770
    %v4772 = vrot.slane %v4767, %v4771
    %v4774 = vadd.f32 %v4766, %v4772
    %4776 = vset.pattern.permute.xlu0 0
    %4777 = vperm.xlu0 %4776, %v4774
    %v4778 = vpop.permute.xlu0 %4777
    %4780 = vst [vmem:[#allocation24] sm:$0x3] %v4778
    %v4781 = vld [vmem:[%s20] sm:$0x3]
    %v4782 = vsub.f32 %v4774, %v4781
    %v4783 = vmul.f32 %v4782, %v4782
    %vm4784 = vcmask 1024
    %v4785 = vsel %vm4784, %v4783, 0.0
    %v4786 = vrot.slane %v4785, 4
    %v4787 = vadd.f32 %v4785, %v4786
    %v4788 = vrot.slane %v4787, 2
    %v4789 = vadd.f32 %v4787, %v4788
    %v4790 = vrot.slane %v4789, 1
    %v4791 = vadd.f32 %v4789, %v4790
    %v4792 = vmul.f32 %v4791, 0.5
    %4794 = vset.pattern.permute.xlu0 0
    %4795 = vperm.xlu0 %4794, %v4792
    %v4796 = vpop.permute.xlu0 %4795
    %4798 = vst [vmem:[#allocation25] sm:$0x1] %v4796
    // Predicated region
    $region134: #{tpu_custom_call.1} parent=1 // pred_check
      _
    $region135: #{tpu_custom_call.1} parent=1 // pred_check_branch
      %4800 = sbr.rel (0) target = $region137
    $region136: #{tpu_custom_call.1} parent=1 // pred_region
      %s4802 = ssub.s32 32, 32
      %4803 = vsyncadd [#allocation6], %s4802
      %s4805 = sshll.u32 [#allocation24], 4
      %s4806 = int_to_ptr.vmem [resolvable:$true] %s4805
      %4808 = dma.vmem_to_hbm [thread:$0]  %s4806, 32, %s21, [#allocation6]
    $region137: #{tpu_custom_call.1} parent=1 // pred_fallthru
      _
    // Predicated region
    $region138: #{tpu_custom_call.1} parent=1 // pred_check
      _
    $region139: #{tpu_custom_call.1} parent=1 // pred_check_branch
      %4810 = sbr.rel (0) target = $region141
    $region140: #{tpu_custom_call.1} parent=1 // pred_region
      %s4812 = ssub.s32 16, 16
      %4813 = vsyncadd [#allocation26], %s4812
      %s4815 = sshll.u32 [#allocation25], 4
      %s4816 = int_to_ptr.vmem [resolvable:$true] %s4815
      %4818 = dma.vmem_to_hbm [thread:$0]  %s4816, 16, %s22, [#allocation26]
    $region141: #{tpu_custom_call.1} parent=1 // pred_fallthru
      _
    // Predicated region
    $region142: #{tpu_custom_call.1} parent=1 // pred_check
      _
    $region143: #{tpu_custom_call.1} parent=1 // pred_check_branch
      %4820 = sbr.rel (0) target = $region145
    $region144: #{tpu_custom_call.1} parent=1 // pred_region
      %4821 = dma.done [#allocation6], 32
    $region145: #{tpu_custom_call.1} parent=1 // pred_fallthru
      _
    // Predicated region
    $region146: #{tpu_custom_call.1} parent=1 // pred_check
      _
    $region147: #{tpu_custom_call.1} parent=1 // pred_check_branch
      %4823 = sbr.rel (0) target = $region149
    $region148: #{tpu_custom_call.1} parent=1 // pred_region
      %4824 = dma.done [#allocation26], 16
    $region149: #{tpu_custom_call.1} parent=1 // pred_fallthru
      _
    %4825 = vsyncpa [#allocation5], 1
    %4826 = vsyncpa [#allocation8], 1
    %4827 = vsyncpa [#allocation11], 1
    %4828 = vsyncpa [#allocation14], 1
    %4829 = vsyncpa [#allocation17], 1
    %4830 = vsyncpa [#allocation20], 1
    %4831 = vsyncpa [#allocation23], 1
    %4832 = vsyncpa [#allocation6], 1
    %4833 = vsyncpa [#allocation26], 1

</llo_original>
